<compile_context>
chip_gen: v7x
topology: tpu7x:2x2x1
jax: 0.10.0
libtpu: 0.0.40
codegen_flags: <defaults>
</compile_context>

<pallas_src>
import math

import numpy as np
import jax
import jax.numpy as jnp
from jax import lax
from jax.experimental import pallas as pl
from jax.experimental.pallas import tpu as pltpu

K_ALIGN = 16                      # bf16 sublane packing for the contraction dim
W_TILE_VMEM_BUDGET = 8 * 1024 * 1024   # double-buffered W tile budget (v7x-safe)


def _round_up(x, m):
    return ((x + m - 1) // m) * m


def _choose_tn(n128, kp, w_itemsize=2):
    """Largest multiple-of-128 divisor of n128 that (a) keeps the double-buffered
    streamed W tile within the VMEM budget and (b) keeps >=2 grid steps when
    possible (so both v7x TensorCores get work)."""
    m = n128 // 128
    max_cols = max(1, W_TILE_VMEM_BUDGET // (2 * kp * w_itemsize * 128))
    target = min(max_cols, m // 2) if m >= 2 else m
    target = max(target, 1)
    best = 1
    for d in range(1, m + 1):
        if m % d == 0 and d <= target:
            best = d
    return best * 128


# ---------------------------------------------------------------------------
# Pallas kernel:  out = z @ W' + mu'   (bias fused in epilogue, f32 accumulation)
# ---------------------------------------------------------------------------
def _construct_kernel(z_ref, w_ref, mu_ref, o_ref):
    acc = jnp.dot(z_ref[...], w_ref[...], preferred_element_type=jnp.float32)  # MXU
    o_ref[...] = (acc + mu_ref[...].astype(jnp.float32)).astype(o_ref.dtype)


def _construct_gemm(zp, W, mu, tn):
    B, Kp = zp.shape
    _, Np = W.shape
    assert Np % tn == 0
    n_steps = Np // tn
    flops = 2 * B * Kp * Np
    bytes_accessed = (zp.size * zp.dtype.itemsize + W.size * W.dtype.itemsize
                      + mu.size * mu.dtype.itemsize + B * Np * 4)
    return pl.pallas_call(
        _construct_kernel,
        out_shape=jax.ShapeDtypeStruct((B, Np), jnp.float32),
        grid_spec=pltpu.PrefetchScalarGridSpec(
            num_scalar_prefetch=0,
            grid=(n_steps,),
            in_specs=[
                pl.BlockSpec((B, Kp), lambda j: (0, 0)),    # z: VMEM-resident
                pl.BlockSpec((Kp, tn), lambda j: (0, j)),   # weight tile streams
                pl.BlockSpec((1, tn), lambda j: (0, j)),    # bias tile streams
            ],
            out_specs=pl.BlockSpec((B, tn), lambda j: (0, j)),
        ),
        compiler_params=pltpu.CompilerParams(
            dimension_semantics=("parallel",)),
        cost_estimate=pl.CostEstimate(flops=flops, transcendentals=0,
                                      bytes_accessed=bytes_accessed),
    )(zp, W, mu)


# ---------------------------------------------------------------------------
# Parameter construction (mirrors SubspaceLayer / CorePartLayer / SquarePartLayer)
# ---------------------------------------------------------------------------
def _position_matrix(position, edge, resolution):
    m = np.zeros((edge, resolution), dtype=np.float32)
    m[np.arange(edge), position + np.arange(edge)] = 1.0
    return jnp.asarray(m)


def _subspace_init(key, dim, n_basis):
    # TODO(synk): PyTorch uses nn.init.orthogonal_ for U; a scaled normal init is
    # used here (init only -- forward semantics are independent of the init scheme).
    U = jax.random.normal(key, (n_basis, dim), jnp.float32) / math.sqrt(dim)
    L = jnp.asarray([3.0 * i for i in range(n_basis, 0, -1)], jnp.float32)
    mu = jnp.zeros((dim,), jnp.float32)
    return dict(U=U, L=L, mu=mu)


def _core_part(key, r, C, n_basis, core_size=None):
    core = r // 2 if core_size is None else core_size
    periph = (r - core) // 2
    pm = _position_matrix(periph, core, r)
    sub = _subspace_init(key, C * core ** 3, n_basis)
    return dict(ijk=(core, core, core), id=pm, jh=pm, kw=pm, **sub)


def _square_part(key, axis, r, C, n_basis, core_size=None):
    core = r // 2 if core_size is None else core_size
    periph = (r - core) // 2
    position_list = np.array([0, periph, periph + core], dtype=np.int64)
    edge_list = np.array([periph, core], dtype=np.int64)
    index0 = np.array([1, 1, 1]); index0[axis] = 0
    index1 = np.array([1, 1, 1]); index1[axis] = 2
    edges = edge_list[index0 % 2]
    tm = [[], [], []]
    p0 = position_list[index0]
    for d in range(3):
        tm[d].append(_position_matrix(int(p0[d]), int(edges[d]), r))
    p1 = position_list[index1]
    tm[axis].append(_position_matrix(int(p1[axis]), int(edges[axis]), r))
    ijk = tuple(int(v) for v in (edges * index1))
    sub = _subspace_init(key, int(edges.prod()) * 2 * C, n_basis)
    return dict(ijk=ijk,
                id=jnp.concatenate(tm[0], axis=0),
                jh=jnp.concatenate(tm[1], axis=0),
                kw=jnp.concatenate(tm[2], axis=0),
                **sub)


def build_construction_params(key, r, in_channels, n_basis, n_parts=4, core_size=None):
    assert n_parts == 4
    keys = jax.random.split(key, n_parts)
    parts = [_core_part(keys[0], r, in_channels, n_basis, core_size)]
    for axis in range(3):
        parts.append(_square_part(keys[axis + 1], axis, r, in_channels, n_basis, core_size))
    return parts


def fold_construction_params(parts, r, C):
    """Fold every part's constant one-hot position einsum AND the per-basis L
    scale into its subspace weights; concatenate all parts into one (K, N)
    weight, one (N,) bias.  Pad once (here) to MXU/sublane alignment and cast
    the streamed operands to bf16."""
    n_basis = parts[0]["L"].shape[0]
    N = C * r ** 3
    hi = lax.Precision.HIGHEST
    Ws, mus = [], []
    for p in parts:
        i, j, k = p["ijk"]
        U5 = p["U"].reshape(n_basis, C, i, j, k)
        Wp = jnp.einsum("ncijk,id,jh,kw->ncdhw", U5, p["id"], p["jh"], p["kw"],
                        precision=hi).reshape(n_basis, N)
        Wp = p["L"][:, None] * Wp                      # fold (L * z) @ U  ->  z @ (L*U)
        Ws.append(Wp)
        mu5 = p["mu"].reshape(C, i, j, k)
        mus.append(jnp.einsum("cijk,id,jh,kw->cdhw", mu5, p["id"], p["jh"], p["kw"],
                              precision=hi).reshape(N))
    W = jnp.concatenate(Ws, axis=0)          # (K, N)
    mu = jnp.sum(jnp.stack(mus), axis=0)     # (N,)  (part regions are disjoint)
    K = W.shape[0]
    Kp = _round_up(K, K_ALIGN)               # sublane/pack alignment only, NOT 128
    Np = _round_up(N, 128)
    tn = _choose_tn(Np, Kp, w_itemsize=2)
    W_pad = jnp.zeros((Kp, Np), jnp.bfloat16).at[:K, :N].set(W.astype(jnp.bfloat16))
    mu_pad = jnp.zeros((1, Np), jnp.bfloat16).at[0, :N].set(mu.astype(jnp.bfloat16))
    return dict(W=W_pad, mu=mu_pad, K=K, Kp=Kp, N=N, Np=Np, tn=tn, C=C, r=r)


def make_construction_forward(folded):
    W, mu = folded["W"], folded["mu"]
    K, Kp, N, tn = folded["K"], folded["Kp"], folded["N"], folded["tn"]
    C, r = folded["C"], folded["r"]

    def forward(z_list):                      # (B, n_parts * n_basis)
        assert z_list.shape[1] == K
        B = z_list.shape[0]
        # tiny per-call pad: (B, K) -> (B, Kp) and cast to bf16; rows stay == B
        zp = jnp.zeros((B, Kp), jnp.bfloat16).at[:, :K].set(z_list.astype(jnp.bfloat16))
        out = _construct_gemm(zp, W, mu, tn)  # (B, Np) f32
        return out[:, :N].reshape(B, C, r, r, r)

    return jax.jit(forward)


# ---------------------------------------------------------------------------
# Pure-JAX reference following the PyTorch forward literally (per-part subspace
# projection + position-matrix einsum + sum) -- used only to verify semantics.
# ---------------------------------------------------------------------------
def construction_reference(parts, z_list, C):
    n_basis = parts[0]["L"].shape[0]
    getter = None
    for idx, p in enumerate(parts):
        z = z_list[:, idx * n_basis:(idx + 1) * n_basis]
        proj = (p["L"] * z) @ p["U"] + p["mu"]
        i, j, k = p["ijk"]
        out = jnp.einsum("bcijk,id,jh,kw->bcdhw",
                         proj.reshape(-1, C, i, j, k),
                         p["id"], p["jh"], p["kw"],
                         precision=lax.Precision.HIGHEST)
        getter = out if getter is None else getter + out
    return getter


# ---------------------------------------------------------------------------
if __name__ == "__main__":
    key = jax.random.PRNGKey(0)
    kparam, kz = jax.random.split(key)

    # Small config: r=16, in_channels=4, n_basis=6, n_parts=4, batch=2.
    B, C, r, n_basis, n_parts = 2, 4, 16, 6, 4
    parts = build_construction_params(kparam, r, C, n_basis, n_parts)
    folded = fold_construction_params(parts, r, C)
    forward = make_construction_forward(folded)

    z_list = jax.random.normal(kz, (B, n_parts * n_basis), jnp.float32)
    out = jax.block_until_ready(forward(z_list))

    assert out.shape == (B, C, r, r, r), out.shape
    assert bool(jnp.all(jnp.isfinite(out)))

    ref = construction_reference(parts, z_list, C)
    abs_err = float(jnp.max(jnp.abs(out - ref)))
    rel_err = abs_err / (float(jnp.max(jnp.abs(ref))) + 1e-6)
    assert rel_err < 5e-2, f"mismatch vs reference: abs={abs_err} rel={rel_err}"

    print("KERNEL_OK")
</pallas_src>

<mosaic_0001>
module attributes {stable_mosaic.version = 11 : i64} {
  func.func @_construct_kernel(%arg0: i32, %arg1: memref<2x32xbf16, #tpu.memory_space<vmem>>, %arg2: memref<32x8192xbf16, #tpu.memory_space<vmem>>, %arg3: memref<1x8192xbf16, #tpu.memory_space<vmem>>, %arg4: memref<2x8192xf32, #tpu.memory_space<vmem>>) attributes {dimension_semantics = [#tpu.dimension_semantics<parallel>], iteration_bounds = array<i64: 2>, scalar_prefetch = 0 : i64, scratch_operands = 0 : i64, tpu.core_type = #tpu.core_type<tc>, window_params = [{pipeline_mode = #tpu.pipeline_mode<synchronous>, transform_indices = @transform_0, window_bounds = array<i64: 2, 32>}, {transform_indices = @transform_1, window_bounds = array<i64: 32, 8192>}, {transform_indices = @transform_2, window_bounds = array<i64: 1, 8192>}, {transform_indices = @transform_3, window_bounds = array<i64: 2, 8192>}]} {
    %c0 = arith.constant 0 : index
    %c0_0 = arith.constant 0 : index
    %0 = vector.load %arg1[%c0, %c0_0] : memref<2x32xbf16, #tpu.memory_space<vmem>>, vector<2x32xbf16>
    %c0_1 = arith.constant 0 : index
    %c0_2 = arith.constant 0 : index
    %1 = vector.load %arg2[%c0_1, %c0_2] : memref<32x8192xbf16, #tpu.memory_space<vmem>>, vector<32x8192xbf16>
    %cst = arith.constant dense<0.000000e+00> : vector<2x8192xf32>
    %2 = tpu.matmul %0, %1, %cst {dimension_numbers = #tpu.dot_dimension_numbers<[1], [0], [0], [1], [0, 0, 1, 1], [], []>} : vector<2x32xbf16>, vector<32x8192xbf16>, vector<2x8192xf32> -> vector<2x8192xf32>
    %c0_3 = arith.constant 0 : index
    %c0_4 = arith.constant 0 : index
    %3 = vector.load %arg3[%c0_3, %c0_4] : memref<1x8192xbf16, #tpu.memory_space<vmem>>, vector<1x8192xbf16>
    %4 = arith.extf %3 : vector<1x8192xbf16> to vector<1x8192xf32>
    %5 = vector.broadcast %4 : vector<1x8192xf32> to vector<2x8192xf32>
    %6 = arith.addf %2, %5 : vector<2x8192xf32>
    %c0_5 = arith.constant 0 : index
    %c0_6 = arith.constant 0 : index
    %7 = vector.load %arg4[%c0_5, %c0_6] : memref<2x8192xf32, #tpu.memory_space<vmem>>, vector<2x8192xf32>
    tpu.vector_store %arg4[%c0_5, %c0_6], %6 {strides = array<i32>} : memref<2x8192xf32, #tpu.memory_space<vmem>>, vector<2x8192xf32>,
    return
  }
  func.func @transform_0(%arg0: i32) -> (i32, i32) {
    %c0_i32 = arith.constant 0 : i32
    %c0_i32_0 = arith.constant 0 : i32
    %c0_i32_1 = arith.constant 0 : i32
    return %c0_i32, %c0_i32_0 : i32, i32
  }
  func.func @transform_1(%arg0: i32) -> (i32, i32) {
    %c0_i32 = arith.constant 0 : i32
    %c0_i32_0 = arith.constant 0 : i32
    return %c0_i32, %arg0 : i32, i32
  }
  func.func @transform_2(%arg0: i32) -> (i32, i32) {
    %c0_i32 = arith.constant 0 : i32
    %c0_i32_0 = arith.constant 0 : i32
    return %c0_i32, %arg0 : i32, i32
  }
  func.func @transform_3(%arg0: i32) -> (i32, i32) {
    %c0_i32 = arith.constant 0 : i32
    %c0_i32_0 = arith.constant 0 : i32
    return %c0_i32, %arg0 : i32, i32
  }
}

</mosaic_0001>

<llo_original>
// kernel: forward.1
$region0: #{forward.1}
  #allocation0 [shape = 'u32[]', space=smem, size = 0x4, offset = 0x4, fixed_abs, tag = 'smem constant byte address 0x4 - core index']
  #allocation1 [shape = 'u32[144,128]{1,0:T(1,128)}', space=vmem, size = 0x12000, scoped, tag = 'internal scratch']
  %s0 = inlined_call_operand.vmem [shape: bf16[2,32], index: 0, kind: input, shape index: {}]
  %s1 = inlined_call_operand.vmem [shape: bf16[32,16384], index: 1, kind: input, shape index: {}]
  %s2 = inlined_call_operand.vmem [shape: bf16[1,16384], index: 2, kind: input, shape index: {}]
  %s3 = inlined_call_operand.vmem [shape: f32[2,16384], index: 3, kind: output, shape index: {}]
  %s4 = sld [smem:[#allocation0]]
  $region68: #{forward.1} parent=0
    _
  %s6 = ssub.s32 1, %s4
  %s7 = scalar_select 0, %s6, %s4
  $region1: #{forward.1} parent=0
    #allocation2 [shape = 'u8[1048576]{0}', space=vmem, size = 0x100000, scoped, tag = 'input window, operand 1']
    loop: start=0, step=1, limit=4
    $region2: #{forward.1} parent=1 // loop_pre_header
      _
    $region3: #{forward.1} parent=1 // loop_header
      %s9 = sphi 0, %s13
      %p10 = scmp.ge.s32.totalorder %s9, 4
      %s17 = sphi 0, %s17
      %s19 = sphi 0, %s17
      %s20 = sphi 0, %s19
      %s34 = sphi 0, %s20
      %s40 = sphi 0, %s42
      %s43 = sphi 0, %s40
      %s44 = sphi 0, %s43
      %s60 = sphi 0, %s44
      %s66 = sphi 0, %s68
      %s69 = sphi 0, %s66
      %s70 = sphi 0, %s69
      %s86 = sphi 0, %s70
      %s92 = sphi 0, %s94
      %s95 = sphi 0, %s92
      %s96 = sphi 0, %s95
      %s112 = sphi 0, %s96
    $region4: #{forward.1} parent=1 // loop_header_branch
      %12 = sbr.rel (%p10) target = $region8
    $region5: #{forward.1} parent=1 // loop_body
      %s14 = ssub.s32 %s9, 1
      %s15 = ssub.s32 %s9, 2
      %s16 = sadd.s32 %s9, 1
      %s18 = sadd.s32 %s17, 1
      %p21 = scmp.eq.s32.totalorder %s9, 1
      %p22 = scmp.ne.s32.totalorder %s17, %s19
      %p23 = scmp.eq.s32.totalorder %s9, 0
      %p24 = por %p22, %p23
      %p25 = scmp.ne.s32.totalorder %s17, %s19
      %p26 = scmp.eq.s32.totalorder %s14, 1
      %p27 = por %p25, %p26
      %p28 = scmp.ne.s32.totalorder %s19, %s20
      %p29 = scmp.eq.s32.totalorder %s14, 0
      %p30 = por %p28, %p29
      %p31 = scmp.ne.s32.totalorder %s19, %s20
      %p32 = scmp.eq.s32.totalorder %s15, 1
      %p33 = por %p31, %p32
      %p35 = scmp.ne.s32.totalorder %s20, %s34
      %p36 = scmp.eq.s32.totalorder %s15, 0
      %p37 = por %p35, %p36
      %s38 = ssub.s32 %s9, %s16
      %p39 = scmp.eq.s32.totalorder %s38, 0
      %s41 = sadd.s32 %s40, 1
      %s42 = scalar_select %p39, %s40, %s41
      %p45 = pneg %p39
      %p46 = scmp.eq.s32.totalorder %s9, 1
      %p47 = por %p45, %p46
      %p48 = scmp.ne.s32.totalorder %s40, %s43
      %p49 = scmp.eq.s32.totalorder %s9, 0
      %p50 = por %p48, %p49
      %p51 = scmp.ne.s32.totalorder %s40, %s43
      %p52 = scmp.eq.s32.totalorder %s14, 1
      %p53 = por %p51, %p52
      %p54 = scmp.ne.s32.totalorder %s43, %s44
      %p55 = scmp.eq.s32.totalorder %s14, 0
      %p56 = por %p54, %p55
      %p57 = scmp.ne.s32.totalorder %s43, %s44
      %p58 = scmp.eq.s32.totalorder %s15, 1
      %p59 = por %p57, %p58
      %p61 = scmp.ne.s32.totalorder %s44, %s60
      %p62 = scmp.eq.s32.totalorder %s15, 0
      %p63 = por %p61, %p62
      %s64 = ssub.s32 %s9, %s16
      %p65 = scmp.eq.s32.totalorder %s64, 0
      %s67 = sadd.s32 %s66, 1
      %s68 = scalar_select %p65, %s66, %s67
      %p71 = pneg %p65
      %p72 = scmp.eq.s32.totalorder %s9, 1
      %p73 = por %p71, %p72
      %p74 = scmp.ne.s32.totalorder %s66, %s69
      %p75 = scmp.eq.s32.totalorder %s9, 0
      %p76 = por %p74, %p75
      %p77 = scmp.ne.s32.totalorder %s66, %s69
      %p78 = scmp.eq.s32.totalorder %s14, 1
      %p79 = por %p77, %p78
      %p80 = scmp.ne.s32.totalorder %s69, %s70
      %p81 = scmp.eq.s32.totalorder %s14, 0
      %p82 = por %p80, %p81
      %p83 = scmp.ne.s32.totalorder %s69, %s70
      %p84 = scmp.eq.s32.totalorder %s15, 1
      %p85 = por %p83, %p84
      %p87 = scmp.ne.s32.totalorder %s70, %s86
      %p88 = scmp.eq.s32.totalorder %s15, 0
      %p89 = por %p87, %p88
      %s90 = ssub.s32 %s9, %s16
      %p91 = scmp.eq.s32.totalorder %s90, 0
      %s93 = sadd.s32 %s92, 1
      %s94 = scalar_select %p91, %s92, %s93
      %p97 = pneg %p91
      %p98 = scmp.eq.s32.totalorder %s9, 1
      %p99 = por %p97, %p98
      %p100 = scmp.ne.s32.totalorder %s92, %s95
      %p101 = scmp.eq.s32.totalorder %s9, 0
      %p102 = por %p100, %p101
      %p103 = scmp.ne.s32.totalorder %s92, %s95
      %p104 = scmp.eq.s32.totalorder %s14, 1
      %p105 = por %p103, %p104
      %p106 = scmp.ne.s32.totalorder %s95, %s96
      %p107 = scmp.eq.s32.totalorder %s14, 0
      %p108 = por %p106, %p107
      %p109 = scmp.ne.s32.totalorder %s95, %s96
      %p110 = scmp.eq.s32.totalorder %s15, 1
      %p111 = por %p109, %p110
      %p113 = scmp.ne.s32.totalorder %s96, %s112
      %p114 = scmp.eq.s32.totalorder %s15, 0
      %p115 = por %p113, %p114
      %p116 = scmp.le.s32.totalorder 1, %s9
      %p117 = scmp.lt.s32.totalorder %s9, 3
      %p118 = pnand %p116, %p117
      %p119 = pneg %p118
      // Predicated region
      $region9: #{forward.1} parent=5 // pred_check
        _
      $region10: #{forward.1} parent=5 // pred_check_branch
        %121 = sbr.rel (%p118) target = $region12
      $region11: #{forward.1} parent=5 // pred_region
        %s122 = ssub.s32 %s9, 1
        // Predicated region
        $region13: #{forward.1} parent=11 // pred_check
          %p123 = pneg %p30
        $region14: #{forward.1} parent=11 // pred_check_branch
          %125 = sbr.rel (%p123) target = $region16
        $region15: #{forward.1} parent=11 // pred_region
          _
        $region16: #{forward.1} parent=11 // pred_fallthru
          _
      $region12: #{forward.1} parent=5 // pred_fallthru
        _
      %p126 = scmp.lt.s32.totalorder %s9, 2
      // Predicated region
      $region17: #{forward.1} parent=5 // pred_check
        %p127 = pneg %p126
      $region18: #{forward.1} parent=5 // pred_check_branch
        %129 = sbr.rel (%p127) target = $region20
      $region19: #{forward.1} parent=5 // pred_region
        // Predicated region
        $region21: #{forward.1} parent=19 // pred_check
          %p130 = pneg %p50
        $region22: #{forward.1} parent=19 // pred_check_branch
          %132 = sbr.rel (%p130) target = $region24
        $region23: #{forward.1} parent=19 // pred_region
          %s133 = sand.u32 %s40, 1
          %s134 = sand.u32 %s40, 1
          %s135 = smul.addr %s134, 1024
          %s136 = scalar_lea.vmem [#allocation2], %s135
          %s137 = smul.u32 64, %s9
          %s138 = smul.addr %s137, 4
          %s139 = scalar_lea.vmem %s1, %s138
          // Predicated region
          $region25: #{forward.1} parent=23 // pred_check
            _
          $region26: #{forward.1} parent=23 // pred_check_branch
            %141 = sbr.rel (0) target = $region28
          $region27: #{forward.1} parent=23 // pred_region
            // Predicated region
            $region29: #{forward.1} parent=27 // pred_check
              _
            $region30: #{forward.1} parent=27 // pred_check_branch
              %143 = sbr.rel (0) target = $region32
            $region31: #{forward.1} parent=27 // pred_region
              loop: start=0, step=1, limit=1
              $region33: #{forward.1} parent=31 // loop_pre_header
                _
              $region34: #{forward.1} parent=31 // loop_header
                %s145 = sphi 0, %s149
                %p146 = scmp.ge.s32.totalorder %s145, 1
                %s150 = sphi %s139, %s139
                %s151 = sphi %s136, %s136
              $region35: #{forward.1} parent=31 // loop_header_branch
                %148 = sbr.rel (%p146) target = $region39
              $region36: #{forward.1} parent=31 // loop_body
                %v152 = vld [vmem:[%s150] sm:$0xff]
                %153 = vst [vmem:[%s151] sm:$0xff] %v152
                %v154 = vld [vmem:[%s150 + $0x8] sm:$0xff]
                %155 = vst [vmem:[%s151 + $0x8] sm:$0xff] %v154
                %v156 = vld [vmem:[%s150 + $0x10] sm:$0xff]
                %157 = vst [vmem:[%s151 + $0x10] sm:$0xff] %v156
                %v158 = vld [vmem:[%s150 + $0x18] sm:$0xff]
                %159 = vst [vmem:[%s151 + $0x18] sm:$0xff] %v158
                %v160 = vld [vmem:[%s150 + $0x20] sm:$0xff]
                %161 = vst [vmem:[%s151 + $0x20] sm:$0xff] %v160
                %v162 = vld [vmem:[%s150 + $0x28] sm:$0xff]
                %163 = vst [vmem:[%s151 + $0x28] sm:$0xff] %v162
                %v164 = vld [vmem:[%s150 + $0x30] sm:$0xff]
                %165 = vst [vmem:[%s151 + $0x30] sm:$0xff] %v164
                %v166 = vld [vmem:[%s150 + $0x38] sm:$0xff]
                %167 = vst [vmem:[%s151 + $0x38] sm:$0xff] %v166
                %v168 = vld [vmem:[%s150 + $0x40] sm:$0xff]
                %169 = vst [vmem:[%s151 + $0x40] sm:$0xff] %v168
                %v170 = vld [vmem:[%s150 + $0x48] sm:$0xff]
                %171 = vst [vmem:[%s151 + $0x48] sm:$0xff] %v170
                %v172 = vld [vmem:[%s150 + $0x50] sm:$0xff]
                %173 = vst [vmem:[%s151 + $0x50] sm:$0xff] %v172
                %v174 = vld [vmem:[%s150 + $0x58] sm:$0xff]
                %175 = vst [vmem:[%s151 + $0x58] sm:$0xff] %v174
                %v176 = vld [vmem:[%s150 + $0x60] sm:$0xff]
                %177 = vst [vmem:[%s151 + $0x60] sm:$0xff] %v176
                %v178 = vld [vmem:[%s150 + $0x68] sm:$0xff]
                %179 = vst [vmem:[%s151 + $0x68] sm:$0xff] %v178
                %v180 = vld [vmem:[%s150 + $0x70] sm:$0xff]
                %181 = vst [vmem:[%s151 + $0x70] sm:$0xff] %v180
                %v182 = vld [vmem:[%s150 + $0x78] sm:$0xff]
                %183 = vst [vmem:[%s151 + $0x78] sm:$0xff] %v182
                %v184 = vld [vmem:[%s150 + $0x80] sm:$0xff]
                %185 = vst [vmem:[%s151 + $0x80] sm:$0xff] %v184
                %v186 = vld [vmem:[%s150 + $0x88] sm:$0xff]
                %187 = vst [vmem:[%s151 + $0x88] sm:$0xff] %v186
                %v188 = vld [vmem:[%s150 + $0x90] sm:$0xff]
                %189 = vst [vmem:[%s151 + $0x90] sm:$0xff] %v188
                %v190 = vld [vmem:[%s150 + $0x98] sm:$0xff]
                %191 = vst [vmem:[%s151 + $0x98] sm:$0xff] %v190
                %v192 = vld [vmem:[%s150 + $0xa0] sm:$0xff]
                %193 = vst [vmem:[%s151 + $0xa0] sm:$0xff] %v192
                %v194 = vld [vmem:[%s150 + $0xa8] sm:$0xff]
                %195 = vst [vmem:[%s151 + $0xa8] sm:$0xff] %v194
                %v196 = vld [vmem:[%s150 + $0xb0] sm:$0xff]
                %197 = vst [vmem:[%s151 + $0xb0] sm:$0xff] %v196
                %v198 = vld [vmem:[%s150 + $0xb8] sm:$0xff]
                %199 = vst [vmem:[%s151 + $0xb8] sm:$0xff] %v198
                %v200 = vld [vmem:[%s150 + $0xc0] sm:$0xff]
                %201 = vst [vmem:[%s151 + $0xc0] sm:$0xff] %v200
                %v202 = vld [vmem:[%s150 + $0xc8] sm:$0xff]
                %203 = vst [vmem:[%s151 + $0xc8] sm:$0xff] %v202
                %v204 = vld [vmem:[%s150 + $0xd0] sm:$0xff]
                %205 = vst [vmem:[%s151 + $0xd0] sm:$0xff] %v204
                %v206 = vld [vmem:[%s150 + $0xd8] sm:$0xff]
                %207 = vst [vmem:[%s151 + $0xd8] sm:$0xff] %v206
                %v208 = vld [vmem:[%s150 + $0xe0] sm:$0xff]
                %209 = vst [vmem:[%s151 + $0xe0] sm:$0xff] %v208
                %v210 = vld [vmem:[%s150 + $0xe8] sm:$0xff]
                %211 = vst [vmem:[%s151 + $0xe8] sm:$0xff] %v210
                %v212 = vld [vmem:[%s150 + $0xf0] sm:$0xff]
                %213 = vst [vmem:[%s151 + $0xf0] sm:$0xff] %v212
                %v214 = vld [vmem:[%s150 + $0xf8] sm:$0xff]
                %215 = vst [vmem:[%s151 + $0xf8] sm:$0xff] %v214
                %v216 = vld [vmem:[%s150 + $0x200] sm:$0xff]
                %217 = vst [vmem:[%s151 + $0x100] sm:$0xff] %v216
                %v218 = vld [vmem:[%s150 + $0x208] sm:$0xff]
                %219 = vst [vmem:[%s151 + $0x108] sm:$0xff] %v218
                %v220 = vld [vmem:[%s150 + $0x210] sm:$0xff]
                %221 = vst [vmem:[%s151 + $0x110] sm:$0xff] %v220
                %v222 = vld [vmem:[%s150 + $0x218] sm:$0xff]
                %223 = vst [vmem:[%s151 + $0x118] sm:$0xff] %v222
                %v224 = vld [vmem:[%s150 + $0x220] sm:$0xff]
                %225 = vst [vmem:[%s151 + $0x120] sm:$0xff] %v224
                %v226 = vld [vmem:[%s150 + $0x228] sm:$0xff]
                %227 = vst [vmem:[%s151 + $0x128] sm:$0xff] %v226
                %v228 = vld [vmem:[%s150 + $0x230] sm:$0xff]
                %229 = vst [vmem:[%s151 + $0x130] sm:$0xff] %v228
                %v230 = vld [vmem:[%s150 + $0x238] sm:$0xff]
                %231 = vst [vmem:[%s151 + $0x138] sm:$0xff] %v230
                %v232 = vld [vmem:[%s150 + $0x240] sm:$0xff]
                %233 = vst [vmem:[%s151 + $0x140] sm:$0xff] %v232
                %v234 = vld [vmem:[%s150 + $0x248] sm:$0xff]
                %235 = vst [vmem:[%s151 + $0x148] sm:$0xff] %v234
                %v236 = vld [vmem:[%s150 + $0x250] sm:$0xff]
                %237 = vst [vmem:[%s151 + $0x150] sm:$0xff] %v236
                %v238 = vld [vmem:[%s150 + $0x258] sm:$0xff]
                %239 = vst [vmem:[%s151 + $0x158] sm:$0xff] %v238
                %v240 = vld [vmem:[%s150 + $0x260] sm:$0xff]
                %241 = vst [vmem:[%s151 + $0x160] sm:$0xff] %v240
                %v242 = vld [vmem:[%s150 + $0x268] sm:$0xff]
                %243 = vst [vmem:[%s151 + $0x168] sm:$0xff] %v242
                %v244 = vld [vmem:[%s150 + $0x270] sm:$0xff]
                %245 = vst [vmem:[%s151 + $0x170] sm:$0xff] %v244
                %v246 = vld [vmem:[%s150 + $0x278] sm:$0xff]
                %247 = vst [vmem:[%s151 + $0x178] sm:$0xff] %v246
                %v248 = vld [vmem:[%s150 + $0x280] sm:$0xff]
                %249 = vst [vmem:[%s151 + $0x180] sm:$0xff] %v248
                %v250 = vld [vmem:[%s150 + $0x288] sm:$0xff]
                %251 = vst [vmem:[%s151 + $0x188] sm:$0xff] %v250
                %v252 = vld [vmem:[%s150 + $0x290] sm:$0xff]
                %253 = vst [vmem:[%s151 + $0x190] sm:$0xff] %v252
                %v254 = vld [vmem:[%s150 + $0x298] sm:$0xff]
                %255 = vst [vmem:[%s151 + $0x198] sm:$0xff] %v254
                %v256 = vld [vmem:[%s150 + $0x2a0] sm:$0xff]
                %257 = vst [vmem:[%s151 + $0x1a0] sm:$0xff] %v256
                %v258 = vld [vmem:[%s150 + $0x2a8] sm:$0xff]
                %259 = vst [vmem:[%s151 + $0x1a8] sm:$0xff] %v258
                %v260 = vld [vmem:[%s150 + $0x2b0] sm:$0xff]
                %261 = vst [vmem:[%s151 + $0x1b0] sm:$0xff] %v260
                %v262 = vld [vmem:[%s150 + $0x2b8] sm:$0xff]
                %263 = vst [vmem:[%s151 + $0x1b8] sm:$0xff] %v262
                %v264 = vld [vmem:[%s150 + $0x2c0] sm:$0xff]
                %265 = vst [vmem:[%s151 + $0x1c0] sm:$0xff] %v264
                %v266 = vld [vmem:[%s150 + $0x2c8] sm:$0xff]
                %267 = vst [vmem:[%s151 + $0x1c8] sm:$0xff] %v266
                %v268 = vld [vmem:[%s150 + $0x2d0] sm:$0xff]
                %269 = vst [vmem:[%s151 + $0x1d0] sm:$0xff] %v268
                %v270 = vld [vmem:[%s150 + $0x2d8] sm:$0xff]
                %271 = vst [vmem:[%s151 + $0x1d8] sm:$0xff] %v270
                %v272 = vld [vmem:[%s150 + $0x2e0] sm:$0xff]
                %273 = vst [vmem:[%s151 + $0x1e0] sm:$0xff] %v272
                %v274 = vld [vmem:[%s150 + $0x2e8] sm:$0xff]
                %275 = vst [vmem:[%s151 + $0x1e8] sm:$0xff] %v274
                %v276 = vld [vmem:[%s150 + $0x2f0] sm:$0xff]
                %277 = vst [vmem:[%s151 + $0x1f0] sm:$0xff] %v276
                %v278 = vld [vmem:[%s150 + $0x2f8] sm:$0xff]
                %279 = vst [vmem:[%s151 + $0x1f8] sm:$0xff] %v278
                %v280 = vld [vmem:[%s150 + $0x400] sm:$0xff]
                %281 = vst [vmem:[%s151 + $0x200] sm:$0xff] %v280
                %v282 = vld [vmem:[%s150 + $0x408] sm:$0xff]
                %283 = vst [vmem:[%s151 + $0x208] sm:$0xff] %v282
                %v284 = vld [vmem:[%s150 + $0x410] sm:$0xff]
                %285 = vst [vmem:[%s151 + $0x210] sm:$0xff] %v284
                %v286 = vld [vmem:[%s150 + $0x418] sm:$0xff]
                %287 = vst [vmem:[%s151 + $0x218] sm:$0xff] %v286
                %v288 = vld [vmem:[%s150 + $0x420] sm:$0xff]
                %289 = vst [vmem:[%s151 + $0x220] sm:$0xff] %v288
                %v290 = vld [vmem:[%s150 + $0x428] sm:$0xff]
                %291 = vst [vmem:[%s151 + $0x228] sm:$0xff] %v290
                %v292 = vld [vmem:[%s150 + $0x430] sm:$0xff]
                %293 = vst [vmem:[%s151 + $0x230] sm:$0xff] %v292
                %v294 = vld [vmem:[%s150 + $0x438] sm:$0xff]
                %295 = vst [vmem:[%s151 + $0x238] sm:$0xff] %v294
                %v296 = vld [vmem:[%s150 + $0x440] sm:$0xff]
                %297 = vst [vmem:[%s151 + $0x240] sm:$0xff] %v296
                %v298 = vld [vmem:[%s150 + $0x448] sm:$0xff]
                %299 = vst [vmem:[%s151 + $0x248] sm:$0xff] %v298
                %v300 = vld [vmem:[%s150 + $0x450] sm:$0xff]
                %301 = vst [vmem:[%s151 + $0x250] sm:$0xff] %v300
                %v302 = vld [vmem:[%s150 + $0x458] sm:$0xff]
                %303 = vst [vmem:[%s151 + $0x258] sm:$0xff] %v302
                %v304 = vld [vmem:[%s150 + $0x460] sm:$0xff]
                %305 = vst [vmem:[%s151 + $0x260] sm:$0xff] %v304
                %v306 = vld [vmem:[%s150 + $0x468] sm:$0xff]
                %307 = vst [vmem:[%s151 + $0x268] sm:$0xff] %v306
                %v308 = vld [vmem:[%s150 + $0x470] sm:$0xff]
                %309 = vst [vmem:[%s151 + $0x270] sm:$0xff] %v308
                %v310 = vld [vmem:[%s150 + $0x478] sm:$0xff]
                %311 = vst [vmem:[%s151 + $0x278] sm:$0xff] %v310
                %v312 = vld [vmem:[%s150 + $0x480] sm:$0xff]
                %313 = vst [vmem:[%s151 + $0x280] sm:$0xff] %v312
                %v314 = vld [vmem:[%s150 + $0x488] sm:$0xff]
                %315 = vst [vmem:[%s151 + $0x288] sm:$0xff] %v314
                %v316 = vld [vmem:[%s150 + $0x490] sm:$0xff]
                %317 = vst [vmem:[%s151 + $0x290] sm:$0xff] %v316
                %v318 = vld [vmem:[%s150 + $0x498] sm:$0xff]
                %319 = vst [vmem:[%s151 + $0x298] sm:$0xff] %v318
                %v320 = vld [vmem:[%s150 + $0x4a0] sm:$0xff]
                %321 = vst [vmem:[%s151 + $0x2a0] sm:$0xff] %v320
                %v322 = vld [vmem:[%s150 + $0x4a8] sm:$0xff]
                %323 = vst [vmem:[%s151 + $0x2a8] sm:$0xff] %v322
                %v324 = vld [vmem:[%s150 + $0x4b0] sm:$0xff]
                %325 = vst [vmem:[%s151 + $0x2b0] sm:$0xff] %v324
                %v326 = vld [vmem:[%s150 + $0x4b8] sm:$0xff]
                %327 = vst [vmem:[%s151 + $0x2b8] sm:$0xff] %v326
                %v328 = vld [vmem:[%s150 + $0x4c0] sm:$0xff]
                %329 = vst [vmem:[%s151 + $0x2c0] sm:$0xff] %v328
                %v330 = vld [vmem:[%s150 + $0x4c8] sm:$0xff]
                %331 = vst [vmem:[%s151 + $0x2c8] sm:$0xff] %v330
                %v332 = vld [vmem:[%s150 + $0x4d0] sm:$0xff]
                %333 = vst [vmem:[%s151 + $0x2d0] sm:$0xff] %v332
                %v334 = vld [vmem:[%s150 + $0x4d8] sm:$0xff]
                %335 = vst [vmem:[%s151 + $0x2d8] sm:$0xff] %v334
                %v336 = vld [vmem:[%s150 + $0x4e0] sm:$0xff]
                %337 = vst [vmem:[%s151 + $0x2e0] sm:$0xff] %v336
                %v338 = vld [vmem:[%s150 + $0x4e8] sm:$0xff]
                %339 = vst [vmem:[%s151 + $0x2e8] sm:$0xff] %v338
                %v340 = vld [vmem:[%s150 + $0x4f0] sm:$0xff]
                %341 = vst [vmem:[%s151 + $0x2f0] sm:$0xff] %v340
                %v342 = vld [vmem:[%s150 + $0x4f8] sm:$0xff]
                %343 = vst [vmem:[%s151 + $0x2f8] sm:$0xff] %v342
                %v344 = vld [vmem:[%s150 + $0x600] sm:$0xff]
                %345 = vst [vmem:[%s151 + $0x300] sm:$0xff] %v344
                %v346 = vld [vmem:[%s150 + $0x608] sm:$0xff]
                %347 = vst [vmem:[%s151 + $0x308] sm:$0xff] %v346
                %v348 = vld [vmem:[%s150 + $0x610] sm:$0xff]
                %349 = vst [vmem:[%s151 + $0x310] sm:$0xff] %v348
                %v350 = vld [vmem:[%s150 + $0x618] sm:$0xff]
                %351 = vst [vmem:[%s151 + $0x318] sm:$0xff] %v350
                %v352 = vld [vmem:[%s150 + $0x620] sm:$0xff]
                %353 = vst [vmem:[%s151 + $0x320] sm:$0xff] %v352
                %v354 = vld [vmem:[%s150 + $0x628] sm:$0xff]
                %355 = vst [vmem:[%s151 + $0x328] sm:$0xff] %v354
                %v356 = vld [vmem:[%s150 + $0x630] sm:$0xff]
                %357 = vst [vmem:[%s151 + $0x330] sm:$0xff] %v356
                %v358 = vld [vmem:[%s150 + $0x638] sm:$0xff]
                %359 = vst [vmem:[%s151 + $0x338] sm:$0xff] %v358
                %v360 = vld [vmem:[%s150 + $0x640] sm:$0xff]
                %361 = vst [vmem:[%s151 + $0x340] sm:$0xff] %v360
                %v362 = vld [vmem:[%s150 + $0x648] sm:$0xff]
                %363 = vst [vmem:[%s151 + $0x348] sm:$0xff] %v362
                %v364 = vld [vmem:[%s150 + $0x650] sm:$0xff]
                %365 = vst [vmem:[%s151 + $0x350] sm:$0xff] %v364
                %v366 = vld [vmem:[%s150 + $0x658] sm:$0xff]
                %367 = vst [vmem:[%s151 + $0x358] sm:$0xff] %v366
                %v368 = vld [vmem:[%s150 + $0x660] sm:$0xff]
                %369 = vst [vmem:[%s151 + $0x360] sm:$0xff] %v368
                %v370 = vld [vmem:[%s150 + $0x668] sm:$0xff]
                %371 = vst [vmem:[%s151 + $0x368] sm:$0xff] %v370
                %v372 = vld [vmem:[%s150 + $0x670] sm:$0xff]
                %373 = vst [vmem:[%s151 + $0x370] sm:$0xff] %v372
                %v374 = vld [vmem:[%s150 + $0x678] sm:$0xff]
                %375 = vst [vmem:[%s151 + $0x378] sm:$0xff] %v374
                %v376 = vld [vmem:[%s150 + $0x680] sm:$0xff]
                %377 = vst [vmem:[%s151 + $0x380] sm:$0xff] %v376
                %v378 = vld [vmem:[%s150 + $0x688] sm:$0xff]
                %379 = vst [vmem:[%s151 + $0x388] sm:$0xff] %v378
                %v380 = vld [vmem:[%s150 + $0x690] sm:$0xff]
                %381 = vst [vmem:[%s151 + $0x390] sm:$0xff] %v380
                %v382 = vld [vmem:[%s150 + $0x698] sm:$0xff]
                %383 = vst [vmem:[%s151 + $0x398] sm:$0xff] %v382
                %v384 = vld [vmem:[%s150 + $0x6a0] sm:$0xff]
                %385 = vst [vmem:[%s151 + $0x3a0] sm:$0xff] %v384
                %v386 = vld [vmem:[%s150 + $0x6a8] sm:$0xff]
                %387 = vst [vmem:[%s151 + $0x3a8] sm:$0xff] %v386
                %v388 = vld [vmem:[%s150 + $0x6b0] sm:$0xff]
                %389 = vst [vmem:[%s151 + $0x3b0] sm:$0xff] %v388
                %v390 = vld [vmem:[%s150 + $0x6b8] sm:$0xff]
                %391 = vst [vmem:[%s151 + $0x3b8] sm:$0xff] %v390
                %v392 = vld [vmem:[%s150 + $0x6c0] sm:$0xff]
                %393 = vst [vmem:[%s151 + $0x3c0] sm:$0xff] %v392
                %v394 = vld [vmem:[%s150 + $0x6c8] sm:$0xff]
                %395 = vst [vmem:[%s151 + $0x3c8] sm:$0xff] %v394
                %v396 = vld [vmem:[%s150 + $0x6d0] sm:$0xff]
                %397 = vst [vmem:[%s151 + $0x3d0] sm:$0xff] %v396
                %v398 = vld [vmem:[%s150 + $0x6d8] sm:$0xff]
                %399 = vst [vmem:[%s151 + $0x3d8] sm:$0xff] %v398
                %v400 = vld [vmem:[%s150 + $0x6e0] sm:$0xff]
                %401 = vst [vmem:[%s151 + $0x3e0] sm:$0xff] %v400
                %v402 = vld [vmem:[%s150 + $0x6e8] sm:$0xff]
                %403 = vst [vmem:[%s151 + $0x3e8] sm:$0xff] %v402
                %v404 = vld [vmem:[%s150 + $0x6f0] sm:$0xff]
                %405 = vst [vmem:[%s151 + $0x3f0] sm:$0xff] %v404
                %v406 = vld [vmem:[%s150 + $0x6f8] sm:$0xff]
                %407 = vst [vmem:[%s151 + $0x3f8] sm:$0xff] %v406
              $region37: #{forward.1} parent=31 // loop_footer
                %s149 = sadd.s32 1, %s145
              $region38: #{forward.1} parent=31 // loop_footer_branch
                %144 = sbr.rel target = $region34
              $region39: #{forward.1} parent=31 // loop_exit
                _
            $region32: #{forward.1} parent=27 // pred_fallthru
              _
            // Predicated region
            $region40: #{forward.1} parent=27 // pred_check
              _
            $region41: #{forward.1} parent=27 // pred_check_branch
              %409 = sbr.rel target = $region43
            $region42: #{forward.1} parent=27 // pred_region
              _
            $region43: #{forward.1} parent=27 // pred_fallthru
              _
          $region28: #{forward.1} parent=23 // pred_fallthru
            _
          %410 = vnop
        $region24: #{forward.1} parent=19 // pred_fallthru
          _
        // Predicated region
        $region44: #{forward.1} parent=19 // pred_check
          %p411 = pneg %p76
        $region45: #{forward.1} parent=19 // pred_check_branch
          %413 = sbr.rel (%p411) target = $region47
        $region46: #{forward.1} parent=19 // pred_region
          %s414 = smul.u32 64, %s9
          %p415 = scmp.lt.s32.totalorder %s414, 127
          %s416 = scalar_select %p415, %s414, 127
          %s417 = scalar_lea.vmem %s2, %s416
          %s418 = smul.u32 64, %s9
        $region47: #{forward.1} parent=19 // pred_fallthru
          _
      $region20: #{forward.1} parent=5 // pred_fallthru
        _
      %p419 = scmp.le.s32.totalorder 1, %s9
      %p420 = scmp.lt.s32.totalorder %s9, 3
      %p421 = pnand %p419, %p420
      %p422 = pneg %p421
      // Predicated region
      $region48: #{forward.1} parent=5 // pred_check
        _
      $region49: #{forward.1} parent=5 // pred_check_branch
        %424 = sbr.rel (%p421) target = $region51
      $region50: #{forward.1} parent=5 // pred_region
        %s425 = ssub.s32 %s9, 1
        %s426 = sand.u32 %s43, 1
        %s427 = sand.u32 %s43, 1
        %s428 = smul.addr %s427, 1024
        %s429 = scalar_lea.vmem [#allocation2], %s428
        // Predicated region
        $region52: #{forward.1} parent=50 // pred_check
          %p430 = pneg %p56
        $region53: #{forward.1} parent=50 // pred_check_branch
          %432 = sbr.rel (%p430) target = $region55
        $region54: #{forward.1} parent=50 // pred_region
          _
        $region55: #{forward.1} parent=50 // pred_fallthru
          _
        %p433 = pneg %p30
        %p434 = pneg %p27
        %s435 = sand.u32 %s43, 1
        %s436 = sand.u32 %s43, 1
        %s437 = smul.addr %s436, 1024
        %s438 = scalar_lea.vmem [#allocation2], %s437
        %p439 = pneg %p56
        %p440 = pneg %p53
        %s441 = smul.u32 64, %s14
        %p442 = scmp.lt.s32.totalorder %s441, 127
        %s443 = scalar_select %p442, %s441, 127
        %s444 = scalar_lea.vmem %s2, %s443
        %p445 = pneg %p82
        %p446 = pneg %p79
        %p447 = pneg %p108
        %p448 = pneg %p105
        %s449 = smul.u32 64, %s14
        %p450 = scmp.lt.s32.totalorder %s449, 127
        %s451 = scalar_select %p450, %s449, 127
        %s452 = smul.addr %s451, 2
        %s453 = scalar_lea.vmem %s3, %s452
        %s454 = smul.u32 64, %s14
        %s455 = smul.u32 64, %s14
        %p456 = scmp.lt.s32.totalorder %s455, 127
        %s457 = scalar_select %p456, %s455, 127
        %s458 = scalar_lea.vmem %s2, %s457
        %s459 = smul.u32 64, %s14
        %s460 = smul.u32 64, %s14
        %p461 = scmp.lt.s32.totalorder %s460, 127
        %s462 = scalar_select %p461, %s460, 127
        %s463 = smul.addr %s462, 2
        %s464 = scalar_lea.vmem %s3, %s463
        %s465 = smul.u32 64, %s14
        %v467 = vld [vmem:[%s0] sm:$0x1]
        %v468 = vld [vmem:[%s429] sm:$0xff]
        %v469 = vld [vmem:[%s429 + $0x8] sm:$0xff]
        %v470 = vld [vmem:[%s429 + $0x10] sm:$0xff]
        %v471 = vld [vmem:[%s429 + $0x18] sm:$0xff]
        %v472 = vld [vmem:[%s429 + $0x20] sm:$0xff]
        %v473 = vld [vmem:[%s429 + $0x28] sm:$0xff]
        %v474 = vld [vmem:[%s429 + $0x30] sm:$0xff]
        %v475 = vld [vmem:[%s429 + $0x38] sm:$0xff]
        %v476 = vld [vmem:[%s429 + $0x40] sm:$0xff]
        %v477 = vld [vmem:[%s429 + $0x48] sm:$0xff]
        %v478 = vld [vmem:[%s429 + $0x50] sm:$0xff]
        %v479 = vld [vmem:[%s429 + $0x58] sm:$0xff]
        %v480 = vld [vmem:[%s429 + $0x60] sm:$0xff]
        %v481 = vld [vmem:[%s429 + $0x68] sm:$0xff]
        %v482 = vld [vmem:[%s429 + $0x70] sm:$0xff]
        %v483 = vld [vmem:[%s429 + $0x78] sm:$0xff]
        %v484 = vld [vmem:[%s429 + $0x80] sm:$0xff]
        %v485 = vld [vmem:[%s429 + $0x88] sm:$0xff]
        %v486 = vld [vmem:[%s429 + $0x90] sm:$0xff]
        %v487 = vld [vmem:[%s429 + $0x98] sm:$0xff]
        %v488 = vld [vmem:[%s429 + $0xa0] sm:$0xff]
        %v489 = vld [vmem:[%s429 + $0xa8] sm:$0xff]
        %v490 = vld [vmem:[%s429 + $0xb0] sm:$0xff]
        %v491 = vld [vmem:[%s429 + $0xb8] sm:$0xff]
        %v492 = vld [vmem:[%s429 + $0xc0] sm:$0xff]
        %v493 = vld [vmem:[%s429 + $0xc8] sm:$0xff]
        %v494 = vld [vmem:[%s429 + $0xd0] sm:$0xff]
        %v495 = vld [vmem:[%s429 + $0xd8] sm:$0xff]
        %v496 = vld [vmem:[%s429 + $0xe0] sm:$0xff]
        %v497 = vld [vmem:[%s429 + $0xe8] sm:$0xff]
        %v498 = vld [vmem:[%s429 + $0xf0] sm:$0xff]
        %v499 = vld [vmem:[%s429 + $0xf8] sm:$0xff]
        %v500 = vld [vmem:[%s429 + $0x100] sm:$0xff]
        %v501 = vld [vmem:[%s429 + $0x108] sm:$0xff]
        %v502 = vld [vmem:[%s429 + $0x110] sm:$0xff]
        %v503 = vld [vmem:[%s429 + $0x118] sm:$0xff]
        %v504 = vld [vmem:[%s429 + $0x120] sm:$0xff]
        %v505 = vld [vmem:[%s429 + $0x128] sm:$0xff]
        %v506 = vld [vmem:[%s429 + $0x130] sm:$0xff]
        %v507 = vld [vmem:[%s429 + $0x138] sm:$0xff]
        %v508 = vld [vmem:[%s429 + $0x140] sm:$0xff]
        %v509 = vld [vmem:[%s429 + $0x148] sm:$0xff]
        %v510 = vld [vmem:[%s429 + $0x150] sm:$0xff]
        %v511 = vld [vmem:[%s429 + $0x158] sm:$0xff]
        %v512 = vld [vmem:[%s429 + $0x160] sm:$0xff]
        %v513 = vld [vmem:[%s429 + $0x168] sm:$0xff]
        %v514 = vld [vmem:[%s429 + $0x170] sm:$0xff]
        %v515 = vld [vmem:[%s429 + $0x178] sm:$0xff]
        %v516 = vld [vmem:[%s429 + $0x180] sm:$0xff]
        %v517 = vld [vmem:[%s429 + $0x188] sm:$0xff]
        %v518 = vld [vmem:[%s429 + $0x190] sm:$0xff]
        %v519 = vld [vmem:[%s429 + $0x198] sm:$0xff]
        %v520 = vld [vmem:[%s429 + $0x1a0] sm:$0xff]
        %v521 = vld [vmem:[%s429 + $0x1a8] sm:$0xff]
        %v522 = vld [vmem:[%s429 + $0x1b0] sm:$0xff]
        %v523 = vld [vmem:[%s429 + $0x1b8] sm:$0xff]
        %v524 = vld [vmem:[%s429 + $0x1c0] sm:$0xff]
        %v525 = vld [vmem:[%s429 + $0x1c8] sm:$0xff]
        %v526 = vld [vmem:[%s429 + $0x1d0] sm:$0xff]
        %v527 = vld [vmem:[%s429 + $0x1d8] sm:$0xff]
        %v528 = vld [vmem:[%s429 + $0x1e0] sm:$0xff]
        %v529 = vld [vmem:[%s429 + $0x1e8] sm:$0xff]
        %v530 = vld [vmem:[%s429 + $0x1f0] sm:$0xff]
        %v531 = vld [vmem:[%s429 + $0x1f8] sm:$0xff]
        %v532 = vld [vmem:[%s429 + $0x200] sm:$0xff]
        %v533 = vld [vmem:[%s429 + $0x208] sm:$0xff]
        %v534 = vld [vmem:[%s429 + $0x210] sm:$0xff]
        %v535 = vld [vmem:[%s429 + $0x218] sm:$0xff]
        %v536 = vld [vmem:[%s429 + $0x220] sm:$0xff]
        %v537 = vld [vmem:[%s429 + $0x228] sm:$0xff]
        %v538 = vld [vmem:[%s429 + $0x230] sm:$0xff]
        %v539 = vld [vmem:[%s429 + $0x238] sm:$0xff]
        %v540 = vld [vmem:[%s429 + $0x240] sm:$0xff]
        %v541 = vld [vmem:[%s429 + $0x248] sm:$0xff]
        %v542 = vld [vmem:[%s429 + $0x250] sm:$0xff]
        %v543 = vld [vmem:[%s429 + $0x258] sm:$0xff]
        %v544 = vld [vmem:[%s429 + $0x260] sm:$0xff]
        %v545 = vld [vmem:[%s429 + $0x268] sm:$0xff]
        %v546 = vld [vmem:[%s429 + $0x270] sm:$0xff]
        %v547 = vld [vmem:[%s429 + $0x278] sm:$0xff]
        %v548 = vld [vmem:[%s429 + $0x280] sm:$0xff]
        %v549 = vld [vmem:[%s429 + $0x288] sm:$0xff]
        %v550 = vld [vmem:[%s429 + $0x290] sm:$0xff]
        %v551 = vld [vmem:[%s429 + $0x298] sm:$0xff]
        %v552 = vld [vmem:[%s429 + $0x2a0] sm:$0xff]
        %v553 = vld [vmem:[%s429 + $0x2a8] sm:$0xff]
        %v554 = vld [vmem:[%s429 + $0x2b0] sm:$0xff]
        %v555 = vld [vmem:[%s429 + $0x2b8] sm:$0xff]
        %v556 = vld [vmem:[%s429 + $0x2c0] sm:$0xff]
        %v557 = vld [vmem:[%s429 + $0x2c8] sm:$0xff]
        %v558 = vld [vmem:[%s429 + $0x2d0] sm:$0xff]
        %v559 = vld [vmem:[%s429 + $0x2d8] sm:$0xff]
        %v560 = vld [vmem:[%s429 + $0x2e0] sm:$0xff]
        %v561 = vld [vmem:[%s429 + $0x2e8] sm:$0xff]
        %v562 = vld [vmem:[%s429 + $0x2f0] sm:$0xff]
        %v563 = vld [vmem:[%s429 + $0x2f8] sm:$0xff]
        %v564 = vld [vmem:[%s429 + $0x300] sm:$0xff]
        %v565 = vld [vmem:[%s429 + $0x308] sm:$0xff]
        %v566 = vld [vmem:[%s429 + $0x310] sm:$0xff]
        %v567 = vld [vmem:[%s429 + $0x318] sm:$0xff]
        %v568 = vld [vmem:[%s429 + $0x320] sm:$0xff]
        %v569 = vld [vmem:[%s429 + $0x328] sm:$0xff]
        %v570 = vld [vmem:[%s429 + $0x330] sm:$0xff]
        %v571 = vld [vmem:[%s429 + $0x338] sm:$0xff]
        %v572 = vld [vmem:[%s429 + $0x340] sm:$0xff]
        %v573 = vld [vmem:[%s429 + $0x348] sm:$0xff]
        %v574 = vld [vmem:[%s429 + $0x350] sm:$0xff]
        %v575 = vld [vmem:[%s429 + $0x358] sm:$0xff]
        %v576 = vld [vmem:[%s429 + $0x360] sm:$0xff]
        %v577 = vld [vmem:[%s429 + $0x368] sm:$0xff]
        %v578 = vld [vmem:[%s429 + $0x370] sm:$0xff]
        %v579 = vld [vmem:[%s429 + $0x378] sm:$0xff]
        %v580 = vld [vmem:[%s429 + $0x380] sm:$0xff]
        %v581 = vld [vmem:[%s429 + $0x388] sm:$0xff]
        %v582 = vld [vmem:[%s429 + $0x390] sm:$0xff]
        %v583 = vld [vmem:[%s429 + $0x398] sm:$0xff]
        %v584 = vld [vmem:[%s429 + $0x3a0] sm:$0xff]
        %v585 = vld [vmem:[%s429 + $0x3a8] sm:$0xff]
        %v586 = vld [vmem:[%s429 + $0x3b0] sm:$0xff]
        %v587 = vld [vmem:[%s429 + $0x3b8] sm:$0xff]
        %v588 = vld [vmem:[%s429 + $0x3c0] sm:$0xff]
        %v589 = vld [vmem:[%s429 + $0x3c8] sm:$0xff]
        %v590 = vld [vmem:[%s429 + $0x3d0] sm:$0xff]
        %v591 = vld [vmem:[%s429 + $0x3d8] sm:$0xff]
        %v592 = vld [vmem:[%s429 + $0x3e0] sm:$0xff]
        %v593 = vld [vmem:[%s429 + $0x3e8] sm:$0xff]
        %v594 = vld [vmem:[%s429 + $0x3f0] sm:$0xff]
        %v595 = vld [vmem:[%s429 + $0x3f8] sm:$0xff]
        %v596 = vld [vmem:[%s458] sm:$0xff]
        %v597 = vld [vmem:[%s458 + $0x8] sm:$0xff]
        %v598 = vld [vmem:[%s458 + $0x10] sm:$0xff]
        %v599 = vld [vmem:[%s458 + $0x18] sm:$0xff]
        %v600 = vld [vmem:[%s458 + $0x20] sm:$0xff]
        %v601 = vld [vmem:[%s458 + $0x28] sm:$0xff]
        %v602 = vld [vmem:[%s458 + $0x30] sm:$0xff]
        %v603 = vld [vmem:[%s458 + $0x38] sm:$0xff]
        %v604 = vunpack.c.l.bf16 %v596
        %v605 = vunpack.c.h.bf16 %v596
        %v606 = vunpack.c.l.bf16 %v597
        %v607 = vunpack.c.h.bf16 %v597
        %v608 = vunpack.c.l.bf16 %v598
        %v609 = vunpack.c.h.bf16 %v598
        %v610 = vunpack.c.l.bf16 %v599
        %v611 = vunpack.c.h.bf16 %v599
        %v612 = vunpack.c.l.bf16 %v600
        %v613 = vunpack.c.h.bf16 %v600
        %v614 = vunpack.c.l.bf16 %v601
        %v615 = vunpack.c.h.bf16 %v601
        %v616 = vunpack.c.l.bf16 %v602
        %v617 = vunpack.c.h.bf16 %v602
        %v618 = vunpack.c.l.bf16 %v603
        %v619 = vunpack.c.h.bf16 %v603
        %v636 = vlaneseq
        %v637 = vshrl.u32 %v636, 7
        %v638 = vsub.s32 0, %v637
        %v639 = vrot.slane %v604, %v638
        %v640 = vlaneseq
        %v641 = vshrl.u32 %v640, 7
        %v642 = vsub.s32 2, %v641
        %v643 = vrot.slane %v604, %v642
        %v644 = vlaneseq
        %v645 = vshrl.u32 %v644, 7
        %v646 = vsub.s32 4, %v645
        %v647 = vrot.slane %v604, %v646
        %v648 = vlaneseq
        %v649 = vshrl.u32 %v648, 7
        %v650 = vsub.s32 6, %v649
        %v651 = vrot.slane %v604, %v650
        %v652 = vlaneseq
        %v653 = vshrl.u32 %v652, 7
        %v654 = vsub.s32 0, %v653
        %v655 = vrot.slane %v605, %v654
        %v656 = vlaneseq
        %v657 = vshrl.u32 %v656, 7
        %v658 = vsub.s32 2, %v657
        %v659 = vrot.slane %v605, %v658
        %v660 = vlaneseq
        %v661 = vshrl.u32 %v660, 7
        %v662 = vsub.s32 4, %v661
        %v663 = vrot.slane %v605, %v662
        %v664 = vlaneseq
        %v665 = vshrl.u32 %v664, 7
        %v666 = vsub.s32 6, %v665
        %v667 = vrot.slane %v605, %v666
        %v668 = vlaneseq
        %v669 = vshrl.u32 %v668, 7
        %v670 = vsub.s32 0, %v669
        %v671 = vrot.slane %v606, %v670
        %v672 = vlaneseq
        %v673 = vshrl.u32 %v672, 7
        %v674 = vsub.s32 2, %v673
        %v675 = vrot.slane %v606, %v674
        %v676 = vlaneseq
        %v677 = vshrl.u32 %v676, 7
        %v678 = vsub.s32 4, %v677
        %v679 = vrot.slane %v606, %v678
        %v680 = vlaneseq
        %v681 = vshrl.u32 %v680, 7
        %v682 = vsub.s32 6, %v681
        %v683 = vrot.slane %v606, %v682
        %v684 = vlaneseq
        %v685 = vshrl.u32 %v684, 7
        %v686 = vsub.s32 0, %v685
        %v687 = vrot.slane %v607, %v686
        %v688 = vlaneseq
        %v689 = vshrl.u32 %v688, 7
        %v690 = vsub.s32 2, %v689
        %v691 = vrot.slane %v607, %v690
        %v692 = vlaneseq
        %v693 = vshrl.u32 %v692, 7
        %v694 = vsub.s32 4, %v693
        %v695 = vrot.slane %v607, %v694
        %v696 = vlaneseq
        %v697 = vshrl.u32 %v696, 7
        %v698 = vsub.s32 6, %v697
        %v699 = vrot.slane %v607, %v698
        %v700 = vlaneseq
        %v701 = vshrl.u32 %v700, 7
        %v702 = vsub.s32 0, %v701
        %v703 = vrot.slane %v608, %v702
        %v704 = vlaneseq
        %v705 = vshrl.u32 %v704, 7
        %v706 = vsub.s32 2, %v705
        %v707 = vrot.slane %v608, %v706
        %v708 = vlaneseq
        %v709 = vshrl.u32 %v708, 7
        %v710 = vsub.s32 4, %v709
        %v711 = vrot.slane %v608, %v710
        %v712 = vlaneseq
        %v713 = vshrl.u32 %v712, 7
        %v714 = vsub.s32 6, %v713
        %v715 = vrot.slane %v608, %v714
        %v716 = vlaneseq
        %v717 = vshrl.u32 %v716, 7
        %v718 = vsub.s32 0, %v717
        %v719 = vrot.slane %v609, %v718
        %v720 = vlaneseq
        %v721 = vshrl.u32 %v720, 7
        %v722 = vsub.s32 2, %v721
        %v723 = vrot.slane %v609, %v722
        %v724 = vlaneseq
        %v725 = vshrl.u32 %v724, 7
        %v726 = vsub.s32 4, %v725
        %v727 = vrot.slane %v609, %v726
        %v728 = vlaneseq
        %v729 = vshrl.u32 %v728, 7
        %v730 = vsub.s32 6, %v729
        %v731 = vrot.slane %v609, %v730
        %v732 = vlaneseq
        %v733 = vshrl.u32 %v732, 7
        %v734 = vsub.s32 0, %v733
        %v735 = vrot.slane %v610, %v734
        %v736 = vlaneseq
        %v737 = vshrl.u32 %v736, 7
        %v738 = vsub.s32 2, %v737
        %v739 = vrot.slane %v610, %v738
        %v740 = vlaneseq
        %v741 = vshrl.u32 %v740, 7
        %v742 = vsub.s32 4, %v741
        %v743 = vrot.slane %v610, %v742
        %v744 = vlaneseq
        %v745 = vshrl.u32 %v744, 7
        %v746 = vsub.s32 6, %v745
        %v747 = vrot.slane %v610, %v746
        %v748 = vlaneseq
        %v749 = vshrl.u32 %v748, 7
        %v750 = vsub.s32 0, %v749
        %v751 = vrot.slane %v611, %v750
        %v752 = vlaneseq
        %v753 = vshrl.u32 %v752, 7
        %v754 = vsub.s32 2, %v753
        %v755 = vrot.slane %v611, %v754
        %v756 = vlaneseq
        %v757 = vshrl.u32 %v756, 7
        %v758 = vsub.s32 4, %v757
        %v759 = vrot.slane %v611, %v758
        %v760 = vlaneseq
        %v761 = vshrl.u32 %v760, 7
        %v762 = vsub.s32 6, %v761
        %v763 = vrot.slane %v611, %v762
        %v764 = vlaneseq
        %v765 = vshrl.u32 %v764, 7
        %v766 = vsub.s32 0, %v765
        %v767 = vrot.slane %v612, %v766
        %v768 = vlaneseq
        %v769 = vshrl.u32 %v768, 7
        %v770 = vsub.s32 2, %v769
        %v771 = vrot.slane %v612, %v770
        %v772 = vlaneseq
        %v773 = vshrl.u32 %v772, 7
        %v774 = vsub.s32 4, %v773
        %v775 = vrot.slane %v612, %v774
        %v776 = vlaneseq
        %v777 = vshrl.u32 %v776, 7
        %v778 = vsub.s32 6, %v777
        %v779 = vrot.slane %v612, %v778
        %v780 = vlaneseq
        %v781 = vshrl.u32 %v780, 7
        %v782 = vsub.s32 0, %v781
        %v783 = vrot.slane %v613, %v782
        %v784 = vlaneseq
        %v785 = vshrl.u32 %v784, 7
        %v786 = vsub.s32 2, %v785
        %v787 = vrot.slane %v613, %v786
        %v788 = vlaneseq
        %v789 = vshrl.u32 %v788, 7
        %v790 = vsub.s32 4, %v789
        %v791 = vrot.slane %v613, %v790
        %v792 = vlaneseq
        %v793 = vshrl.u32 %v792, 7
        %v794 = vsub.s32 6, %v793
        %v795 = vrot.slane %v613, %v794
        %v796 = vlaneseq
        %v797 = vshrl.u32 %v796, 7
        %v798 = vsub.s32 0, %v797
        %v799 = vrot.slane %v614, %v798
        %v800 = vlaneseq
        %v801 = vshrl.u32 %v800, 7
        %v802 = vsub.s32 2, %v801
        %v803 = vrot.slane %v614, %v802
        %v804 = vlaneseq
        %v805 = vshrl.u32 %v804, 7
        %v806 = vsub.s32 4, %v805
        %v807 = vrot.slane %v614, %v806
        %v808 = vlaneseq
        %v809 = vshrl.u32 %v808, 7
        %v810 = vsub.s32 6, %v809
        %v811 = vrot.slane %v614, %v810
        %v812 = vlaneseq
        %v813 = vshrl.u32 %v812, 7
        %v814 = vsub.s32 0, %v813
        %v815 = vrot.slane %v615, %v814
        %v816 = vlaneseq
        %v817 = vshrl.u32 %v816, 7
        %v818 = vsub.s32 2, %v817
        %v819 = vrot.slane %v615, %v818
        %v820 = vlaneseq
        %v821 = vshrl.u32 %v820, 7
        %v822 = vsub.s32 4, %v821
        %v823 = vrot.slane %v615, %v822
        %v824 = vlaneseq
        %v825 = vshrl.u32 %v824, 7
        %v826 = vsub.s32 6, %v825
        %v827 = vrot.slane %v615, %v826
        %v828 = vlaneseq
        %v829 = vshrl.u32 %v828, 7
        %v830 = vsub.s32 0, %v829
        %v831 = vrot.slane %v616, %v830
        %v832 = vlaneseq
        %v833 = vshrl.u32 %v832, 7
        %v834 = vsub.s32 2, %v833
        %v835 = vrot.slane %v616, %v834
        %v836 = vlaneseq
        %v837 = vshrl.u32 %v836, 7
        %v838 = vsub.s32 4, %v837
        %v839 = vrot.slane %v616, %v838
        %v840 = vlaneseq
        %v841 = vshrl.u32 %v840, 7
        %v842 = vsub.s32 6, %v841
        %v843 = vrot.slane %v616, %v842
        %v844 = vlaneseq
        %v845 = vshrl.u32 %v844, 7
        %v846 = vsub.s32 0, %v845
        %v847 = vrot.slane %v617, %v846
        %v848 = vlaneseq
        %v849 = vshrl.u32 %v848, 7
        %v850 = vsub.s32 2, %v849
        %v851 = vrot.slane %v617, %v850
        %v852 = vlaneseq
        %v853 = vshrl.u32 %v852, 7
        %v854 = vsub.s32 4, %v853
        %v855 = vrot.slane %v617, %v854
        %v856 = vlaneseq
        %v857 = vshrl.u32 %v856, 7
        %v858 = vsub.s32 6, %v857
        %v859 = vrot.slane %v617, %v858
        %v860 = vlaneseq
        %v861 = vshrl.u32 %v860, 7
        %v862 = vsub.s32 0, %v861
        %v863 = vrot.slane %v618, %v862
        %v864 = vlaneseq
        %v865 = vshrl.u32 %v864, 7
        %v866 = vsub.s32 2, %v865
        %v867 = vrot.slane %v618, %v866
        %v868 = vlaneseq
        %v869 = vshrl.u32 %v868, 7
        %v870 = vsub.s32 4, %v869
        %v871 = vrot.slane %v618, %v870
        %v872 = vlaneseq
        %v873 = vshrl.u32 %v872, 7
        %v874 = vsub.s32 6, %v873
        %v875 = vrot.slane %v618, %v874
        %v876 = vlaneseq
        %v877 = vshrl.u32 %v876, 7
        %v878 = vsub.s32 0, %v877
        %v879 = vrot.slane %v619, %v878
        %v880 = vlaneseq
        %v881 = vshrl.u32 %v880, 7
        %v882 = vsub.s32 2, %v881
        %v883 = vrot.slane %v619, %v882
        %v884 = vlaneseq
        %v885 = vshrl.u32 %v884, 7
        %v886 = vsub.s32 4, %v885
        %v887 = vrot.slane %v619, %v886
        %v888 = vlaneseq
        %v889 = vshrl.u32 %v888, 7
        %v890 = vsub.s32 6, %v889
        %v891 = vrot.slane %v619, %v890
        %v956 = vlaneseq
        %v957 = vshrl.u32 %v956, 7
        %v958 = vsub.s32 0, %v957
        %v959 = vrot.slane %v639, %v958
        %v960 = vlaneseq
        %v961 = vshrl.u32 %v960, 7
        %v962 = vsub.s32 0, %v961
        %v963 = vrot.slane %v643, %v962
        %v964 = vlaneseq
        %v965 = vshrl.u32 %v964, 7
        %v966 = vsub.s32 0, %v965
        %v967 = vrot.slane %v647, %v966
        %v968 = vlaneseq
        %v969 = vshrl.u32 %v968, 7
        %v970 = vsub.s32 0, %v969
        %v971 = vrot.slane %v651, %v970
        %v972 = vlaneseq
        %v973 = vshrl.u32 %v972, 7
        %v974 = vsub.s32 0, %v973
        %v975 = vrot.slane %v655, %v974
        %v976 = vlaneseq
        %v977 = vshrl.u32 %v976, 7
        %v978 = vsub.s32 0, %v977
        %v979 = vrot.slane %v659, %v978
        %v980 = vlaneseq
        %v981 = vshrl.u32 %v980, 7
        %v982 = vsub.s32 0, %v981
        %v983 = vrot.slane %v663, %v982
        %v984 = vlaneseq
        %v985 = vshrl.u32 %v984, 7
        %v986 = vsub.s32 0, %v985
        %v987 = vrot.slane %v667, %v986
        %v988 = vlaneseq
        %v989 = vshrl.u32 %v988, 7
        %v990 = vsub.s32 0, %v989
        %v991 = vrot.slane %v671, %v990
        %v992 = vlaneseq
        %v993 = vshrl.u32 %v992, 7
        %v994 = vsub.s32 0, %v993
        %v995 = vrot.slane %v675, %v994
        %v996 = vlaneseq
        %v997 = vshrl.u32 %v996, 7
        %v998 = vsub.s32 0, %v997
        %v999 = vrot.slane %v679, %v998
        %v1000 = vlaneseq
        %v1001 = vshrl.u32 %v1000, 7
        %v1002 = vsub.s32 0, %v1001
        %v1003 = vrot.slane %v683, %v1002
        %v1004 = vlaneseq
        %v1005 = vshrl.u32 %v1004, 7
        %v1006 = vsub.s32 0, %v1005
        %v1007 = vrot.slane %v687, %v1006
        %v1008 = vlaneseq
        %v1009 = vshrl.u32 %v1008, 7
        %v1010 = vsub.s32 0, %v1009
        %v1011 = vrot.slane %v691, %v1010
        %v1012 = vlaneseq
        %v1013 = vshrl.u32 %v1012, 7
        %v1014 = vsub.s32 0, %v1013
        %v1015 = vrot.slane %v695, %v1014
        %v1016 = vlaneseq
        %v1017 = vshrl.u32 %v1016, 7
        %v1018 = vsub.s32 0, %v1017
        %v1019 = vrot.slane %v699, %v1018
        %v1020 = vlaneseq
        %v1021 = vshrl.u32 %v1020, 7
        %v1022 = vsub.s32 0, %v1021
        %v1023 = vrot.slane %v703, %v1022
        %v1024 = vlaneseq
        %v1025 = vshrl.u32 %v1024, 7
        %v1026 = vsub.s32 0, %v1025
        %v1027 = vrot.slane %v707, %v1026
        %v1028 = vlaneseq
        %v1029 = vshrl.u32 %v1028, 7
        %v1030 = vsub.s32 0, %v1029
        %v1031 = vrot.slane %v711, %v1030
        %v1032 = vlaneseq
        %v1033 = vshrl.u32 %v1032, 7
        %v1034 = vsub.s32 0, %v1033
        %v1035 = vrot.slane %v715, %v1034
        %v1036 = vlaneseq
        %v1037 = vshrl.u32 %v1036, 7
        %v1038 = vsub.s32 0, %v1037
        %v1039 = vrot.slane %v719, %v1038
        %v1040 = vlaneseq
        %v1041 = vshrl.u32 %v1040, 7
        %v1042 = vsub.s32 0, %v1041
        %v1043 = vrot.slane %v723, %v1042
        %v1044 = vlaneseq
        %v1045 = vshrl.u32 %v1044, 7
        %v1046 = vsub.s32 0, %v1045
        %v1047 = vrot.slane %v727, %v1046
        %v1048 = vlaneseq
        %v1049 = vshrl.u32 %v1048, 7
        %v1050 = vsub.s32 0, %v1049
        %v1051 = vrot.slane %v731, %v1050
        %v1052 = vlaneseq
        %v1053 = vshrl.u32 %v1052, 7
        %v1054 = vsub.s32 0, %v1053
        %v1055 = vrot.slane %v735, %v1054
        %v1056 = vlaneseq
        %v1057 = vshrl.u32 %v1056, 7
        %v1058 = vsub.s32 0, %v1057
        %v1059 = vrot.slane %v739, %v1058
        %v1060 = vlaneseq
        %v1061 = vshrl.u32 %v1060, 7
        %v1062 = vsub.s32 0, %v1061
        %v1063 = vrot.slane %v743, %v1062
        %v1064 = vlaneseq
        %v1065 = vshrl.u32 %v1064, 7
        %v1066 = vsub.s32 0, %v1065
        %v1067 = vrot.slane %v747, %v1066
        %v1068 = vlaneseq
        %v1069 = vshrl.u32 %v1068, 7
        %v1070 = vsub.s32 0, %v1069
        %v1071 = vrot.slane %v751, %v1070
        %v1072 = vlaneseq
        %v1073 = vshrl.u32 %v1072, 7
        %v1074 = vsub.s32 0, %v1073
        %v1075 = vrot.slane %v755, %v1074
        %v1076 = vlaneseq
        %v1077 = vshrl.u32 %v1076, 7
        %v1078 = vsub.s32 0, %v1077
        %v1079 = vrot.slane %v759, %v1078
        %v1080 = vlaneseq
        %v1081 = vshrl.u32 %v1080, 7
        %v1082 = vsub.s32 0, %v1081
        %v1083 = vrot.slane %v763, %v1082
        %v1084 = vlaneseq
        %v1085 = vshrl.u32 %v1084, 7
        %v1086 = vsub.s32 0, %v1085
        %v1087 = vrot.slane %v767, %v1086
        %v1088 = vlaneseq
        %v1089 = vshrl.u32 %v1088, 7
        %v1090 = vsub.s32 0, %v1089
        %v1091 = vrot.slane %v771, %v1090
        %v1092 = vlaneseq
        %v1093 = vshrl.u32 %v1092, 7
        %v1094 = vsub.s32 0, %v1093
        %v1095 = vrot.slane %v775, %v1094
        %v1096 = vlaneseq
        %v1097 = vshrl.u32 %v1096, 7
        %v1098 = vsub.s32 0, %v1097
        %v1099 = vrot.slane %v779, %v1098
        %v1100 = vlaneseq
        %v1101 = vshrl.u32 %v1100, 7
        %v1102 = vsub.s32 0, %v1101
        %v1103 = vrot.slane %v783, %v1102
        %v1104 = vlaneseq
        %v1105 = vshrl.u32 %v1104, 7
        %v1106 = vsub.s32 0, %v1105
        %v1107 = vrot.slane %v787, %v1106
        %v1108 = vlaneseq
        %v1109 = vshrl.u32 %v1108, 7
        %v1110 = vsub.s32 0, %v1109
        %v1111 = vrot.slane %v791, %v1110
        %v1112 = vlaneseq
        %v1113 = vshrl.u32 %v1112, 7
        %v1114 = vsub.s32 0, %v1113
        %v1115 = vrot.slane %v795, %v1114
        %v1116 = vlaneseq
        %v1117 = vshrl.u32 %v1116, 7
        %v1118 = vsub.s32 0, %v1117
        %v1119 = vrot.slane %v799, %v1118
        %v1120 = vlaneseq
        %v1121 = vshrl.u32 %v1120, 7
        %v1122 = vsub.s32 0, %v1121
        %v1123 = vrot.slane %v803, %v1122
        %v1124 = vlaneseq
        %v1125 = vshrl.u32 %v1124, 7
        %v1126 = vsub.s32 0, %v1125
        %v1127 = vrot.slane %v807, %v1126
        %v1128 = vlaneseq
        %v1129 = vshrl.u32 %v1128, 7
        %v1130 = vsub.s32 0, %v1129
        %v1131 = vrot.slane %v811, %v1130
        %v1132 = vlaneseq
        %v1133 = vshrl.u32 %v1132, 7
        %v1134 = vsub.s32 0, %v1133
        %v1135 = vrot.slane %v815, %v1134
        %v1136 = vlaneseq
        %v1137 = vshrl.u32 %v1136, 7
        %v1138 = vsub.s32 0, %v1137
        %v1139 = vrot.slane %v819, %v1138
        %v1140 = vlaneseq
        %v1141 = vshrl.u32 %v1140, 7
        %v1142 = vsub.s32 0, %v1141
        %v1143 = vrot.slane %v823, %v1142
        %v1144 = vlaneseq
        %v1145 = vshrl.u32 %v1144, 7
        %v1146 = vsub.s32 0, %v1145
        %v1147 = vrot.slane %v827, %v1146
        %v1148 = vlaneseq
        %v1149 = vshrl.u32 %v1148, 7
        %v1150 = vsub.s32 0, %v1149
        %v1151 = vrot.slane %v831, %v1150
        %v1152 = vlaneseq
        %v1153 = vshrl.u32 %v1152, 7
        %v1154 = vsub.s32 0, %v1153
        %v1155 = vrot.slane %v835, %v1154
        %v1156 = vlaneseq
        %v1157 = vshrl.u32 %v1156, 7
        %v1158 = vsub.s32 0, %v1157
        %v1159 = vrot.slane %v839, %v1158
        %v1160 = vlaneseq
        %v1161 = vshrl.u32 %v1160, 7
        %v1162 = vsub.s32 0, %v1161
        %v1163 = vrot.slane %v843, %v1162
        %v1164 = vlaneseq
        %v1165 = vshrl.u32 %v1164, 7
        %v1166 = vsub.s32 0, %v1165
        %v1167 = vrot.slane %v847, %v1166
        %v1168 = vlaneseq
        %v1169 = vshrl.u32 %v1168, 7
        %v1170 = vsub.s32 0, %v1169
        %v1171 = vrot.slane %v851, %v1170
        %v1172 = vlaneseq
        %v1173 = vshrl.u32 %v1172, 7
        %v1174 = vsub.s32 0, %v1173
        %v1175 = vrot.slane %v855, %v1174
        %v1176 = vlaneseq
        %v1177 = vshrl.u32 %v1176, 7
        %v1178 = vsub.s32 0, %v1177
        %v1179 = vrot.slane %v859, %v1178
        %v1180 = vlaneseq
        %v1181 = vshrl.u32 %v1180, 7
        %v1182 = vsub.s32 0, %v1181
        %v1183 = vrot.slane %v863, %v1182
        %v1184 = vlaneseq
        %v1185 = vshrl.u32 %v1184, 7
        %v1186 = vsub.s32 0, %v1185
        %v1187 = vrot.slane %v867, %v1186
        %v1188 = vlaneseq
        %v1189 = vshrl.u32 %v1188, 7
        %v1190 = vsub.s32 0, %v1189
        %v1191 = vrot.slane %v871, %v1190
        %v1192 = vlaneseq
        %v1193 = vshrl.u32 %v1192, 7
        %v1194 = vsub.s32 0, %v1193
        %v1195 = vrot.slane %v875, %v1194
        %v1196 = vlaneseq
        %v1197 = vshrl.u32 %v1196, 7
        %v1198 = vsub.s32 0, %v1197
        %v1199 = vrot.slane %v879, %v1198
        %v1200 = vlaneseq
        %v1201 = vshrl.u32 %v1200, 7
        %v1202 = vsub.s32 0, %v1201
        %v1203 = vrot.slane %v883, %v1202
        %v1204 = vlaneseq
        %v1205 = vshrl.u32 %v1204, 7
        %v1206 = vsub.s32 0, %v1205
        %v1207 = vrot.slane %v887, %v1206
        %v1208 = vlaneseq
        %v1209 = vshrl.u32 %v1208, 7
        %v1210 = vsub.s32 0, %v1209
        %v1211 = vrot.slane %v891, %v1210
        %v1340 = vunpack.c.l.b16 %v468
        %v1341 = vunpack.c.h.b16 %v468
        %v1342 = vunpack.c.l.b16 %v469
        %v1343 = vunpack.c.h.b16 %v469
        %v1344 = vunpack.c.l.b16 %v470
        %v1345 = vunpack.c.h.b16 %v470
        %v1346 = vunpack.c.l.b16 %v471
        %v1347 = vunpack.c.h.b16 %v471
        %v1348 = vunpack.c.l.b16 %v472
        %v1349 = vunpack.c.h.b16 %v472
        %v1350 = vunpack.c.l.b16 %v473
        %v1351 = vunpack.c.h.b16 %v473
        %v1352 = vunpack.c.l.b16 %v474
        %v1353 = vunpack.c.h.b16 %v474
        %v1354 = vunpack.c.l.b16 %v475
        %v1355 = vunpack.c.h.b16 %v475
        %v1356 = vunpack.c.l.b16 %v476
        %v1357 = vunpack.c.h.b16 %v476
        %v1358 = vunpack.c.l.b16 %v477
        %v1359 = vunpack.c.h.b16 %v477
        %v1360 = vunpack.c.l.b16 %v478
        %v1361 = vunpack.c.h.b16 %v478
        %v1362 = vunpack.c.l.b16 %v479
        %v1363 = vunpack.c.h.b16 %v479
        %v1364 = vunpack.c.l.b16 %v480
        %v1365 = vunpack.c.h.b16 %v480
        %v1366 = vunpack.c.l.b16 %v481
        %v1367 = vunpack.c.h.b16 %v481
        %v1368 = vunpack.c.l.b16 %v482
        %v1369 = vunpack.c.h.b16 %v482
        %v1370 = vunpack.c.l.b16 %v483
        %v1371 = vunpack.c.h.b16 %v483
        %v1372 = vunpack.c.l.b16 %v484
        %v1373 = vunpack.c.h.b16 %v484
        %v1374 = vunpack.c.l.b16 %v485
        %v1375 = vunpack.c.h.b16 %v485
        %v1376 = vunpack.c.l.b16 %v486
        %v1377 = vunpack.c.h.b16 %v486
        %v1378 = vunpack.c.l.b16 %v487
        %v1379 = vunpack.c.h.b16 %v487
        %v1380 = vunpack.c.l.b16 %v488
        %v1381 = vunpack.c.h.b16 %v488
        %v1382 = vunpack.c.l.b16 %v489
        %v1383 = vunpack.c.h.b16 %v489
        %v1384 = vunpack.c.l.b16 %v490
        %v1385 = vunpack.c.h.b16 %v490
        %v1386 = vunpack.c.l.b16 %v491
        %v1387 = vunpack.c.h.b16 %v491
        %v1388 = vunpack.c.l.b16 %v492
        %v1389 = vunpack.c.h.b16 %v492
        %v1390 = vunpack.c.l.b16 %v493
        %v1391 = vunpack.c.h.b16 %v493
        %v1392 = vunpack.c.l.b16 %v494
        %v1393 = vunpack.c.h.b16 %v494
        %v1394 = vunpack.c.l.b16 %v495
        %v1395 = vunpack.c.h.b16 %v495
        %v1396 = vunpack.c.l.b16 %v496
        %v1397 = vunpack.c.h.b16 %v496
        %v1398 = vunpack.c.l.b16 %v497
        %v1399 = vunpack.c.h.b16 %v497
        %v1400 = vunpack.c.l.b16 %v498
        %v1401 = vunpack.c.h.b16 %v498
        %v1402 = vunpack.c.l.b16 %v499
        %v1403 = vunpack.c.h.b16 %v499
        %v1404 = vunpack.c.l.b16 %v500
        %v1405 = vunpack.c.h.b16 %v500
        %v1406 = vunpack.c.l.b16 %v501
        %v1407 = vunpack.c.h.b16 %v501
        %v1408 = vunpack.c.l.b16 %v502
        %v1409 = vunpack.c.h.b16 %v502
        %v1410 = vunpack.c.l.b16 %v503
        %v1411 = vunpack.c.h.b16 %v503
        %v1412 = vunpack.c.l.b16 %v504
        %v1413 = vunpack.c.h.b16 %v504
        %v1414 = vunpack.c.l.b16 %v505
        %v1415 = vunpack.c.h.b16 %v505
        %v1416 = vunpack.c.l.b16 %v506
        %v1417 = vunpack.c.h.b16 %v506
        %v1418 = vunpack.c.l.b16 %v507
        %v1419 = vunpack.c.h.b16 %v507
        %v1420 = vunpack.c.l.b16 %v508
        %v1421 = vunpack.c.h.b16 %v508
        %v1422 = vunpack.c.l.b16 %v509
        %v1423 = vunpack.c.h.b16 %v509
        %v1424 = vunpack.c.l.b16 %v510
        %v1425 = vunpack.c.h.b16 %v510
        %v1426 = vunpack.c.l.b16 %v511
        %v1427 = vunpack.c.h.b16 %v511
        %v1428 = vunpack.c.l.b16 %v512
        %v1429 = vunpack.c.h.b16 %v512
        %v1430 = vunpack.c.l.b16 %v513
        %v1431 = vunpack.c.h.b16 %v513
        %v1432 = vunpack.c.l.b16 %v514
        %v1433 = vunpack.c.h.b16 %v514
        %v1434 = vunpack.c.l.b16 %v515
        %v1435 = vunpack.c.h.b16 %v515
        %v1436 = vunpack.c.l.b16 %v516
        %v1437 = vunpack.c.h.b16 %v516
        %v1438 = vunpack.c.l.b16 %v517
        %v1439 = vunpack.c.h.b16 %v517
        %v1440 = vunpack.c.l.b16 %v518
        %v1441 = vunpack.c.h.b16 %v518
        %v1442 = vunpack.c.l.b16 %v519
        %v1443 = vunpack.c.h.b16 %v519
        %v1444 = vunpack.c.l.b16 %v520
        %v1445 = vunpack.c.h.b16 %v520
        %v1446 = vunpack.c.l.b16 %v521
        %v1447 = vunpack.c.h.b16 %v521
        %v1448 = vunpack.c.l.b16 %v522
        %v1449 = vunpack.c.h.b16 %v522
        %v1450 = vunpack.c.l.b16 %v523
        %v1451 = vunpack.c.h.b16 %v523
        %v1452 = vunpack.c.l.b16 %v524
        %v1453 = vunpack.c.h.b16 %v524
        %v1454 = vunpack.c.l.b16 %v525
        %v1455 = vunpack.c.h.b16 %v525
        %v1456 = vunpack.c.l.b16 %v526
        %v1457 = vunpack.c.h.b16 %v526
        %v1458 = vunpack.c.l.b16 %v527
        %v1459 = vunpack.c.h.b16 %v527
        %v1460 = vunpack.c.l.b16 %v528
        %v1461 = vunpack.c.h.b16 %v528
        %v1462 = vunpack.c.l.b16 %v529
        %v1463 = vunpack.c.h.b16 %v529
        %v1464 = vunpack.c.l.b16 %v530
        %v1465 = vunpack.c.h.b16 %v530
        %v1466 = vunpack.c.l.b16 %v531
        %v1467 = vunpack.c.h.b16 %v531
        %v1468 = vunpack.c.l.b16 %v532
        %v1469 = vunpack.c.h.b16 %v532
        %v1470 = vunpack.c.l.b16 %v533
        %v1471 = vunpack.c.h.b16 %v533
        %v1472 = vunpack.c.l.b16 %v534
        %v1473 = vunpack.c.h.b16 %v534
        %v1474 = vunpack.c.l.b16 %v535
        %v1475 = vunpack.c.h.b16 %v535
        %v1476 = vunpack.c.l.b16 %v536
        %v1477 = vunpack.c.h.b16 %v536
        %v1478 = vunpack.c.l.b16 %v537
        %v1479 = vunpack.c.h.b16 %v537
        %v1480 = vunpack.c.l.b16 %v538
        %v1481 = vunpack.c.h.b16 %v538
        %v1482 = vunpack.c.l.b16 %v539
        %v1483 = vunpack.c.h.b16 %v539
        %v1484 = vunpack.c.l.b16 %v540
        %v1485 = vunpack.c.h.b16 %v540
        %v1486 = vunpack.c.l.b16 %v541
        %v1487 = vunpack.c.h.b16 %v541
        %v1488 = vunpack.c.l.b16 %v542
        %v1489 = vunpack.c.h.b16 %v542
        %v1490 = vunpack.c.l.b16 %v543
        %v1491 = vunpack.c.h.b16 %v543
        %v1492 = vunpack.c.l.b16 %v544
        %v1493 = vunpack.c.h.b16 %v544
        %v1494 = vunpack.c.l.b16 %v545
        %v1495 = vunpack.c.h.b16 %v545
        %v1496 = vunpack.c.l.b16 %v546
        %v1497 = vunpack.c.h.b16 %v546
        %v1498 = vunpack.c.l.b16 %v547
        %v1499 = vunpack.c.h.b16 %v547
        %v1500 = vunpack.c.l.b16 %v548
        %v1501 = vunpack.c.h.b16 %v548
        %v1502 = vunpack.c.l.b16 %v549
        %v1503 = vunpack.c.h.b16 %v549
        %v1504 = vunpack.c.l.b16 %v550
        %v1505 = vunpack.c.h.b16 %v550
        %v1506 = vunpack.c.l.b16 %v551
        %v1507 = vunpack.c.h.b16 %v551
        %v1508 = vunpack.c.l.b16 %v552
        %v1509 = vunpack.c.h.b16 %v552
        %v1510 = vunpack.c.l.b16 %v553
        %v1511 = vunpack.c.h.b16 %v553
        %v1512 = vunpack.c.l.b16 %v554
        %v1513 = vunpack.c.h.b16 %v554
        %v1514 = vunpack.c.l.b16 %v555
        %v1515 = vunpack.c.h.b16 %v555
        %v1516 = vunpack.c.l.b16 %v556
        %v1517 = vunpack.c.h.b16 %v556
        %v1518 = vunpack.c.l.b16 %v557
        %v1519 = vunpack.c.h.b16 %v557
        %v1520 = vunpack.c.l.b16 %v558
        %v1521 = vunpack.c.h.b16 %v558
        %v1522 = vunpack.c.l.b16 %v559
        %v1523 = vunpack.c.h.b16 %v559
        %v1524 = vunpack.c.l.b16 %v560
        %v1525 = vunpack.c.h.b16 %v560
        %v1526 = vunpack.c.l.b16 %v561
        %v1527 = vunpack.c.h.b16 %v561
        %v1528 = vunpack.c.l.b16 %v562
        %v1529 = vunpack.c.h.b16 %v562
        %v1530 = vunpack.c.l.b16 %v563
        %v1531 = vunpack.c.h.b16 %v563
        %v1532 = vunpack.c.l.b16 %v564
        %v1533 = vunpack.c.h.b16 %v564
        %v1534 = vunpack.c.l.b16 %v565
        %v1535 = vunpack.c.h.b16 %v565
        %v1536 = vunpack.c.l.b16 %v566
        %v1537 = vunpack.c.h.b16 %v566
        %v1538 = vunpack.c.l.b16 %v567
        %v1539 = vunpack.c.h.b16 %v567
        %v1540 = vunpack.c.l.b16 %v568
        %v1541 = vunpack.c.h.b16 %v568
        %v1542 = vunpack.c.l.b16 %v569
        %v1543 = vunpack.c.h.b16 %v569
        %v1544 = vunpack.c.l.b16 %v570
        %v1545 = vunpack.c.h.b16 %v570
        %v1546 = vunpack.c.l.b16 %v571
        %v1547 = vunpack.c.h.b16 %v571
        %v1548 = vunpack.c.l.b16 %v572
        %v1549 = vunpack.c.h.b16 %v572
        %v1550 = vunpack.c.l.b16 %v573
        %v1551 = vunpack.c.h.b16 %v573
        %v1552 = vunpack.c.l.b16 %v574
        %v1553 = vunpack.c.h.b16 %v574
        %v1554 = vunpack.c.l.b16 %v575
        %v1555 = vunpack.c.h.b16 %v575
        %v1556 = vunpack.c.l.b16 %v576
        %v1557 = vunpack.c.h.b16 %v576
        %v1558 = vunpack.c.l.b16 %v577
        %v1559 = vunpack.c.h.b16 %v577
        %v1560 = vunpack.c.l.b16 %v578
        %v1561 = vunpack.c.h.b16 %v578
        %v1562 = vunpack.c.l.b16 %v579
        %v1563 = vunpack.c.h.b16 %v579
        %v1564 = vunpack.c.l.b16 %v580
        %v1565 = vunpack.c.h.b16 %v580
        %v1566 = vunpack.c.l.b16 %v581
        %v1567 = vunpack.c.h.b16 %v581
        %v1568 = vunpack.c.l.b16 %v582
        %v1569 = vunpack.c.h.b16 %v582
        %v1570 = vunpack.c.l.b16 %v583
        %v1571 = vunpack.c.h.b16 %v583
        %v1572 = vunpack.c.l.b16 %v584
        %v1573 = vunpack.c.h.b16 %v584
        %v1574 = vunpack.c.l.b16 %v585
        %v1575 = vunpack.c.h.b16 %v585
        %v1576 = vunpack.c.l.b16 %v586
        %v1577 = vunpack.c.h.b16 %v586
        %v1578 = vunpack.c.l.b16 %v587
        %v1579 = vunpack.c.h.b16 %v587
        %v1580 = vunpack.c.l.b16 %v588
        %v1581 = vunpack.c.h.b16 %v588
        %v1582 = vunpack.c.l.b16 %v589
        %v1583 = vunpack.c.h.b16 %v589
        %v1584 = vunpack.c.l.b16 %v590
        %v1585 = vunpack.c.h.b16 %v590
        %v1586 = vunpack.c.l.b16 %v591
        %v1587 = vunpack.c.h.b16 %v591
        %v1588 = vunpack.c.l.b16 %v592
        %v1589 = vunpack.c.h.b16 %v592
        %v1590 = vunpack.c.l.b16 %v593
        %v1591 = vunpack.c.h.b16 %v593
        %v1592 = vunpack.c.l.b16 %v594
        %v1593 = vunpack.c.h.b16 %v594
        %v1594 = vunpack.c.l.b16 %v595
        %v1595 = vunpack.c.h.b16 %v595
        %v1596 = vpack.c.b16 %v1404, %v1340
        %v1597 = vpack.c.b16 %v1405, %v1341
        %v1598 = vpack.c.b16 %v1406, %v1342
        %v1599 = vpack.c.b16 %v1407, %v1343
        %v1600 = vpack.c.b16 %v1408, %v1344
        %v1601 = vpack.c.b16 %v1409, %v1345
        %v1602 = vpack.c.b16 %v1410, %v1346
        %v1603 = vpack.c.b16 %v1411, %v1347
        %v1604 = vpack.c.b16 %v1412, %v1348
        %v1605 = vpack.c.b16 %v1413, %v1349
        %v1606 = vpack.c.b16 %v1414, %v1350
        %v1607 = vpack.c.b16 %v1415, %v1351
        %v1608 = vpack.c.b16 %v1416, %v1352
        %v1609 = vpack.c.b16 %v1417, %v1353
        %v1610 = vpack.c.b16 %v1418, %v1354
        %v1611 = vpack.c.b16 %v1419, %v1355
        %v1612 = vpack.c.b16 %v1420, %v1356
        %v1613 = vpack.c.b16 %v1421, %v1357
        %v1614 = vpack.c.b16 %v1422, %v1358
        %v1615 = vpack.c.b16 %v1423, %v1359
        %v1616 = vpack.c.b16 %v1424, %v1360
        %v1617 = vpack.c.b16 %v1425, %v1361
        %v1618 = vpack.c.b16 %v1426, %v1362
        %v1619 = vpack.c.b16 %v1427, %v1363
        %v1620 = vpack.c.b16 %v1428, %v1364
        %v1621 = vpack.c.b16 %v1429, %v1365
        %v1622 = vpack.c.b16 %v1430, %v1366
        %v1623 = vpack.c.b16 %v1431, %v1367
        %v1624 = vpack.c.b16 %v1432, %v1368
        %v1625 = vpack.c.b16 %v1433, %v1369
        %v1626 = vpack.c.b16 %v1434, %v1370
        %v1627 = vpack.c.b16 %v1435, %v1371
        %v1628 = vpack.c.b16 %v1436, %v1372
        %v1629 = vpack.c.b16 %v1437, %v1373
        %v1630 = vpack.c.b16 %v1438, %v1374
        %v1631 = vpack.c.b16 %v1439, %v1375
        %v1632 = vpack.c.b16 %v1440, %v1376
        %v1633 = vpack.c.b16 %v1441, %v1377
        %v1634 = vpack.c.b16 %v1442, %v1378
        %v1635 = vpack.c.b16 %v1443, %v1379
        %v1636 = vpack.c.b16 %v1444, %v1380
        %v1637 = vpack.c.b16 %v1445, %v1381
        %v1638 = vpack.c.b16 %v1446, %v1382
        %v1639 = vpack.c.b16 %v1447, %v1383
        %v1640 = vpack.c.b16 %v1448, %v1384
        %v1641 = vpack.c.b16 %v1449, %v1385
        %v1642 = vpack.c.b16 %v1450, %v1386
        %v1643 = vpack.c.b16 %v1451, %v1387
        %v1644 = vpack.c.b16 %v1452, %v1388
        %v1645 = vpack.c.b16 %v1453, %v1389
        %v1646 = vpack.c.b16 %v1454, %v1390
        %v1647 = vpack.c.b16 %v1455, %v1391
        %v1648 = vpack.c.b16 %v1456, %v1392
        %v1649 = vpack.c.b16 %v1457, %v1393
        %v1650 = vpack.c.b16 %v1458, %v1394
        %v1651 = vpack.c.b16 %v1459, %v1395
        %v1652 = vpack.c.b16 %v1460, %v1396
        %v1653 = vpack.c.b16 %v1461, %v1397
        %v1654 = vpack.c.b16 %v1462, %v1398
        %v1655 = vpack.c.b16 %v1463, %v1399
        %v1656 = vpack.c.b16 %v1464, %v1400
        %v1657 = vpack.c.b16 %v1465, %v1401
        %v1658 = vpack.c.b16 %v1466, %v1402
        %v1659 = vpack.c.b16 %v1467, %v1403
        %v1660 = vpack.c.b16 %v1532, %v1468
        %v1661 = vpack.c.b16 %v1533, %v1469
        %v1662 = vpack.c.b16 %v1534, %v1470
        %v1663 = vpack.c.b16 %v1535, %v1471
        %v1664 = vpack.c.b16 %v1536, %v1472
        %v1665 = vpack.c.b16 %v1537, %v1473
        %v1666 = vpack.c.b16 %v1538, %v1474
        %v1667 = vpack.c.b16 %v1539, %v1475
        %v1668 = vpack.c.b16 %v1540, %v1476
        %v1669 = vpack.c.b16 %v1541, %v1477
        %v1670 = vpack.c.b16 %v1542, %v1478
        %v1671 = vpack.c.b16 %v1543, %v1479
        %v1672 = vpack.c.b16 %v1544, %v1480
        %v1673 = vpack.c.b16 %v1545, %v1481
        %v1674 = vpack.c.b16 %v1546, %v1482
        %v1675 = vpack.c.b16 %v1547, %v1483
        %v1676 = vpack.c.b16 %v1548, %v1484
        %v1677 = vpack.c.b16 %v1549, %v1485
        %v1678 = vpack.c.b16 %v1550, %v1486
        %v1679 = vpack.c.b16 %v1551, %v1487
        %v1680 = vpack.c.b16 %v1552, %v1488
        %v1681 = vpack.c.b16 %v1553, %v1489
        %v1682 = vpack.c.b16 %v1554, %v1490
        %v1683 = vpack.c.b16 %v1555, %v1491
        %v1684 = vpack.c.b16 %v1556, %v1492
        %v1685 = vpack.c.b16 %v1557, %v1493
        %v1686 = vpack.c.b16 %v1558, %v1494
        %v1687 = vpack.c.b16 %v1559, %v1495
        %v1688 = vpack.c.b16 %v1560, %v1496
        %v1689 = vpack.c.b16 %v1561, %v1497
        %v1690 = vpack.c.b16 %v1562, %v1498
        %v1691 = vpack.c.b16 %v1563, %v1499
        %v1692 = vpack.c.b16 %v1564, %v1500
        %v1693 = vpack.c.b16 %v1565, %v1501
        %v1694 = vpack.c.b16 %v1566, %v1502
        %v1695 = vpack.c.b16 %v1567, %v1503
        %v1696 = vpack.c.b16 %v1568, %v1504
        %v1697 = vpack.c.b16 %v1569, %v1505
        %v1698 = vpack.c.b16 %v1570, %v1506
        %v1699 = vpack.c.b16 %v1571, %v1507
        %v1700 = vpack.c.b16 %v1572, %v1508
        %v1701 = vpack.c.b16 %v1573, %v1509
        %v1702 = vpack.c.b16 %v1574, %v1510
        %v1703 = vpack.c.b16 %v1575, %v1511
        %v1704 = vpack.c.b16 %v1576, %v1512
        %v1705 = vpack.c.b16 %v1577, %v1513
        %v1706 = vpack.c.b16 %v1578, %v1514
        %v1707 = vpack.c.b16 %v1579, %v1515
        %v1708 = vpack.c.b16 %v1580, %v1516
        %v1709 = vpack.c.b16 %v1581, %v1517
        %v1710 = vpack.c.b16 %v1582, %v1518
        %v1711 = vpack.c.b16 %v1583, %v1519
        %v1712 = vpack.c.b16 %v1584, %v1520
        %v1713 = vpack.c.b16 %v1585, %v1521
        %v1714 = vpack.c.b16 %v1586, %v1522
        %v1715 = vpack.c.b16 %v1587, %v1523
        %v1716 = vpack.c.b16 %v1588, %v1524
        %v1717 = vpack.c.b16 %v1589, %v1525
        %v1718 = vpack.c.b16 %v1590, %v1526
        %v1719 = vpack.c.b16 %v1591, %v1527
        %v1720 = vpack.c.b16 %v1592, %v1528
        %v1721 = vpack.c.b16 %v1593, %v1529
        %v1722 = vpack.c.b16 %v1594, %v1530
        %v1723 = vpack.c.b16 %v1595, %v1531
        %vm1852 = vcmask 261120
        %v1854 = vsel %vm1852, %v467, 0
        %1856 = vmatprep.subr.bf16.mxu0 %v1597
        %1857 = vmatpush1.bf16.msra.mxu0 %v1596
        %1858 = vmatprep.subr.bf16.mxu0 %v1661
        %1859 = vmatpush1.bf16.msra.mxu0 %v1660
        %1860 = vmatprep.subr.bf16.mxu0 0
        %1861 = vmatpush1.bf16.msra.mxu0 0
        %1862 = vmatprep.subr.bf16.mxu0 0
        %1863 = vmatpush1.bf16.msra.mxu0 0
        %1864 = vmatprep.subr.bf16.mxu0 0
        %1865 = vmatpush1.bf16.msra.mxu0 0
        %1866 = vmatprep.subr.bf16.mxu0 0
        %1867 = vmatpush1.bf16.msra.mxu0 0
        %1868 = vmatprep.subr.bf16.mxu0 0
        %1869 = vmatpush1.bf16.msra.mxu0 0
        %1870 = vmatprep.subr.bf16.mxu0 0
        %1871 = vmatpush1.bf16.msra.mxu0 0
        %1872 = vmatprep.subr.bf16.mxu0 0
        %1873 = vmatpush1.bf16.msra.mxu0 0
        %1874 = vmatprep.subr.bf16.mxu0 0
        %1875 = vmatpush1.bf16.msra.mxu0 0
        %1876 = vmatprep.subr.bf16.mxu0 0
        %1877 = vmatpush1.bf16.msra.mxu0 0
        %1878 = vmatprep.subr.bf16.mxu0 0
        %1879 = vmatpush1.bf16.msra.mxu0 0
        %1880 = vmatprep.subr.bf16.mxu0 0
        %1881 = vmatpush1.bf16.msra.mxu0 0
        %1882 = vmatprep.subr.bf16.mxu0 0
        %1883 = vmatpush1.bf16.msra.mxu0 0
        %1884 = vmatprep.subr.bf16.mxu0 0
        %1885 = vmatpush1.bf16.msra.mxu0 0
        %1886 = vmatprep.subr.bf16.mxu0 0
        %1887 = vmatpush1.bf16.msra.mxu0 0
        %1888 = vmatprep.mubr.bf16.mxu0 0
        %1889 = vmatmul.mubr.bf16.gmra.mrb[0].mxu0 %v1854
        %v1890 = vpop.f32.mrb[0].mxu0
        %v1891 = vadd.f32 %v959, %v1890
        %v1892 = vpop.f32.mrb[0].mxu0
        %v1893 = vadd.f32 %v963, %v1892
        %v1894 = vpop.f32.mrb[0].mxu0
        %v1895 = vpop.f32.mrb[0].mxu0
        %1896 = vdwg.mxu0
        %1897 = vmatprep.subr.bf16.mxu0 %v1599
        %1898 = vmatpush1.bf16.msra.mxu0 %v1598
        %1899 = vmatprep.subr.bf16.mxu0 %v1663
        %1900 = vmatpush1.bf16.msra.mxu0 %v1662
        %1901 = vmatprep.subr.bf16.mxu0 0
        %1902 = vmatpush1.bf16.msra.mxu0 0
        %1903 = vmatprep.subr.bf16.mxu0 0
        %1904 = vmatpush1.bf16.msra.mxu0 0
        %1905 = vmatprep.subr.bf16.mxu0 0
        %1906 = vmatpush1.bf16.msra.mxu0 0
        %1907 = vmatprep.subr.bf16.mxu0 0
        %1908 = vmatpush1.bf16.msra.mxu0 0
        %1909 = vmatprep.subr.bf16.mxu0 0
        %1910 = vmatpush1.bf16.msra.mxu0 0
        %1911 = vmatprep.subr.bf16.mxu0 0
        %1912 = vmatpush1.bf16.msra.mxu0 0
        %1913 = vmatprep.subr.bf16.mxu0 0
        %1914 = vmatpush1.bf16.msra.mxu0 0
        %1915 = vmatprep.subr.bf16.mxu0 0
        %1916 = vmatpush1.bf16.msra.mxu0 0
        %1917 = vmatprep.subr.bf16.mxu0 0
        %1918 = vmatpush1.bf16.msra.mxu0 0
        %1919 = vmatprep.subr.bf16.mxu0 0
        %1920 = vmatpush1.bf16.msra.mxu0 0
        %1921 = vmatprep.subr.bf16.mxu0 0
        %1922 = vmatpush1.bf16.msra.mxu0 0
        %1923 = vmatprep.subr.bf16.mxu0 0
        %1924 = vmatpush1.bf16.msra.mxu0 0
        %1925 = vmatprep.subr.bf16.mxu0 0
        %1926 = vmatpush1.bf16.msra.mxu0 0
        %1927 = vmatprep.subr.bf16.mxu0 0
        %1928 = vmatpush1.bf16.msra.mxu0 0
        %1929 = vmatprep.mubr.bf16.mxu0 0
        %1930 = vmatmul.mubr.bf16.gmra.mrb[0].mxu0 %v1854
        %v1931 = vpop.f32.mrb[0].mxu0
        %v1932 = vadd.f32 %v967, %v1931
        %v1933 = vpop.f32.mrb[0].mxu0
        %v1934 = vadd.f32 %v971, %v1933
        %v1935 = vpop.f32.mrb[0].mxu0
        %v1936 = vpop.f32.mrb[0].mxu0
        %1937 = vdwg.mxu0
        %1938 = vmatprep.subr.bf16.mxu0 %v1601
        %1939 = vmatpush1.bf16.msra.mxu0 %v1600
        %1940 = vmatprep.subr.bf16.mxu0 %v1665
        %1941 = vmatpush1.bf16.msra.mxu0 %v1664
        %1942 = vmatprep.subr.bf16.mxu0 0
        %1943 = vmatpush1.bf16.msra.mxu0 0
        %1944 = vmatprep.subr.bf16.mxu0 0
        %1945 = vmatpush1.bf16.msra.mxu0 0
        %1946 = vmatprep.subr.bf16.mxu0 0
        %1947 = vmatpush1.bf16.msra.mxu0 0
        %1948 = vmatprep.subr.bf16.mxu0 0
        %1949 = vmatpush1.bf16.msra.mxu0 0
        %1950 = vmatprep.subr.bf16.mxu0 0
        %1951 = vmatpush1.bf16.msra.mxu0 0
        %1952 = vmatprep.subr.bf16.mxu0 0
        %1953 = vmatpush1.bf16.msra.mxu0 0
        %1954 = vmatprep.subr.bf16.mxu0 0
        %1955 = vmatpush1.bf16.msra.mxu0 0
        %1956 = vmatprep.subr.bf16.mxu0 0
        %1957 = vmatpush1.bf16.msra.mxu0 0
        %1958 = vmatprep.subr.bf16.mxu0 0
        %1959 = vmatpush1.bf16.msra.mxu0 0
        %1960 = vmatprep.subr.bf16.mxu0 0
        %1961 = vmatpush1.bf16.msra.mxu0 0
        %1962 = vmatprep.subr.bf16.mxu0 0
        %1963 = vmatpush1.bf16.msra.mxu0 0
        %1964 = vmatprep.subr.bf16.mxu0 0
        %1965 = vmatpush1.bf16.msra.mxu0 0
        %1966 = vmatprep.subr.bf16.mxu0 0
        %1967 = vmatpush1.bf16.msra.mxu0 0
        %1968 = vmatprep.subr.bf16.mxu0 0
        %1969 = vmatpush1.bf16.msra.mxu0 0
        %1970 = vmatprep.mubr.bf16.mxu0 0
        %1971 = vmatmul.mubr.bf16.gmra.mrb[0].mxu0 %v1854
        %v1972 = vpop.f32.mrb[0].mxu0
        %v1973 = vadd.f32 %v975, %v1972
        %v1974 = vpop.f32.mrb[0].mxu0
        %v1975 = vadd.f32 %v979, %v1974
        %v1976 = vpop.f32.mrb[0].mxu0
        %v1977 = vpop.f32.mrb[0].mxu0
        %1978 = vdwg.mxu0
        %1979 = vmatprep.subr.bf16.mxu0 %v1603
        %1980 = vmatpush1.bf16.msra.mxu0 %v1602
        %1981 = vmatprep.subr.bf16.mxu0 %v1667
        %1982 = vmatpush1.bf16.msra.mxu0 %v1666
        %1983 = vmatprep.subr.bf16.mxu0 0
        %1984 = vmatpush1.bf16.msra.mxu0 0
        %1985 = vmatprep.subr.bf16.mxu0 0
        %1986 = vmatpush1.bf16.msra.mxu0 0
        %1987 = vmatprep.subr.bf16.mxu0 0
        %1988 = vmatpush1.bf16.msra.mxu0 0
        %1989 = vmatprep.subr.bf16.mxu0 0
        %1990 = vmatpush1.bf16.msra.mxu0 0
        %1991 = vmatprep.subr.bf16.mxu0 0
        %1992 = vmatpush1.bf16.msra.mxu0 0
        %1993 = vmatprep.subr.bf16.mxu0 0
        %1994 = vmatpush1.bf16.msra.mxu0 0
        %1995 = vmatprep.subr.bf16.mxu0 0
        %1996 = vmatpush1.bf16.msra.mxu0 0
        %1997 = vmatprep.subr.bf16.mxu0 0
        %1998 = vmatpush1.bf16.msra.mxu0 0
        %1999 = vmatprep.subr.bf16.mxu0 0
        %2000 = vmatpush1.bf16.msra.mxu0 0
        %2001 = vmatprep.subr.bf16.mxu0 0
        %2002 = vmatpush1.bf16.msra.mxu0 0
        %2003 = vmatprep.subr.bf16.mxu0 0
        %2004 = vmatpush1.bf16.msra.mxu0 0
        %2005 = vmatprep.subr.bf16.mxu0 0
        %2006 = vmatpush1.bf16.msra.mxu0 0
        %2007 = vmatprep.subr.bf16.mxu0 0
        %2008 = vmatpush1.bf16.msra.mxu0 0
        %2009 = vmatprep.subr.bf16.mxu0 0
        %2010 = vmatpush1.bf16.msra.mxu0 0
        %2011 = vmatprep.mubr.bf16.mxu0 0
        %2012 = vmatmul.mubr.bf16.gmra.mrb[0].mxu0 %v1854
        %v2013 = vpop.f32.mrb[0].mxu0
        %v2014 = vadd.f32 %v983, %v2013
        %v2015 = vpop.f32.mrb[0].mxu0
        %v2016 = vadd.f32 %v987, %v2015
        %v2017 = vpop.f32.mrb[0].mxu0
        %v2018 = vpop.f32.mrb[0].mxu0
        %2019 = vdwg.mxu0
        %2020 = vmatprep.subr.bf16.mxu0 %v1605
        %2021 = vmatpush1.bf16.msra.mxu0 %v1604
        %2022 = vmatprep.subr.bf16.mxu0 %v1669
        %2023 = vmatpush1.bf16.msra.mxu0 %v1668
        %2024 = vmatprep.subr.bf16.mxu0 0
        %2025 = vmatpush1.bf16.msra.mxu0 0
        %2026 = vmatprep.subr.bf16.mxu0 0
        %2027 = vmatpush1.bf16.msra.mxu0 0
        %2028 = vmatprep.subr.bf16.mxu0 0
        %2029 = vmatpush1.bf16.msra.mxu0 0
        %2030 = vmatprep.subr.bf16.mxu0 0
        %2031 = vmatpush1.bf16.msra.mxu0 0
        %2032 = vmatprep.subr.bf16.mxu0 0
        %2033 = vmatpush1.bf16.msra.mxu0 0
        %2034 = vmatprep.subr.bf16.mxu0 0
        %2035 = vmatpush1.bf16.msra.mxu0 0
        %2036 = vmatprep.subr.bf16.mxu0 0
        %2037 = vmatpush1.bf16.msra.mxu0 0
        %2038 = vmatprep.subr.bf16.mxu0 0
        %2039 = vmatpush1.bf16.msra.mxu0 0
        %2040 = vmatprep.subr.bf16.mxu0 0
        %2041 = vmatpush1.bf16.msra.mxu0 0
        %2042 = vmatprep.subr.bf16.mxu0 0
        %2043 = vmatpush1.bf16.msra.mxu0 0
        %2044 = vmatprep.subr.bf16.mxu0 0
        %2045 = vmatpush1.bf16.msra.mxu0 0
        %2046 = vmatprep.subr.bf16.mxu0 0
        %2047 = vmatpush1.bf16.msra.mxu0 0
        %2048 = vmatprep.subr.bf16.mxu0 0
        %2049 = vmatpush1.bf16.msra.mxu0 0
        %2050 = vmatprep.subr.bf16.mxu0 0
        %2051 = vmatpush1.bf16.msra.mxu0 0
        %2052 = vmatprep.mubr.bf16.mxu0 0
        %2053 = vmatmul.mubr.bf16.gmra.mrb[0].mxu0 %v1854
        %v2054 = vpop.f32.mrb[0].mxu0
        %v2055 = vadd.f32 %v991, %v2054
        %v2056 = vpop.f32.mrb[0].mxu0
        %v2057 = vadd.f32 %v995, %v2056
        %v2058 = vpop.f32.mrb[0].mxu0
        %v2059 = vpop.f32.mrb[0].mxu0
        %2060 = vdwg.mxu0
        %2061 = vmatprep.subr.bf16.mxu0 %v1607
        %2062 = vmatpush1.bf16.msra.mxu0 %v1606
        %2063 = vmatprep.subr.bf16.mxu0 %v1671
        %2064 = vmatpush1.bf16.msra.mxu0 %v1670
        %2065 = vmatprep.subr.bf16.mxu0 0
        %2066 = vmatpush1.bf16.msra.mxu0 0
        %2067 = vmatprep.subr.bf16.mxu0 0
        %2068 = vmatpush1.bf16.msra.mxu0 0
        %2069 = vmatprep.subr.bf16.mxu0 0
        %2070 = vmatpush1.bf16.msra.mxu0 0
        %2071 = vmatprep.subr.bf16.mxu0 0
        %2072 = vmatpush1.bf16.msra.mxu0 0
        %2073 = vmatprep.subr.bf16.mxu0 0
        %2074 = vmatpush1.bf16.msra.mxu0 0
        %2075 = vmatprep.subr.bf16.mxu0 0
        %2076 = vmatpush1.bf16.msra.mxu0 0
        %2077 = vmatprep.subr.bf16.mxu0 0
        %2078 = vmatpush1.bf16.msra.mxu0 0
        %2079 = vmatprep.subr.bf16.mxu0 0
        %2080 = vmatpush1.bf16.msra.mxu0 0
        %2081 = vmatprep.subr.bf16.mxu0 0
        %2082 = vmatpush1.bf16.msra.mxu0 0
        %2083 = vmatprep.subr.bf16.mxu0 0
        %2084 = vmatpush1.bf16.msra.mxu0 0
        %2085 = vmatprep.subr.bf16.mxu0 0
        %2086 = vmatpush1.bf16.msra.mxu0 0
        %2087 = vmatprep.subr.bf16.mxu0 0
        %2088 = vmatpush1.bf16.msra.mxu0 0
        %2089 = vmatprep.subr.bf16.mxu0 0
        %2090 = vmatpush1.bf16.msra.mxu0 0
        %2091 = vmatprep.subr.bf16.mxu0 0
        %2092 = vmatpush1.bf16.msra.mxu0 0
        %2093 = vmatprep.mubr.bf16.mxu0 0
        %2094 = vmatmul.mubr.bf16.gmra.mrb[0].mxu0 %v1854
        %v2095 = vpop.f32.mrb[0].mxu0
        %v2096 = vadd.f32 %v999, %v2095
        %v2097 = vpop.f32.mrb[0].mxu0
        %v2098 = vadd.f32 %v1003, %v2097
        %v2099 = vpop.f32.mrb[0].mxu0
        %v2100 = vpop.f32.mrb[0].mxu0
        %2101 = vdwg.mxu0
        %2102 = vmatprep.subr.bf16.mxu0 %v1609
        %2103 = vmatpush1.bf16.msra.mxu0 %v1608
        %2104 = vmatprep.subr.bf16.mxu0 %v1673
        %2105 = vmatpush1.bf16.msra.mxu0 %v1672
        %2106 = vmatprep.subr.bf16.mxu0 0
        %2107 = vmatpush1.bf16.msra.mxu0 0
        %2108 = vmatprep.subr.bf16.mxu0 0
        %2109 = vmatpush1.bf16.msra.mxu0 0
        %2110 = vmatprep.subr.bf16.mxu0 0
        %2111 = vmatpush1.bf16.msra.mxu0 0
        %2112 = vmatprep.subr.bf16.mxu0 0
        %2113 = vmatpush1.bf16.msra.mxu0 0
        %2114 = vmatprep.subr.bf16.mxu0 0
        %2115 = vmatpush1.bf16.msra.mxu0 0
        %2116 = vmatprep.subr.bf16.mxu0 0
        %2117 = vmatpush1.bf16.msra.mxu0 0
        %2118 = vmatprep.subr.bf16.mxu0 0
        %2119 = vmatpush1.bf16.msra.mxu0 0
        %2120 = vmatprep.subr.bf16.mxu0 0
        %2121 = vmatpush1.bf16.msra.mxu0 0
        %2122 = vmatprep.subr.bf16.mxu0 0
        %2123 = vmatpush1.bf16.msra.mxu0 0
        %2124 = vmatprep.subr.bf16.mxu0 0
        %2125 = vmatpush1.bf16.msra.mxu0 0
        %2126 = vmatprep.subr.bf16.mxu0 0
        %2127 = vmatpush1.bf16.msra.mxu0 0
        %2128 = vmatprep.subr.bf16.mxu0 0
        %2129 = vmatpush1.bf16.msra.mxu0 0
        %2130 = vmatprep.subr.bf16.mxu0 0
        %2131 = vmatpush1.bf16.msra.mxu0 0
        %2132 = vmatprep.subr.bf16.mxu0 0
        %2133 = vmatpush1.bf16.msra.mxu0 0
        %2134 = vmatprep.mubr.bf16.mxu0 0
        %2135 = vmatmul.mubr.bf16.gmra.mrb[0].mxu0 %v1854
        %v2136 = vpop.f32.mrb[0].mxu0
        %v2137 = vadd.f32 %v1007, %v2136
        %v2138 = vpop.f32.mrb[0].mxu0
        %v2139 = vadd.f32 %v1011, %v2138
        %v2140 = vpop.f32.mrb[0].mxu0
        %v2141 = vpop.f32.mrb[0].mxu0
        %2142 = vdwg.mxu0
        %2143 = vmatprep.subr.bf16.mxu0 %v1611
        %2144 = vmatpush1.bf16.msra.mxu0 %v1610
        %2145 = vmatprep.subr.bf16.mxu0 %v1675
        %2146 = vmatpush1.bf16.msra.mxu0 %v1674
        %2147 = vmatprep.subr.bf16.mxu0 0
        %2148 = vmatpush1.bf16.msra.mxu0 0
        %2149 = vmatprep.subr.bf16.mxu0 0
        %2150 = vmatpush1.bf16.msra.mxu0 0
        %2151 = vmatprep.subr.bf16.mxu0 0
        %2152 = vmatpush1.bf16.msra.mxu0 0
        %2153 = vmatprep.subr.bf16.mxu0 0
        %2154 = vmatpush1.bf16.msra.mxu0 0
        %2155 = vmatprep.subr.bf16.mxu0 0
        %2156 = vmatpush1.bf16.msra.mxu0 0
        %2157 = vmatprep.subr.bf16.mxu0 0
        %2158 = vmatpush1.bf16.msra.mxu0 0
        %2159 = vmatprep.subr.bf16.mxu0 0
        %2160 = vmatpush1.bf16.msra.mxu0 0
        %2161 = vmatprep.subr.bf16.mxu0 0
        %2162 = vmatpush1.bf16.msra.mxu0 0
        %2163 = vmatprep.subr.bf16.mxu0 0
        %2164 = vmatpush1.bf16.msra.mxu0 0
        %2165 = vmatprep.subr.bf16.mxu0 0
        %2166 = vmatpush1.bf16.msra.mxu0 0
        %2167 = vmatprep.subr.bf16.mxu0 0
        %2168 = vmatpush1.bf16.msra.mxu0 0
        %2169 = vmatprep.subr.bf16.mxu0 0
        %2170 = vmatpush1.bf16.msra.mxu0 0
        %2171 = vmatprep.subr.bf16.mxu0 0
        %2172 = vmatpush1.bf16.msra.mxu0 0
        %2173 = vmatprep.subr.bf16.mxu0 0
        %2174 = vmatpush1.bf16.msra.mxu0 0
        %2175 = vmatprep.mubr.bf16.mxu0 0
        %2176 = vmatmul.mubr.bf16.gmra.mrb[0].mxu0 %v1854
        %v2177 = vpop.f32.mrb[0].mxu0
        %v2178 = vadd.f32 %v1015, %v2177
        %v2179 = vpop.f32.mrb[0].mxu0
        %v2180 = vadd.f32 %v1019, %v2179
        %v2181 = vpop.f32.mrb[0].mxu0
        %v2182 = vpop.f32.mrb[0].mxu0
        %2183 = vdwg.mxu0
        %2184 = vmatprep.subr.bf16.mxu0 %v1613
        %2185 = vmatpush1.bf16.msra.mxu0 %v1612
        %2186 = vmatprep.subr.bf16.mxu0 %v1677
        %2187 = vmatpush1.bf16.msra.mxu0 %v1676
        %2188 = vmatprep.subr.bf16.mxu0 0
        %2189 = vmatpush1.bf16.msra.mxu0 0
        %2190 = vmatprep.subr.bf16.mxu0 0
        %2191 = vmatpush1.bf16.msra.mxu0 0
        %2192 = vmatprep.subr.bf16.mxu0 0
        %2193 = vmatpush1.bf16.msra.mxu0 0
        %2194 = vmatprep.subr.bf16.mxu0 0
        %2195 = vmatpush1.bf16.msra.mxu0 0
        %2196 = vmatprep.subr.bf16.mxu0 0
        %2197 = vmatpush1.bf16.msra.mxu0 0
        %2198 = vmatprep.subr.bf16.mxu0 0
        %2199 = vmatpush1.bf16.msra.mxu0 0
        %2200 = vmatprep.subr.bf16.mxu0 0
        %2201 = vmatpush1.bf16.msra.mxu0 0
        %2202 = vmatprep.subr.bf16.mxu0 0
        %2203 = vmatpush1.bf16.msra.mxu0 0
        %2204 = vmatprep.subr.bf16.mxu0 0
        %2205 = vmatpush1.bf16.msra.mxu0 0
        %2206 = vmatprep.subr.bf16.mxu0 0
        %2207 = vmatpush1.bf16.msra.mxu0 0
        %2208 = vmatprep.subr.bf16.mxu0 0
        %2209 = vmatpush1.bf16.msra.mxu0 0
        %2210 = vmatprep.subr.bf16.mxu0 0
        %2211 = vmatpush1.bf16.msra.mxu0 0
        %2212 = vmatprep.subr.bf16.mxu0 0
        %2213 = vmatpush1.bf16.msra.mxu0 0
        %2214 = vmatprep.subr.bf16.mxu0 0
        %2215 = vmatpush1.bf16.msra.mxu0 0
        %2216 = vmatprep.mubr.bf16.mxu0 0
        %2217 = vmatmul.mubr.bf16.gmra.mrb[0].mxu0 %v1854
        %v2218 = vpop.f32.mrb[0].mxu0
        %v2219 = vadd.f32 %v1023, %v2218
        %v2220 = vpop.f32.mrb[0].mxu0
        %v2221 = vadd.f32 %v1027, %v2220
        %v2222 = vpop.f32.mrb[0].mxu0
        %v2223 = vpop.f32.mrb[0].mxu0
        %2224 = vdwg.mxu0
        %2225 = vmatprep.subr.bf16.mxu0 %v1615
        %2226 = vmatpush1.bf16.msra.mxu0 %v1614
        %2227 = vmatprep.subr.bf16.mxu0 %v1679
        %2228 = vmatpush1.bf16.msra.mxu0 %v1678
        %2229 = vmatprep.subr.bf16.mxu0 0
        %2230 = vmatpush1.bf16.msra.mxu0 0
        %2231 = vmatprep.subr.bf16.mxu0 0
        %2232 = vmatpush1.bf16.msra.mxu0 0
        %2233 = vmatprep.subr.bf16.mxu0 0
        %2234 = vmatpush1.bf16.msra.mxu0 0
        %2235 = vmatprep.subr.bf16.mxu0 0
        %2236 = vmatpush1.bf16.msra.mxu0 0
        %2237 = vmatprep.subr.bf16.mxu0 0
        %2238 = vmatpush1.bf16.msra.mxu0 0
        %2239 = vmatprep.subr.bf16.mxu0 0
        %2240 = vmatpush1.bf16.msra.mxu0 0
        %2241 = vmatprep.subr.bf16.mxu0 0
        %2242 = vmatpush1.bf16.msra.mxu0 0
        %2243 = vmatprep.subr.bf16.mxu0 0
        %2244 = vmatpush1.bf16.msra.mxu0 0
        %2245 = vmatprep.subr.bf16.mxu0 0
        %2246 = vmatpush1.bf16.msra.mxu0 0
        %2247 = vmatprep.subr.bf16.mxu0 0
        %2248 = vmatpush1.bf16.msra.mxu0 0
        %2249 = vmatprep.subr.bf16.mxu0 0
        %2250 = vmatpush1.bf16.msra.mxu0 0
        %2251 = vmatprep.subr.bf16.mxu0 0
        %2252 = vmatpush1.bf16.msra.mxu0 0
        %2253 = vmatprep.subr.bf16.mxu0 0
        %2254 = vmatpush1.bf16.msra.mxu0 0
        %2255 = vmatprep.subr.bf16.mxu0 0
        %2256 = vmatpush1.bf16.msra.mxu0 0
        %2257 = vmatprep.mubr.bf16.mxu0 0
        %2258 = vmatmul.mubr.bf16.gmra.mrb[0].mxu0 %v1854
        %v2259 = vpop.f32.mrb[0].mxu0
        %v2260 = vadd.f32 %v1031, %v2259
        %v2261 = vpop.f32.mrb[0].mxu0
        %v2262 = vadd.f32 %v1035, %v2261
        %v2263 = vpop.f32.mrb[0].mxu0
        %v2264 = vpop.f32.mrb[0].mxu0
        %2265 = vdwg.mxu0
        %2266 = vmatprep.subr.bf16.mxu0 %v1617
        %2267 = vmatpush1.bf16.msra.mxu0 %v1616
        %2268 = vmatprep.subr.bf16.mxu0 %v1681
        %2269 = vmatpush1.bf16.msra.mxu0 %v1680
        %2270 = vmatprep.subr.bf16.mxu0 0
        %2271 = vmatpush1.bf16.msra.mxu0 0
        %2272 = vmatprep.subr.bf16.mxu0 0
        %2273 = vmatpush1.bf16.msra.mxu0 0
        %2274 = vmatprep.subr.bf16.mxu0 0
        %2275 = vmatpush1.bf16.msra.mxu0 0
        %2276 = vmatprep.subr.bf16.mxu0 0
        %2277 = vmatpush1.bf16.msra.mxu0 0
        %2278 = vmatprep.subr.bf16.mxu0 0
        %2279 = vmatpush1.bf16.msra.mxu0 0
        %2280 = vmatprep.subr.bf16.mxu0 0
        %2281 = vmatpush1.bf16.msra.mxu0 0
        %2282 = vmatprep.subr.bf16.mxu0 0
        %2283 = vmatpush1.bf16.msra.mxu0 0
        %2284 = vmatprep.subr.bf16.mxu0 0
        %2285 = vmatpush1.bf16.msra.mxu0 0
        %2286 = vmatprep.subr.bf16.mxu0 0
        %2287 = vmatpush1.bf16.msra.mxu0 0
        %2288 = vmatprep.subr.bf16.mxu0 0
        %2289 = vmatpush1.bf16.msra.mxu0 0
        %2290 = vmatprep.subr.bf16.mxu0 0
        %2291 = vmatpush1.bf16.msra.mxu0 0
        %2292 = vmatprep.subr.bf16.mxu0 0
        %2293 = vmatpush1.bf16.msra.mxu0 0
        %2294 = vmatprep.subr.bf16.mxu0 0
        %2295 = vmatpush1.bf16.msra.mxu0 0
        %2296 = vmatprep.subr.bf16.mxu0 0
        %2297 = vmatpush1.bf16.msra.mxu0 0
        %2298 = vmatprep.mubr.bf16.mxu0 0
        %2299 = vmatmul.mubr.bf16.gmra.mrb[0].mxu0 %v1854
        %v2300 = vpop.f32.mrb[0].mxu0
        %v2301 = vadd.f32 %v1039, %v2300
        %v2302 = vpop.f32.mrb[0].mxu0
        %v2303 = vadd.f32 %v1043, %v2302
        %v2304 = vpop.f32.mrb[0].mxu0
        %v2305 = vpop.f32.mrb[0].mxu0
        %2306 = vdwg.mxu0
        %2307 = vmatprep.subr.bf16.mxu0 %v1619
        %2308 = vmatpush1.bf16.msra.mxu0 %v1618
        %2309 = vmatprep.subr.bf16.mxu0 %v1683
        %2310 = vmatpush1.bf16.msra.mxu0 %v1682
        %2311 = vmatprep.subr.bf16.mxu0 0
        %2312 = vmatpush1.bf16.msra.mxu0 0
        %2313 = vmatprep.subr.bf16.mxu0 0
        %2314 = vmatpush1.bf16.msra.mxu0 0
        %2315 = vmatprep.subr.bf16.mxu0 0
        %2316 = vmatpush1.bf16.msra.mxu0 0
        %2317 = vmatprep.subr.bf16.mxu0 0
        %2318 = vmatpush1.bf16.msra.mxu0 0
        %2319 = vmatprep.subr.bf16.mxu0 0
        %2320 = vmatpush1.bf16.msra.mxu0 0
        %2321 = vmatprep.subr.bf16.mxu0 0
        %2322 = vmatpush1.bf16.msra.mxu0 0
        %2323 = vmatprep.subr.bf16.mxu0 0
        %2324 = vmatpush1.bf16.msra.mxu0 0
        %2325 = vmatprep.subr.bf16.mxu0 0
        %2326 = vmatpush1.bf16.msra.mxu0 0
        %2327 = vmatprep.subr.bf16.mxu0 0
        %2328 = vmatpush1.bf16.msra.mxu0 0
        %2329 = vmatprep.subr.bf16.mxu0 0
        %2330 = vmatpush1.bf16.msra.mxu0 0
        %2331 = vmatprep.subr.bf16.mxu0 0
        %2332 = vmatpush1.bf16.msra.mxu0 0
        %2333 = vmatprep.subr.bf16.mxu0 0
        %2334 = vmatpush1.bf16.msra.mxu0 0
        %2335 = vmatprep.subr.bf16.mxu0 0
        %2336 = vmatpush1.bf16.msra.mxu0 0
        %2337 = vmatprep.subr.bf16.mxu0 0
        %2338 = vmatpush1.bf16.msra.mxu0 0
        %2339 = vmatprep.mubr.bf16.mxu0 0
        %2340 = vmatmul.mubr.bf16.gmra.mrb[0].mxu0 %v1854
        %v2341 = vpop.f32.mrb[0].mxu0
        %v2342 = vadd.f32 %v1047, %v2341
        %v2343 = vpop.f32.mrb[0].mxu0
        %v2344 = vadd.f32 %v1051, %v2343
        %v2345 = vpop.f32.mrb[0].mxu0
        %v2346 = vpop.f32.mrb[0].mxu0
        %2347 = vdwg.mxu0
        %2348 = vmatprep.subr.bf16.mxu0 %v1621
        %2349 = vmatpush1.bf16.msra.mxu0 %v1620
        %2350 = vmatprep.subr.bf16.mxu0 %v1685
        %2351 = vmatpush1.bf16.msra.mxu0 %v1684
        %2352 = vmatprep.subr.bf16.mxu0 0
        %2353 = vmatpush1.bf16.msra.mxu0 0
        %2354 = vmatprep.subr.bf16.mxu0 0
        %2355 = vmatpush1.bf16.msra.mxu0 0
        %2356 = vmatprep.subr.bf16.mxu0 0
        %2357 = vmatpush1.bf16.msra.mxu0 0
        %2358 = vmatprep.subr.bf16.mxu0 0
        %2359 = vmatpush1.bf16.msra.mxu0 0
        %2360 = vmatprep.subr.bf16.mxu0 0
        %2361 = vmatpush1.bf16.msra.mxu0 0
        %2362 = vmatprep.subr.bf16.mxu0 0
        %2363 = vmatpush1.bf16.msra.mxu0 0
        %2364 = vmatprep.subr.bf16.mxu0 0
        %2365 = vmatpush1.bf16.msra.mxu0 0
        %2366 = vmatprep.subr.bf16.mxu0 0
        %2367 = vmatpush1.bf16.msra.mxu0 0
        %2368 = vmatprep.subr.bf16.mxu0 0
        %2369 = vmatpush1.bf16.msra.mxu0 0
        %2370 = vmatprep.subr.bf16.mxu0 0
        %2371 = vmatpush1.bf16.msra.mxu0 0
        %2372 = vmatprep.subr.bf16.mxu0 0
        %2373 = vmatpush1.bf16.msra.mxu0 0
        %2374 = vmatprep.subr.bf16.mxu0 0
        %2375 = vmatpush1.bf16.msra.mxu0 0
        %2376 = vmatprep.subr.bf16.mxu0 0
        %2377 = vmatpush1.bf16.msra.mxu0 0
        %2378 = vmatprep.subr.bf16.mxu0 0
        %2379 = vmatpush1.bf16.msra.mxu0 0
        %2380 = vmatprep.mubr.bf16.mxu0 0
        %2381 = vmatmul.mubr.bf16.gmra.mrb[0].mxu0 %v1854
        %v2382 = vpop.f32.mrb[0].mxu0
        %v2383 = vadd.f32 %v1055, %v2382
        %v2384 = vpop.f32.mrb[0].mxu0
        %v2385 = vadd.f32 %v1059, %v2384
        %v2386 = vpop.f32.mrb[0].mxu0
        %v2387 = vpop.f32.mrb[0].mxu0
        %2388 = vdwg.mxu0
        %2389 = vmatprep.subr.bf16.mxu0 %v1623
        %2390 = vmatpush1.bf16.msra.mxu0 %v1622
        %2391 = vmatprep.subr.bf16.mxu0 %v1687
        %2392 = vmatpush1.bf16.msra.mxu0 %v1686
        %2393 = vmatprep.subr.bf16.mxu0 0
        %2394 = vmatpush1.bf16.msra.mxu0 0
        %2395 = vmatprep.subr.bf16.mxu0 0
        %2396 = vmatpush1.bf16.msra.mxu0 0
        %2397 = vmatprep.subr.bf16.mxu0 0
        %2398 = vmatpush1.bf16.msra.mxu0 0
        %2399 = vmatprep.subr.bf16.mxu0 0
        %2400 = vmatpush1.bf16.msra.mxu0 0
        %2401 = vmatprep.subr.bf16.mxu0 0
        %2402 = vmatpush1.bf16.msra.mxu0 0
        %2403 = vmatprep.subr.bf16.mxu0 0
        %2404 = vmatpush1.bf16.msra.mxu0 0
        %2405 = vmatprep.subr.bf16.mxu0 0
        %2406 = vmatpush1.bf16.msra.mxu0 0
        %2407 = vmatprep.subr.bf16.mxu0 0
        %2408 = vmatpush1.bf16.msra.mxu0 0
        %2409 = vmatprep.subr.bf16.mxu0 0
        %2410 = vmatpush1.bf16.msra.mxu0 0
        %2411 = vmatprep.subr.bf16.mxu0 0
        %2412 = vmatpush1.bf16.msra.mxu0 0
        %2413 = vmatprep.subr.bf16.mxu0 0
        %2414 = vmatpush1.bf16.msra.mxu0 0
        %2415 = vmatprep.subr.bf16.mxu0 0
        %2416 = vmatpush1.bf16.msra.mxu0 0
        %2417 = vmatprep.subr.bf16.mxu0 0
        %2418 = vmatpush1.bf16.msra.mxu0 0
        %2419 = vmatprep.subr.bf16.mxu0 0
        %2420 = vmatpush1.bf16.msra.mxu0 0
        %2421 = vmatprep.mubr.bf16.mxu0 0
        %2422 = vmatmul.mubr.bf16.gmra.mrb[0].mxu0 %v1854
        %v2423 = vpop.f32.mrb[0].mxu0
        %v2424 = vadd.f32 %v1063, %v2423
        %v2425 = vpop.f32.mrb[0].mxu0
        %v2426 = vadd.f32 %v1067, %v2425
        %v2427 = vpop.f32.mrb[0].mxu0
        %v2428 = vpop.f32.mrb[0].mxu0
        %2429 = vdwg.mxu0
        %2430 = vmatprep.subr.bf16.mxu0 %v1625
        %2431 = vmatpush1.bf16.msra.mxu0 %v1624
        %2432 = vmatprep.subr.bf16.mxu0 %v1689
        %2433 = vmatpush1.bf16.msra.mxu0 %v1688
        %2434 = vmatprep.subr.bf16.mxu0 0
        %2435 = vmatpush1.bf16.msra.mxu0 0
        %2436 = vmatprep.subr.bf16.mxu0 0
        %2437 = vmatpush1.bf16.msra.mxu0 0
        %2438 = vmatprep.subr.bf16.mxu0 0
        %2439 = vmatpush1.bf16.msra.mxu0 0
        %2440 = vmatprep.subr.bf16.mxu0 0
        %2441 = vmatpush1.bf16.msra.mxu0 0
        %2442 = vmatprep.subr.bf16.mxu0 0
        %2443 = vmatpush1.bf16.msra.mxu0 0
        %2444 = vmatprep.subr.bf16.mxu0 0
        %2445 = vmatpush1.bf16.msra.mxu0 0
        %2446 = vmatprep.subr.bf16.mxu0 0
        %2447 = vmatpush1.bf16.msra.mxu0 0
        %2448 = vmatprep.subr.bf16.mxu0 0
        %2449 = vmatpush1.bf16.msra.mxu0 0
        %2450 = vmatprep.subr.bf16.mxu0 0
        %2451 = vmatpush1.bf16.msra.mxu0 0
        %2452 = vmatprep.subr.bf16.mxu0 0
        %2453 = vmatpush1.bf16.msra.mxu0 0
        %2454 = vmatprep.subr.bf16.mxu0 0
        %2455 = vmatpush1.bf16.msra.mxu0 0
        %2456 = vmatprep.subr.bf16.mxu0 0
        %2457 = vmatpush1.bf16.msra.mxu0 0
        %2458 = vmatprep.subr.bf16.mxu0 0
        %2459 = vmatpush1.bf16.msra.mxu0 0
        %2460 = vmatprep.subr.bf16.mxu0 0
        %2461 = vmatpush1.bf16.msra.mxu0 0
        %2462 = vmatprep.mubr.bf16.mxu0 0
        %2463 = vmatmul.mubr.bf16.gmra.mrb[0].mxu0 %v1854
        %v2464 = vpop.f32.mrb[0].mxu0
        %v2465 = vadd.f32 %v1071, %v2464
        %v2466 = vpop.f32.mrb[0].mxu0
        %v2467 = vadd.f32 %v1075, %v2466
        %v2468 = vpop.f32.mrb[0].mxu0
        %v2469 = vpop.f32.mrb[0].mxu0
        %2470 = vdwg.mxu0
        %2471 = vmatprep.subr.bf16.mxu0 %v1627
        %2472 = vmatpush1.bf16.msra.mxu0 %v1626
        %2473 = vmatprep.subr.bf16.mxu0 %v1691
        %2474 = vmatpush1.bf16.msra.mxu0 %v1690
        %2475 = vmatprep.subr.bf16.mxu0 0
        %2476 = vmatpush1.bf16.msra.mxu0 0
        %2477 = vmatprep.subr.bf16.mxu0 0
        %2478 = vmatpush1.bf16.msra.mxu0 0
        %2479 = vmatprep.subr.bf16.mxu0 0
        %2480 = vmatpush1.bf16.msra.mxu0 0
        %2481 = vmatprep.subr.bf16.mxu0 0
        %2482 = vmatpush1.bf16.msra.mxu0 0
        %2483 = vmatprep.subr.bf16.mxu0 0
        %2484 = vmatpush1.bf16.msra.mxu0 0
        %2485 = vmatprep.subr.bf16.mxu0 0
        %2486 = vmatpush1.bf16.msra.mxu0 0
        %2487 = vmatprep.subr.bf16.mxu0 0
        %2488 = vmatpush1.bf16.msra.mxu0 0
        %2489 = vmatprep.subr.bf16.mxu0 0
        %2490 = vmatpush1.bf16.msra.mxu0 0
        %2491 = vmatprep.subr.bf16.mxu0 0
        %2492 = vmatpush1.bf16.msra.mxu0 0
        %2493 = vmatprep.subr.bf16.mxu0 0
        %2494 = vmatpush1.bf16.msra.mxu0 0
        %2495 = vmatprep.subr.bf16.mxu0 0
        %2496 = vmatpush1.bf16.msra.mxu0 0
        %2497 = vmatprep.subr.bf16.mxu0 0
        %2498 = vmatpush1.bf16.msra.mxu0 0
        %2499 = vmatprep.subr.bf16.mxu0 0
        %2500 = vmatpush1.bf16.msra.mxu0 0
        %2501 = vmatprep.subr.bf16.mxu0 0
        %2502 = vmatpush1.bf16.msra.mxu0 0
        %2503 = vmatprep.mubr.bf16.mxu0 0
        %2504 = vmatmul.mubr.bf16.gmra.mrb[0].mxu0 %v1854
        %v2505 = vpop.f32.mrb[0].mxu0
        %v2506 = vadd.f32 %v1079, %v2505
        %v2507 = vpop.f32.mrb[0].mxu0
        %v2508 = vadd.f32 %v1083, %v2507
        %v2509 = vpop.f32.mrb[0].mxu0
        %v2510 = vpop.f32.mrb[0].mxu0
        %2511 = vdwg.mxu0
        %2512 = vmatprep.subr.bf16.mxu0 %v1629
        %2513 = vmatpush1.bf16.msra.mxu0 %v1628
        %2514 = vmatprep.subr.bf16.mxu0 %v1693
        %2515 = vmatpush1.bf16.msra.mxu0 %v1692
        %2516 = vmatprep.subr.bf16.mxu0 0
        %2517 = vmatpush1.bf16.msra.mxu0 0
        %2518 = vmatprep.subr.bf16.mxu0 0
        %2519 = vmatpush1.bf16.msra.mxu0 0
        %2520 = vmatprep.subr.bf16.mxu0 0
        %2521 = vmatpush1.bf16.msra.mxu0 0
        %2522 = vmatprep.subr.bf16.mxu0 0
        %2523 = vmatpush1.bf16.msra.mxu0 0
        %2524 = vmatprep.subr.bf16.mxu0 0
        %2525 = vmatpush1.bf16.msra.mxu0 0
        %2526 = vmatprep.subr.bf16.mxu0 0
        %2527 = vmatpush1.bf16.msra.mxu0 0
        %2528 = vmatprep.subr.bf16.mxu0 0
        %2529 = vmatpush1.bf16.msra.mxu0 0
        %2530 = vmatprep.subr.bf16.mxu0 0
        %2531 = vmatpush1.bf16.msra.mxu0 0
        %2532 = vmatprep.subr.bf16.mxu0 0
        %2533 = vmatpush1.bf16.msra.mxu0 0
        %2534 = vmatprep.subr.bf16.mxu0 0
        %2535 = vmatpush1.bf16.msra.mxu0 0
        %2536 = vmatprep.subr.bf16.mxu0 0
        %2537 = vmatpush1.bf16.msra.mxu0 0
        %2538 = vmatprep.subr.bf16.mxu0 0
        %2539 = vmatpush1.bf16.msra.mxu0 0
        %2540 = vmatprep.subr.bf16.mxu0 0
        %2541 = vmatpush1.bf16.msra.mxu0 0
        %2542 = vmatprep.subr.bf16.mxu0 0
        %2543 = vmatpush1.bf16.msra.mxu0 0
        %2544 = vmatprep.mubr.bf16.mxu0 0
        %2545 = vmatmul.mubr.bf16.gmra.mrb[0].mxu0 %v1854
        %v2546 = vpop.f32.mrb[0].mxu0
        %v2547 = vadd.f32 %v1087, %v2546
        %v2548 = vpop.f32.mrb[0].mxu0
        %v2549 = vadd.f32 %v1091, %v2548
        %v2550 = vpop.f32.mrb[0].mxu0
        %v2551 = vpop.f32.mrb[0].mxu0
        %2552 = vdwg.mxu0
        %2553 = vmatprep.subr.bf16.mxu0 %v1631
        %2554 = vmatpush1.bf16.msra.mxu0 %v1630
        %2555 = vmatprep.subr.bf16.mxu0 %v1695
        %2556 = vmatpush1.bf16.msra.mxu0 %v1694
        %2557 = vmatprep.subr.bf16.mxu0 0
        %2558 = vmatpush1.bf16.msra.mxu0 0
        %2559 = vmatprep.subr.bf16.mxu0 0
        %2560 = vmatpush1.bf16.msra.mxu0 0
        %2561 = vmatprep.subr.bf16.mxu0 0
        %2562 = vmatpush1.bf16.msra.mxu0 0
        %2563 = vmatprep.subr.bf16.mxu0 0
        %2564 = vmatpush1.bf16.msra.mxu0 0
        %2565 = vmatprep.subr.bf16.mxu0 0
        %2566 = vmatpush1.bf16.msra.mxu0 0
        %2567 = vmatprep.subr.bf16.mxu0 0
        %2568 = vmatpush1.bf16.msra.mxu0 0
        %2569 = vmatprep.subr.bf16.mxu0 0
        %2570 = vmatpush1.bf16.msra.mxu0 0
        %2571 = vmatprep.subr.bf16.mxu0 0
        %2572 = vmatpush1.bf16.msra.mxu0 0
        %2573 = vmatprep.subr.bf16.mxu0 0
        %2574 = vmatpush1.bf16.msra.mxu0 0
        %2575 = vmatprep.subr.bf16.mxu0 0
        %2576 = vmatpush1.bf16.msra.mxu0 0
        %2577 = vmatprep.subr.bf16.mxu0 0
        %2578 = vmatpush1.bf16.msra.mxu0 0
        %2579 = vmatprep.subr.bf16.mxu0 0
        %2580 = vmatpush1.bf16.msra.mxu0 0
        %2581 = vmatprep.subr.bf16.mxu0 0
        %2582 = vmatpush1.bf16.msra.mxu0 0
        %2583 = vmatprep.subr.bf16.mxu0 0
        %2584 = vmatpush1.bf16.msra.mxu0 0
        %2585 = vmatprep.mubr.bf16.mxu0 0
        %2586 = vmatmul.mubr.bf16.gmra.mrb[0].mxu0 %v1854
        %v2587 = vpop.f32.mrb[0].mxu0
        %v2588 = vadd.f32 %v1095, %v2587
        %v2589 = vpop.f32.mrb[0].mxu0
        %v2590 = vadd.f32 %v1099, %v2589
        %v2591 = vpop.f32.mrb[0].mxu0
        %v2592 = vpop.f32.mrb[0].mxu0
        %2593 = vdwg.mxu0
        %2594 = vmatprep.subr.bf16.mxu0 %v1633
        %2595 = vmatpush1.bf16.msra.mxu0 %v1632
        %2596 = vmatprep.subr.bf16.mxu0 %v1697
        %2597 = vmatpush1.bf16.msra.mxu0 %v1696
        %2598 = vmatprep.subr.bf16.mxu0 0
        %2599 = vmatpush1.bf16.msra.mxu0 0
        %2600 = vmatprep.subr.bf16.mxu0 0
        %2601 = vmatpush1.bf16.msra.mxu0 0
        %2602 = vmatprep.subr.bf16.mxu0 0
        %2603 = vmatpush1.bf16.msra.mxu0 0
        %2604 = vmatprep.subr.bf16.mxu0 0
        %2605 = vmatpush1.bf16.msra.mxu0 0
        %2606 = vmatprep.subr.bf16.mxu0 0
        %2607 = vmatpush1.bf16.msra.mxu0 0
        %2608 = vmatprep.subr.bf16.mxu0 0
        %2609 = vmatpush1.bf16.msra.mxu0 0
        %2610 = vmatprep.subr.bf16.mxu0 0
        %2611 = vmatpush1.bf16.msra.mxu0 0
        %2612 = vmatprep.subr.bf16.mxu0 0
        %2613 = vmatpush1.bf16.msra.mxu0 0
        %2614 = vmatprep.subr.bf16.mxu0 0
        %2615 = vmatpush1.bf16.msra.mxu0 0
        %2616 = vmatprep.subr.bf16.mxu0 0
        %2617 = vmatpush1.bf16.msra.mxu0 0
        %2618 = vmatprep.subr.bf16.mxu0 0
        %2619 = vmatpush1.bf16.msra.mxu0 0
        %2620 = vmatprep.subr.bf16.mxu0 0
        %2621 = vmatpush1.bf16.msra.mxu0 0
        %2622 = vmatprep.subr.bf16.mxu0 0
        %2623 = vmatpush1.bf16.msra.mxu0 0
        %2624 = vmatprep.subr.bf16.mxu0 0
        %2625 = vmatpush1.bf16.msra.mxu0 0
        %2626 = vmatprep.mubr.bf16.mxu0 0
        %2627 = vmatmul.mubr.bf16.gmra.mrb[0].mxu0 %v1854
        %v2628 = vpop.f32.mrb[0].mxu0
        %v2629 = vadd.f32 %v1103, %v2628
        %v2630 = vpop.f32.mrb[0].mxu0
        %v2631 = vadd.f32 %v1107, %v2630
        %v2632 = vpop.f32.mrb[0].mxu0
        %v2633 = vpop.f32.mrb[0].mxu0
        %2634 = vdwg.mxu0
        %2635 = vmatprep.subr.bf16.mxu0 %v1635
        %2636 = vmatpush1.bf16.msra.mxu0 %v1634
        %2637 = vmatprep.subr.bf16.mxu0 %v1699
        %2638 = vmatpush1.bf16.msra.mxu0 %v1698
        %2639 = vmatprep.subr.bf16.mxu0 0
        %2640 = vmatpush1.bf16.msra.mxu0 0
        %2641 = vmatprep.subr.bf16.mxu0 0
        %2642 = vmatpush1.bf16.msra.mxu0 0
        %2643 = vmatprep.subr.bf16.mxu0 0
        %2644 = vmatpush1.bf16.msra.mxu0 0
        %2645 = vmatprep.subr.bf16.mxu0 0
        %2646 = vmatpush1.bf16.msra.mxu0 0
        %2647 = vmatprep.subr.bf16.mxu0 0
        %2648 = vmatpush1.bf16.msra.mxu0 0
        %2649 = vmatprep.subr.bf16.mxu0 0
        %2650 = vmatpush1.bf16.msra.mxu0 0
        %2651 = vmatprep.subr.bf16.mxu0 0
        %2652 = vmatpush1.bf16.msra.mxu0 0
        %2653 = vmatprep.subr.bf16.mxu0 0
        %2654 = vmatpush1.bf16.msra.mxu0 0
        %2655 = vmatprep.subr.bf16.mxu0 0
        %2656 = vmatpush1.bf16.msra.mxu0 0
        %2657 = vmatprep.subr.bf16.mxu0 0
        %2658 = vmatpush1.bf16.msra.mxu0 0
        %2659 = vmatprep.subr.bf16.mxu0 0
        %2660 = vmatpush1.bf16.msra.mxu0 0
        %2661 = vmatprep.subr.bf16.mxu0 0
        %2662 = vmatpush1.bf16.msra.mxu0 0
        %2663 = vmatprep.subr.bf16.mxu0 0
        %2664 = vmatpush1.bf16.msra.mxu0 0
        %2665 = vmatprep.subr.bf16.mxu0 0
        %2666 = vmatpush1.bf16.msra.mxu0 0
        %2667 = vmatprep.mubr.bf16.mxu0 0
        %2668 = vmatmul.mubr.bf16.gmra.mrb[0].mxu0 %v1854
        %v2669 = vpop.f32.mrb[0].mxu0
        %v2670 = vadd.f32 %v1111, %v2669
        %v2671 = vpop.f32.mrb[0].mxu0
        %v2672 = vadd.f32 %v1115, %v2671
        %v2673 = vpop.f32.mrb[0].mxu0
        %v2674 = vpop.f32.mrb[0].mxu0
        %2675 = vdwg.mxu0
        %2676 = vmatprep.subr.bf16.mxu0 %v1637
        %2677 = vmatpush1.bf16.msra.mxu0 %v1636
        %2678 = vmatprep.subr.bf16.mxu0 %v1701
        %2679 = vmatpush1.bf16.msra.mxu0 %v1700
        %2680 = vmatprep.subr.bf16.mxu0 0
        %2681 = vmatpush1.bf16.msra.mxu0 0
        %2682 = vmatprep.subr.bf16.mxu0 0
        %2683 = vmatpush1.bf16.msra.mxu0 0
        %2684 = vmatprep.subr.bf16.mxu0 0
        %2685 = vmatpush1.bf16.msra.mxu0 0
        %2686 = vmatprep.subr.bf16.mxu0 0
        %2687 = vmatpush1.bf16.msra.mxu0 0
        %2688 = vmatprep.subr.bf16.mxu0 0
        %2689 = vmatpush1.bf16.msra.mxu0 0
        %2690 = vmatprep.subr.bf16.mxu0 0
        %2691 = vmatpush1.bf16.msra.mxu0 0
        %2692 = vmatprep.subr.bf16.mxu0 0
        %2693 = vmatpush1.bf16.msra.mxu0 0
        %2694 = vmatprep.subr.bf16.mxu0 0
        %2695 = vmatpush1.bf16.msra.mxu0 0
        %2696 = vmatprep.subr.bf16.mxu0 0
        %2697 = vmatpush1.bf16.msra.mxu0 0
        %2698 = vmatprep.subr.bf16.mxu0 0
        %2699 = vmatpush1.bf16.msra.mxu0 0
        %2700 = vmatprep.subr.bf16.mxu0 0
        %2701 = vmatpush1.bf16.msra.mxu0 0
        %2702 = vmatprep.subr.bf16.mxu0 0
        %2703 = vmatpush1.bf16.msra.mxu0 0
        %2704 = vmatprep.subr.bf16.mxu0 0
        %2705 = vmatpush1.bf16.msra.mxu0 0
        %2706 = vmatprep.subr.bf16.mxu0 0
        %2707 = vmatpush1.bf16.msra.mxu0 0
        %2708 = vmatprep.mubr.bf16.mxu0 0
        %2709 = vmatmul.mubr.bf16.gmra.mrb[0].mxu0 %v1854
        %v2710 = vpop.f32.mrb[0].mxu0
        %v2711 = vadd.f32 %v1119, %v2710
        %v2712 = vpop.f32.mrb[0].mxu0
        %v2713 = vadd.f32 %v1123, %v2712
        %v2714 = vpop.f32.mrb[0].mxu0
        %v2715 = vpop.f32.mrb[0].mxu0
        %2716 = vdwg.mxu0
        %2717 = vmatprep.subr.bf16.mxu0 %v1639
        %2718 = vmatpush1.bf16.msra.mxu0 %v1638
        %2719 = vmatprep.subr.bf16.mxu0 %v1703
        %2720 = vmatpush1.bf16.msra.mxu0 %v1702
        %2721 = vmatprep.subr.bf16.mxu0 0
        %2722 = vmatpush1.bf16.msra.mxu0 0
        %2723 = vmatprep.subr.bf16.mxu0 0
        %2724 = vmatpush1.bf16.msra.mxu0 0
        %2725 = vmatprep.subr.bf16.mxu0 0
        %2726 = vmatpush1.bf16.msra.mxu0 0
        %2727 = vmatprep.subr.bf16.mxu0 0
        %2728 = vmatpush1.bf16.msra.mxu0 0
        %2729 = vmatprep.subr.bf16.mxu0 0
        %2730 = vmatpush1.bf16.msra.mxu0 0
        %2731 = vmatprep.subr.bf16.mxu0 0
        %2732 = vmatpush1.bf16.msra.mxu0 0
        %2733 = vmatprep.subr.bf16.mxu0 0
        %2734 = vmatpush1.bf16.msra.mxu0 0
        %2735 = vmatprep.subr.bf16.mxu0 0
        %2736 = vmatpush1.bf16.msra.mxu0 0
        %2737 = vmatprep.subr.bf16.mxu0 0
        %2738 = vmatpush1.bf16.msra.mxu0 0
        %2739 = vmatprep.subr.bf16.mxu0 0
        %2740 = vmatpush1.bf16.msra.mxu0 0
        %2741 = vmatprep.subr.bf16.mxu0 0
        %2742 = vmatpush1.bf16.msra.mxu0 0
        %2743 = vmatprep.subr.bf16.mxu0 0
        %2744 = vmatpush1.bf16.msra.mxu0 0
        %2745 = vmatprep.subr.bf16.mxu0 0
        %2746 = vmatpush1.bf16.msra.mxu0 0
        %2747 = vmatprep.subr.bf16.mxu0 0
        %2748 = vmatpush1.bf16.msra.mxu0 0
        %2749 = vmatprep.mubr.bf16.mxu0 0
        %2750 = vmatmul.mubr.bf16.gmra.mrb[0].mxu0 %v1854
        %v2751 = vpop.f32.mrb[0].mxu0
        %v2752 = vadd.f32 %v1127, %v2751
        %v2753 = vpop.f32.mrb[0].mxu0
        %v2754 = vadd.f32 %v1131, %v2753
        %v2755 = vpop.f32.mrb[0].mxu0
        %v2756 = vpop.f32.mrb[0].mxu0
        %2757 = vdwg.mxu0
        %2758 = vmatprep.subr.bf16.mxu0 %v1641
        %2759 = vmatpush1.bf16.msra.mxu0 %v1640
        %2760 = vmatprep.subr.bf16.mxu0 %v1705
        %2761 = vmatpush1.bf16.msra.mxu0 %v1704
        %2762 = vmatprep.subr.bf16.mxu0 0
        %2763 = vmatpush1.bf16.msra.mxu0 0
        %2764 = vmatprep.subr.bf16.mxu0 0
        %2765 = vmatpush1.bf16.msra.mxu0 0
        %2766 = vmatprep.subr.bf16.mxu0 0
        %2767 = vmatpush1.bf16.msra.mxu0 0
        %2768 = vmatprep.subr.bf16.mxu0 0
        %2769 = vmatpush1.bf16.msra.mxu0 0
        %2770 = vmatprep.subr.bf16.mxu0 0
        %2771 = vmatpush1.bf16.msra.mxu0 0
        %2772 = vmatprep.subr.bf16.mxu0 0
        %2773 = vmatpush1.bf16.msra.mxu0 0
        %2774 = vmatprep.subr.bf16.mxu0 0
        %2775 = vmatpush1.bf16.msra.mxu0 0
        %2776 = vmatprep.subr.bf16.mxu0 0
        %2777 = vmatpush1.bf16.msra.mxu0 0
        %2778 = vmatprep.subr.bf16.mxu0 0
        %2779 = vmatpush1.bf16.msra.mxu0 0
        %2780 = vmatprep.subr.bf16.mxu0 0
        %2781 = vmatpush1.bf16.msra.mxu0 0
        %2782 = vmatprep.subr.bf16.mxu0 0
        %2783 = vmatpush1.bf16.msra.mxu0 0
        %2784 = vmatprep.subr.bf16.mxu0 0
        %2785 = vmatpush1.bf16.msra.mxu0 0
        %2786 = vmatprep.subr.bf16.mxu0 0
        %2787 = vmatpush1.bf16.msra.mxu0 0
        %2788 = vmatprep.subr.bf16.mxu0 0
        %2789 = vmatpush1.bf16.msra.mxu0 0
        %2790 = vmatprep.mubr.bf16.mxu0 0
        %2791 = vmatmul.mubr.bf16.gmra.mrb[0].mxu0 %v1854
        %v2792 = vpop.f32.mrb[0].mxu0
        %v2793 = vadd.f32 %v1135, %v2792
        %v2794 = vpop.f32.mrb[0].mxu0
        %v2795 = vadd.f32 %v1139, %v2794
        %v2796 = vpop.f32.mrb[0].mxu0
        %v2797 = vpop.f32.mrb[0].mxu0
        %2798 = vdwg.mxu0
        %2799 = vmatprep.subr.bf16.mxu0 %v1643
        %2800 = vmatpush1.bf16.msra.mxu0 %v1642
        %2801 = vmatprep.subr.bf16.mxu0 %v1707
        %2802 = vmatpush1.bf16.msra.mxu0 %v1706
        %2803 = vmatprep.subr.bf16.mxu0 0
        %2804 = vmatpush1.bf16.msra.mxu0 0
        %2805 = vmatprep.subr.bf16.mxu0 0
        %2806 = vmatpush1.bf16.msra.mxu0 0
        %2807 = vmatprep.subr.bf16.mxu0 0
        %2808 = vmatpush1.bf16.msra.mxu0 0
        %2809 = vmatprep.subr.bf16.mxu0 0
        %2810 = vmatpush1.bf16.msra.mxu0 0
        %2811 = vmatprep.subr.bf16.mxu0 0
        %2812 = vmatpush1.bf16.msra.mxu0 0
        %2813 = vmatprep.subr.bf16.mxu0 0
        %2814 = vmatpush1.bf16.msra.mxu0 0
        %2815 = vmatprep.subr.bf16.mxu0 0
        %2816 = vmatpush1.bf16.msra.mxu0 0
        %2817 = vmatprep.subr.bf16.mxu0 0
        %2818 = vmatpush1.bf16.msra.mxu0 0
        %2819 = vmatprep.subr.bf16.mxu0 0
        %2820 = vmatpush1.bf16.msra.mxu0 0
        %2821 = vmatprep.subr.bf16.mxu0 0
        %2822 = vmatpush1.bf16.msra.mxu0 0
        %2823 = vmatprep.subr.bf16.mxu0 0
        %2824 = vmatpush1.bf16.msra.mxu0 0
        %2825 = vmatprep.subr.bf16.mxu0 0
        %2826 = vmatpush1.bf16.msra.mxu0 0
        %2827 = vmatprep.subr.bf16.mxu0 0
        %2828 = vmatpush1.bf16.msra.mxu0 0
        %2829 = vmatprep.subr.bf16.mxu0 0
        %2830 = vmatpush1.bf16.msra.mxu0 0
        %2831 = vmatprep.mubr.bf16.mxu0 0
        %2832 = vmatmul.mubr.bf16.gmra.mrb[0].mxu0 %v1854
        %v2833 = vpop.f32.mrb[0].mxu0
        %v2834 = vadd.f32 %v1143, %v2833
        %v2835 = vpop.f32.mrb[0].mxu0
        %v2836 = vadd.f32 %v1147, %v2835
        %v2837 = vpop.f32.mrb[0].mxu0
        %v2838 = vpop.f32.mrb[0].mxu0
        %2839 = vdwg.mxu0
        %2840 = vmatprep.subr.bf16.mxu0 %v1645
        %2841 = vmatpush1.bf16.msra.mxu0 %v1644
        %2842 = vmatprep.subr.bf16.mxu0 %v1709
        %2843 = vmatpush1.bf16.msra.mxu0 %v1708
        %2844 = vmatprep.subr.bf16.mxu0 0
        %2845 = vmatpush1.bf16.msra.mxu0 0
        %2846 = vmatprep.subr.bf16.mxu0 0
        %2847 = vmatpush1.bf16.msra.mxu0 0
        %2848 = vmatprep.subr.bf16.mxu0 0
        %2849 = vmatpush1.bf16.msra.mxu0 0
        %2850 = vmatprep.subr.bf16.mxu0 0
        %2851 = vmatpush1.bf16.msra.mxu0 0
        %2852 = vmatprep.subr.bf16.mxu0 0
        %2853 = vmatpush1.bf16.msra.mxu0 0
        %2854 = vmatprep.subr.bf16.mxu0 0
        %2855 = vmatpush1.bf16.msra.mxu0 0
        %2856 = vmatprep.subr.bf16.mxu0 0
        %2857 = vmatpush1.bf16.msra.mxu0 0
        %2858 = vmatprep.subr.bf16.mxu0 0
        %2859 = vmatpush1.bf16.msra.mxu0 0
        %2860 = vmatprep.subr.bf16.mxu0 0
        %2861 = vmatpush1.bf16.msra.mxu0 0
        %2862 = vmatprep.subr.bf16.mxu0 0
        %2863 = vmatpush1.bf16.msra.mxu0 0
        %2864 = vmatprep.subr.bf16.mxu0 0
        %2865 = vmatpush1.bf16.msra.mxu0 0
        %2866 = vmatprep.subr.bf16.mxu0 0
        %2867 = vmatpush1.bf16.msra.mxu0 0
        %2868 = vmatprep.subr.bf16.mxu0 0
        %2869 = vmatpush1.bf16.msra.mxu0 0
        %2870 = vmatprep.subr.bf16.mxu0 0
        %2871 = vmatpush1.bf16.msra.mxu0 0
        %2872 = vmatprep.mubr.bf16.mxu0 0
        %2873 = vmatmul.mubr.bf16.gmra.mrb[0].mxu0 %v1854
        %v2874 = vpop.f32.mrb[0].mxu0
        %v2875 = vadd.f32 %v1151, %v2874
        %v2876 = vpop.f32.mrb[0].mxu0
        %v2877 = vadd.f32 %v1155, %v2876
        %v2878 = vpop.f32.mrb[0].mxu0
        %v2879 = vpop.f32.mrb[0].mxu0
        %2880 = vdwg.mxu0
        %2881 = vmatprep.subr.bf16.mxu0 %v1647
        %2882 = vmatpush1.bf16.msra.mxu0 %v1646
        %2883 = vmatprep.subr.bf16.mxu0 %v1711
        %2884 = vmatpush1.bf16.msra.mxu0 %v1710
        %2885 = vmatprep.subr.bf16.mxu0 0
        %2886 = vmatpush1.bf16.msra.mxu0 0
        %2887 = vmatprep.subr.bf16.mxu0 0
        %2888 = vmatpush1.bf16.msra.mxu0 0
        %2889 = vmatprep.subr.bf16.mxu0 0
        %2890 = vmatpush1.bf16.msra.mxu0 0
        %2891 = vmatprep.subr.bf16.mxu0 0
        %2892 = vmatpush1.bf16.msra.mxu0 0
        %2893 = vmatprep.subr.bf16.mxu0 0
        %2894 = vmatpush1.bf16.msra.mxu0 0
        %2895 = vmatprep.subr.bf16.mxu0 0
        %2896 = vmatpush1.bf16.msra.mxu0 0
        %2897 = vmatprep.subr.bf16.mxu0 0
        %2898 = vmatpush1.bf16.msra.mxu0 0
        %2899 = vmatprep.subr.bf16.mxu0 0
        %2900 = vmatpush1.bf16.msra.mxu0 0
        %2901 = vmatprep.subr.bf16.mxu0 0
        %2902 = vmatpush1.bf16.msra.mxu0 0
        %2903 = vmatprep.subr.bf16.mxu0 0
        %2904 = vmatpush1.bf16.msra.mxu0 0
        %2905 = vmatprep.subr.bf16.mxu0 0
        %2906 = vmatpush1.bf16.msra.mxu0 0
        %2907 = vmatprep.subr.bf16.mxu0 0
        %2908 = vmatpush1.bf16.msra.mxu0 0
        %2909 = vmatprep.subr.bf16.mxu0 0
        %2910 = vmatpush1.bf16.msra.mxu0 0
        %2911 = vmatprep.subr.bf16.mxu0 0
        %2912 = vmatpush1.bf16.msra.mxu0 0
        %2913 = vmatprep.mubr.bf16.mxu0 0
        %2914 = vmatmul.mubr.bf16.gmra.mrb[0].mxu0 %v1854
        %v2915 = vpop.f32.mrb[0].mxu0
        %v2916 = vadd.f32 %v1159, %v2915
        %v2917 = vpop.f32.mrb[0].mxu0
        %v2918 = vadd.f32 %v1163, %v2917
        %v2919 = vpop.f32.mrb[0].mxu0
        %v2920 = vpop.f32.mrb[0].mxu0
        %2921 = vdwg.mxu0
        %2922 = vmatprep.subr.bf16.mxu0 %v1649
        %2923 = vmatpush1.bf16.msra.mxu0 %v1648
        %2924 = vmatprep.subr.bf16.mxu0 %v1713
        %2925 = vmatpush1.bf16.msra.mxu0 %v1712
        %2926 = vmatprep.subr.bf16.mxu0 0
        %2927 = vmatpush1.bf16.msra.mxu0 0
        %2928 = vmatprep.subr.bf16.mxu0 0
        %2929 = vmatpush1.bf16.msra.mxu0 0
        %2930 = vmatprep.subr.bf16.mxu0 0
        %2931 = vmatpush1.bf16.msra.mxu0 0
        %2932 = vmatprep.subr.bf16.mxu0 0
        %2933 = vmatpush1.bf16.msra.mxu0 0
        %2934 = vmatprep.subr.bf16.mxu0 0
        %2935 = vmatpush1.bf16.msra.mxu0 0
        %2936 = vmatprep.subr.bf16.mxu0 0
        %2937 = vmatpush1.bf16.msra.mxu0 0
        %2938 = vmatprep.subr.bf16.mxu0 0
        %2939 = vmatpush1.bf16.msra.mxu0 0
        %2940 = vmatprep.subr.bf16.mxu0 0
        %2941 = vmatpush1.bf16.msra.mxu0 0
        %2942 = vmatprep.subr.bf16.mxu0 0
        %2943 = vmatpush1.bf16.msra.mxu0 0
        %2944 = vmatprep.subr.bf16.mxu0 0
        %2945 = vmatpush1.bf16.msra.mxu0 0
        %2946 = vmatprep.subr.bf16.mxu0 0
        %2947 = vmatpush1.bf16.msra.mxu0 0
        %2948 = vmatprep.subr.bf16.mxu0 0
        %2949 = vmatpush1.bf16.msra.mxu0 0
        %2950 = vmatprep.subr.bf16.mxu0 0
        %2951 = vmatpush1.bf16.msra.mxu0 0
        %2952 = vmatprep.subr.bf16.mxu0 0
        %2953 = vmatpush1.bf16.msra.mxu0 0
        %2954 = vmatprep.mubr.bf16.mxu0 0
        %2955 = vmatmul.mubr.bf16.gmra.mrb[0].mxu0 %v1854
        %v2956 = vpop.f32.mrb[0].mxu0
        %v2957 = vadd.f32 %v1167, %v2956
        %v2958 = vpop.f32.mrb[0].mxu0
        %v2959 = vadd.f32 %v1171, %v2958
        %v2960 = vpop.f32.mrb[0].mxu0
        %v2961 = vpop.f32.mrb[0].mxu0
        %2962 = vdwg.mxu0
        %2963 = vmatprep.subr.bf16.mxu0 %v1651
        %2964 = vmatpush1.bf16.msra.mxu0 %v1650
        %2965 = vmatprep.subr.bf16.mxu0 %v1715
        %2966 = vmatpush1.bf16.msra.mxu0 %v1714
        %2967 = vmatprep.subr.bf16.mxu0 0
        %2968 = vmatpush1.bf16.msra.mxu0 0
        %2969 = vmatprep.subr.bf16.mxu0 0
        %2970 = vmatpush1.bf16.msra.mxu0 0
        %2971 = vmatprep.subr.bf16.mxu0 0
        %2972 = vmatpush1.bf16.msra.mxu0 0
        %2973 = vmatprep.subr.bf16.mxu0 0
        %2974 = vmatpush1.bf16.msra.mxu0 0
        %2975 = vmatprep.subr.bf16.mxu0 0
        %2976 = vmatpush1.bf16.msra.mxu0 0
        %2977 = vmatprep.subr.bf16.mxu0 0
        %2978 = vmatpush1.bf16.msra.mxu0 0
        %2979 = vmatprep.subr.bf16.mxu0 0
        %2980 = vmatpush1.bf16.msra.mxu0 0
        %2981 = vmatprep.subr.bf16.mxu0 0
        %2982 = vmatpush1.bf16.msra.mxu0 0
        %2983 = vmatprep.subr.bf16.mxu0 0
        %2984 = vmatpush1.bf16.msra.mxu0 0
        %2985 = vmatprep.subr.bf16.mxu0 0
        %2986 = vmatpush1.bf16.msra.mxu0 0
        %2987 = vmatprep.subr.bf16.mxu0 0
        %2988 = vmatpush1.bf16.msra.mxu0 0
        %2989 = vmatprep.subr.bf16.mxu0 0
        %2990 = vmatpush1.bf16.msra.mxu0 0
        %2991 = vmatprep.subr.bf16.mxu0 0
        %2992 = vmatpush1.bf16.msra.mxu0 0
        %2993 = vmatprep.subr.bf16.mxu0 0
        %2994 = vmatpush1.bf16.msra.mxu0 0
        %2995 = vmatprep.mubr.bf16.mxu0 0
        %2996 = vmatmul.mubr.bf16.gmra.mrb[0].mxu0 %v1854
        %v2997 = vpop.f32.mrb[0].mxu0
        %v2998 = vadd.f32 %v1175, %v2997
        %v2999 = vpop.f32.mrb[0].mxu0
        %v3000 = vadd.f32 %v1179, %v2999
        %v3001 = vpop.f32.mrb[0].mxu0
        %v3002 = vpop.f32.mrb[0].mxu0
        %3003 = vdwg.mxu0
        %3004 = vmatprep.subr.bf16.mxu0 %v1653
        %3005 = vmatpush1.bf16.msra.mxu0 %v1652
        %3006 = vmatprep.subr.bf16.mxu0 %v1717
        %3007 = vmatpush1.bf16.msra.mxu0 %v1716
        %3008 = vmatprep.subr.bf16.mxu0 0
        %3009 = vmatpush1.bf16.msra.mxu0 0
        %3010 = vmatprep.subr.bf16.mxu0 0
        %3011 = vmatpush1.bf16.msra.mxu0 0
        %3012 = vmatprep.subr.bf16.mxu0 0
        %3013 = vmatpush1.bf16.msra.mxu0 0
        %3014 = vmatprep.subr.bf16.mxu0 0
        %3015 = vmatpush1.bf16.msra.mxu0 0
        %3016 = vmatprep.subr.bf16.mxu0 0
        %3017 = vmatpush1.bf16.msra.mxu0 0
        %3018 = vmatprep.subr.bf16.mxu0 0
        %3019 = vmatpush1.bf16.msra.mxu0 0
        %3020 = vmatprep.subr.bf16.mxu0 0
        %3021 = vmatpush1.bf16.msra.mxu0 0
        %3022 = vmatprep.subr.bf16.mxu0 0
        %3023 = vmatpush1.bf16.msra.mxu0 0
        %3024 = vmatprep.subr.bf16.mxu0 0
        %3025 = vmatpush1.bf16.msra.mxu0 0
        %3026 = vmatprep.subr.bf16.mxu0 0
        %3027 = vmatpush1.bf16.msra.mxu0 0
        %3028 = vmatprep.subr.bf16.mxu0 0
        %3029 = vmatpush1.bf16.msra.mxu0 0
        %3030 = vmatprep.subr.bf16.mxu0 0
        %3031 = vmatpush1.bf16.msra.mxu0 0
        %3032 = vmatprep.subr.bf16.mxu0 0
        %3033 = vmatpush1.bf16.msra.mxu0 0
        %3034 = vmatprep.subr.bf16.mxu0 0
        %3035 = vmatpush1.bf16.msra.mxu0 0
        %3036 = vmatprep.mubr.bf16.mxu0 0
        %3037 = vmatmul.mubr.bf16.gmra.mrb[0].mxu0 %v1854
        %v3038 = vpop.f32.mrb[0].mxu0
        %v3039 = vadd.f32 %v1183, %v3038
        %v3040 = vpop.f32.mrb[0].mxu0
        %v3041 = vadd.f32 %v1187, %v3040
        %v3042 = vpop.f32.mrb[0].mxu0
        %v3043 = vpop.f32.mrb[0].mxu0
        %3044 = vdwg.mxu0
        %3045 = vmatprep.subr.bf16.mxu0 %v1655
        %3046 = vmatpush1.bf16.msra.mxu0 %v1654
        %3047 = vmatprep.subr.bf16.mxu0 %v1719
        %3048 = vmatpush1.bf16.msra.mxu0 %v1718
        %3049 = vmatprep.subr.bf16.mxu0 0
        %3050 = vmatpush1.bf16.msra.mxu0 0
        %3051 = vmatprep.subr.bf16.mxu0 0
        %3052 = vmatpush1.bf16.msra.mxu0 0
        %3053 = vmatprep.subr.bf16.mxu0 0
        %3054 = vmatpush1.bf16.msra.mxu0 0
        %3055 = vmatprep.subr.bf16.mxu0 0
        %3056 = vmatpush1.bf16.msra.mxu0 0
        %3057 = vmatprep.subr.bf16.mxu0 0
        %3058 = vmatpush1.bf16.msra.mxu0 0
        %3059 = vmatprep.subr.bf16.mxu0 0
        %3060 = vmatpush1.bf16.msra.mxu0 0
        %3061 = vmatprep.subr.bf16.mxu0 0
        %3062 = vmatpush1.bf16.msra.mxu0 0
        %3063 = vmatprep.subr.bf16.mxu0 0
        %3064 = vmatpush1.bf16.msra.mxu0 0
        %3065 = vmatprep.subr.bf16.mxu0 0
        %3066 = vmatpush1.bf16.msra.mxu0 0
        %3067 = vmatprep.subr.bf16.mxu0 0
        %3068 = vmatpush1.bf16.msra.mxu0 0
        %3069 = vmatprep.subr.bf16.mxu0 0
        %3070 = vmatpush1.bf16.msra.mxu0 0
        %3071 = vmatprep.subr.bf16.mxu0 0
        %3072 = vmatpush1.bf16.msra.mxu0 0
        %3073 = vmatprep.subr.bf16.mxu0 0
        %3074 = vmatpush1.bf16.msra.mxu0 0
        %3075 = vmatprep.subr.bf16.mxu0 0
        %3076 = vmatpush1.bf16.msra.mxu0 0
        %3077 = vmatprep.mubr.bf16.mxu0 0
        %3078 = vmatmul.mubr.bf16.gmra.mrb[0].mxu0 %v1854
        %v3079 = vpop.f32.mrb[0].mxu0
        %v3080 = vadd.f32 %v1191, %v3079
        %v3081 = vpop.f32.mrb[0].mxu0
        %v3082 = vadd.f32 %v1195, %v3081
        %v3083 = vpop.f32.mrb[0].mxu0
        %v3084 = vpop.f32.mrb[0].mxu0
        %3085 = vdwg.mxu0
        %3086 = vmatprep.subr.bf16.mxu0 %v1657
        %3087 = vmatpush1.bf16.msra.mxu0 %v1656
        %3088 = vmatprep.subr.bf16.mxu0 %v1721
        %3089 = vmatpush1.bf16.msra.mxu0 %v1720
        %3090 = vmatprep.subr.bf16.mxu0 0
        %3091 = vmatpush1.bf16.msra.mxu0 0
        %3092 = vmatprep.subr.bf16.mxu0 0
        %3093 = vmatpush1.bf16.msra.mxu0 0
        %3094 = vmatprep.subr.bf16.mxu0 0
        %3095 = vmatpush1.bf16.msra.mxu0 0
        %3096 = vmatprep.subr.bf16.mxu0 0
        %3097 = vmatpush1.bf16.msra.mxu0 0
        %3098 = vmatprep.subr.bf16.mxu0 0
        %3099 = vmatpush1.bf16.msra.mxu0 0
        %3100 = vmatprep.subr.bf16.mxu0 0
        %3101 = vmatpush1.bf16.msra.mxu0 0
        %3102 = vmatprep.subr.bf16.mxu0 0
        %3103 = vmatpush1.bf16.msra.mxu0 0
        %3104 = vmatprep.subr.bf16.mxu0 0
        %3105 = vmatpush1.bf16.msra.mxu0 0
        %3106 = vmatprep.subr.bf16.mxu0 0
        %3107 = vmatpush1.bf16.msra.mxu0 0
        %3108 = vmatprep.subr.bf16.mxu0 0
        %3109 = vmatpush1.bf16.msra.mxu0 0
        %3110 = vmatprep.subr.bf16.mxu0 0
        %3111 = vmatpush1.bf16.msra.mxu0 0
        %3112 = vmatprep.subr.bf16.mxu0 0
        %3113 = vmatpush1.bf16.msra.mxu0 0
        %3114 = vmatprep.subr.bf16.mxu0 0
        %3115 = vmatpush1.bf16.msra.mxu0 0
        %3116 = vmatprep.subr.bf16.mxu0 0
        %3117 = vmatpush1.bf16.msra.mxu0 0
        %3118 = vmatprep.mubr.bf16.mxu0 0
        %3119 = vmatmul.mubr.bf16.gmra.mrb[0].mxu0 %v1854
        %v3120 = vpop.f32.mrb[0].mxu0
        %v3121 = vadd.f32 %v1199, %v3120
        %v3122 = vpop.f32.mrb[0].mxu0
        %v3123 = vadd.f32 %v1203, %v3122
        %v3124 = vpop.f32.mrb[0].mxu0
        %v3125 = vpop.f32.mrb[0].mxu0
        %3126 = vdwg.mxu0
        %3127 = vmatprep.subr.bf16.mxu0 %v1659
        %3128 = vmatpush1.bf16.msra.mxu0 %v1658
        %3129 = vmatprep.subr.bf16.mxu0 %v1723
        %3130 = vmatpush1.bf16.msra.mxu0 %v1722
        %3131 = vmatprep.subr.bf16.mxu0 0
        %3132 = vmatpush1.bf16.msra.mxu0 0
        %3133 = vmatprep.subr.bf16.mxu0 0
        %3134 = vmatpush1.bf16.msra.mxu0 0
        %3135 = vmatprep.subr.bf16.mxu0 0
        %3136 = vmatpush1.bf16.msra.mxu0 0
        %3137 = vmatprep.subr.bf16.mxu0 0
        %3138 = vmatpush1.bf16.msra.mxu0 0
        %3139 = vmatprep.subr.bf16.mxu0 0
        %3140 = vmatpush1.bf16.msra.mxu0 0
        %3141 = vmatprep.subr.bf16.mxu0 0
        %3142 = vmatpush1.bf16.msra.mxu0 0
        %3143 = vmatprep.subr.bf16.mxu0 0
        %3144 = vmatpush1.bf16.msra.mxu0 0
        %3145 = vmatprep.subr.bf16.mxu0 0
        %3146 = vmatpush1.bf16.msra.mxu0 0
        %3147 = vmatprep.subr.bf16.mxu0 0
        %3148 = vmatpush1.bf16.msra.mxu0 0
        %3149 = vmatprep.subr.bf16.mxu0 0
        %3150 = vmatpush1.bf16.msra.mxu0 0
        %3151 = vmatprep.subr.bf16.mxu0 0
        %3152 = vmatpush1.bf16.msra.mxu0 0
        %3153 = vmatprep.subr.bf16.mxu0 0
        %3154 = vmatpush1.bf16.msra.mxu0 0
        %3155 = vmatprep.subr.bf16.mxu0 0
        %3156 = vmatpush1.bf16.msra.mxu0 0
        %3157 = vmatprep.subr.bf16.mxu0 0
        %3158 = vmatpush1.bf16.msra.mxu0 0
        %3159 = vmatprep.mubr.bf16.mxu0 0
        %3160 = vmatmul.mubr.bf16.gmra.mrb[0].mxu0 %v1854
        %v3161 = vpop.f32.mrb[0].mxu0
        %v3162 = vadd.f32 %v1207, %v3161
        %v3163 = vpop.f32.mrb[0].mxu0
        %v3164 = vadd.f32 %v1211, %v3163
        %v3165 = vpop.f32.mrb[0].mxu0
        %v3166 = vpop.f32.mrb[0].mxu0
        %3167 = vdwg.mxu0
        %v3232 = vcombine.low %v1891, %v1893
        %v3233 = vcombine.low %v1932, %v1934
        %v3235 = vunpack.c.l.s4 1983009808
        %v3236 = vunpack.c.0.s8 %v3235
        %v3237 = vlaneseq
        %v3238 = vshrl.u32 %v3237, 7
        %v3239 = vsub.s32 %v3236, %v3238
        %v3240 = vrot.slane %v3232, %v3239
        %v3242 = vunpack.c.l.s4 1983009808
        %v3243 = vunpack.c.0.s8 %v3242
        %v3244 = vlaneseq
        %v3245 = vshrl.u32 %v3244, 7
        %v3246 = vsub.s32 %v3243, %v3245
        %v3247 = vrot.slane %v3233, %v3246
        %v3248 = vcombine.low %v3240, %v3247
        %v3249 = vcombine.low %v1973, %v1975
        %v3250 = vcombine.low %v2014, %v2016
        %v3252 = vunpack.c.l.s4 1983009808
        %v3253 = vunpack.c.0.s8 %v3252
        %v3254 = vlaneseq
        %v3255 = vshrl.u32 %v3254, 7
        %v3256 = vsub.s32 %v3253, %v3255
        %v3257 = vrot.slane %v3249, %v3256
        %v3259 = vunpack.c.l.s4 1983009808
        %v3260 = vunpack.c.0.s8 %v3259
        %v3261 = vlaneseq
        %v3262 = vshrl.u32 %v3261, 7
        %v3263 = vsub.s32 %v3260, %v3262
        %v3264 = vrot.slane %v3250, %v3263
        %v3265 = vcombine.low %v3257, %v3264
        %v3266 = vcombine.low %v2055, %v2057
        %v3267 = vcombine.low %v2096, %v2098
        %v3269 = vunpack.c.l.s4 1983009808
        %v3270 = vunpack.c.0.s8 %v3269
        %v3271 = vlaneseq
        %v3272 = vshrl.u32 %v3271, 7
        %v3273 = vsub.s32 %v3270, %v3272
        %v3274 = vrot.slane %v3266, %v3273
        %v3276 = vunpack.c.l.s4 1983009808
        %v3277 = vunpack.c.0.s8 %v3276
        %v3278 = vlaneseq
        %v3279 = vshrl.u32 %v3278, 7
        %v3280 = vsub.s32 %v3277, %v3279
        %v3281 = vrot.slane %v3267, %v3280
        %v3282 = vcombine.low %v3274, %v3281
        %v3283 = vcombine.low %v2137, %v2139
        %v3284 = vcombine.low %v2178, %v2180
        %v3286 = vunpack.c.l.s4 1983009808
        %v3287 = vunpack.c.0.s8 %v3286
        %v3288 = vlaneseq
        %v3289 = vshrl.u32 %v3288, 7
        %v3290 = vsub.s32 %v3287, %v3289
        %v3291 = vrot.slane %v3283, %v3290
        %v3293 = vunpack.c.l.s4 1983009808
        %v3294 = vunpack.c.0.s8 %v3293
        %v3295 = vlaneseq
        %v3296 = vshrl.u32 %v3295, 7
        %v3297 = vsub.s32 %v3294, %v3296
        %v3298 = vrot.slane %v3284, %v3297
        %v3299 = vcombine.low %v3291, %v3298
        %v3300 = vcombine.low %v2219, %v2221
        %v3301 = vcombine.low %v2260, %v2262
        %v3303 = vunpack.c.l.s4 1983009808
        %v3304 = vunpack.c.0.s8 %v3303
        %v3305 = vlaneseq
        %v3306 = vshrl.u32 %v3305, 7
        %v3307 = vsub.s32 %v3304, %v3306
        %v3308 = vrot.slane %v3300, %v3307
        %v3310 = vunpack.c.l.s4 1983009808
        %v3311 = vunpack.c.0.s8 %v3310
        %v3312 = vlaneseq
        %v3313 = vshrl.u32 %v3312, 7
        %v3314 = vsub.s32 %v3311, %v3313
        %v3315 = vrot.slane %v3301, %v3314
        %v3316 = vcombine.low %v3308, %v3315
        %v3317 = vcombine.low %v2301, %v2303
        %v3318 = vcombine.low %v2342, %v2344
        %v3320 = vunpack.c.l.s4 1983009808
        %v3321 = vunpack.c.0.s8 %v3320
        %v3322 = vlaneseq
        %v3323 = vshrl.u32 %v3322, 7
        %v3324 = vsub.s32 %v3321, %v3323
        %v3325 = vrot.slane %v3317, %v3324
        %v3327 = vunpack.c.l.s4 1983009808
        %v3328 = vunpack.c.0.s8 %v3327
        %v3329 = vlaneseq
        %v3330 = vshrl.u32 %v3329, 7
        %v3331 = vsub.s32 %v3328, %v3330
        %v3332 = vrot.slane %v3318, %v3331
        %v3333 = vcombine.low %v3325, %v3332
        %v3334 = vcombine.low %v2383, %v2385
        %v3335 = vcombine.low %v2424, %v2426
        %v3337 = vunpack.c.l.s4 1983009808
        %v3338 = vunpack.c.0.s8 %v3337
        %v3339 = vlaneseq
        %v3340 = vshrl.u32 %v3339, 7
        %v3341 = vsub.s32 %v3338, %v3340
        %v3342 = vrot.slane %v3334, %v3341
        %v3344 = vunpack.c.l.s4 1983009808
        %v3345 = vunpack.c.0.s8 %v3344
        %v3346 = vlaneseq
        %v3347 = vshrl.u32 %v3346, 7
        %v3348 = vsub.s32 %v3345, %v3347
        %v3349 = vrot.slane %v3335, %v3348
        %v3350 = vcombine.low %v3342, %v3349
        %v3351 = vcombine.low %v2465, %v2467
        %v3352 = vcombine.low %v2506, %v2508
        %v3354 = vunpack.c.l.s4 1983009808
        %v3355 = vunpack.c.0.s8 %v3354
        %v3356 = vlaneseq
        %v3357 = vshrl.u32 %v3356, 7
        %v3358 = vsub.s32 %v3355, %v3357
        %v3359 = vrot.slane %v3351, %v3358
        %v3361 = vunpack.c.l.s4 1983009808
        %v3362 = vunpack.c.0.s8 %v3361
        %v3363 = vlaneseq
        %v3364 = vshrl.u32 %v3363, 7
        %v3365 = vsub.s32 %v3362, %v3364
        %v3366 = vrot.slane %v3352, %v3365
        %v3367 = vcombine.low %v3359, %v3366
        %v3368 = vcombine.low %v2547, %v2549
        %v3369 = vcombine.low %v2588, %v2590
        %v3371 = vunpack.c.l.s4 1983009808
        %v3372 = vunpack.c.0.s8 %v3371
        %v3373 = vlaneseq
        %v3374 = vshrl.u32 %v3373, 7
        %v3375 = vsub.s32 %v3372, %v3374
        %v3376 = vrot.slane %v3368, %v3375
        %v3378 = vunpack.c.l.s4 1983009808
        %v3379 = vunpack.c.0.s8 %v3378
        %v3380 = vlaneseq
        %v3381 = vshrl.u32 %v3380, 7
        %v3382 = vsub.s32 %v3379, %v3381
        %v3383 = vrot.slane %v3369, %v3382
        %v3384 = vcombine.low %v3376, %v3383
        %v3385 = vcombine.low %v2629, %v2631
        %v3386 = vcombine.low %v2670, %v2672
        %v3388 = vunpack.c.l.s4 1983009808
        %v3389 = vunpack.c.0.s8 %v3388
        %v3390 = vlaneseq
        %v3391 = vshrl.u32 %v3390, 7
        %v3392 = vsub.s32 %v3389, %v3391
        %v3393 = vrot.slane %v3385, %v3392
        %v3395 = vunpack.c.l.s4 1983009808
        %v3396 = vunpack.c.0.s8 %v3395
        %v3397 = vlaneseq
        %v3398 = vshrl.u32 %v3397, 7
        %v3399 = vsub.s32 %v3396, %v3398
        %v3400 = vrot.slane %v3386, %v3399
        %v3401 = vcombine.low %v3393, %v3400
        %v3402 = vcombine.low %v2711, %v2713
        %v3403 = vcombine.low %v2752, %v2754
        %v3405 = vunpack.c.l.s4 1983009808
        %v3406 = vunpack.c.0.s8 %v3405
        %v3407 = vlaneseq
        %v3408 = vshrl.u32 %v3407, 7
        %v3409 = vsub.s32 %v3406, %v3408
        %v3410 = vrot.slane %v3402, %v3409
        %v3412 = vunpack.c.l.s4 1983009808
        %v3413 = vunpack.c.0.s8 %v3412
        %v3414 = vlaneseq
        %v3415 = vshrl.u32 %v3414, 7
        %v3416 = vsub.s32 %v3413, %v3415
        %v3417 = vrot.slane %v3403, %v3416
        %v3418 = vcombine.low %v3410, %v3417
        %v3419 = vcombine.low %v2793, %v2795
        %v3420 = vcombine.low %v2834, %v2836
        %v3422 = vunpack.c.l.s4 1983009808
        %v3423 = vunpack.c.0.s8 %v3422
        %v3424 = vlaneseq
        %v3425 = vshrl.u32 %v3424, 7
        %v3426 = vsub.s32 %v3423, %v3425
        %v3427 = vrot.slane %v3419, %v3426
        %v3429 = vunpack.c.l.s4 1983009808
        %v3430 = vunpack.c.0.s8 %v3429
        %v3431 = vlaneseq
        %v3432 = vshrl.u32 %v3431, 7
        %v3433 = vsub.s32 %v3430, %v3432
        %v3434 = vrot.slane %v3420, %v3433
        %v3435 = vcombine.low %v3427, %v3434
        %v3436 = vcombine.low %v2875, %v2877
        %v3437 = vcombine.low %v2916, %v2918
        %v3439 = vunpack.c.l.s4 1983009808
        %v3440 = vunpack.c.0.s8 %v3439
        %v3441 = vlaneseq
        %v3442 = vshrl.u32 %v3441, 7
        %v3443 = vsub.s32 %v3440, %v3442
        %v3444 = vrot.slane %v3436, %v3443
        %v3446 = vunpack.c.l.s4 1983009808
        %v3447 = vunpack.c.0.s8 %v3446
        %v3448 = vlaneseq
        %v3449 = vshrl.u32 %v3448, 7
        %v3450 = vsub.s32 %v3447, %v3449
        %v3451 = vrot.slane %v3437, %v3450
        %v3452 = vcombine.low %v3444, %v3451
        %v3453 = vcombine.low %v2957, %v2959
        %v3454 = vcombine.low %v2998, %v3000
        %v3456 = vunpack.c.l.s4 1983009808
        %v3457 = vunpack.c.0.s8 %v3456
        %v3458 = vlaneseq
        %v3459 = vshrl.u32 %v3458, 7
        %v3460 = vsub.s32 %v3457, %v3459
        %v3461 = vrot.slane %v3453, %v3460
        %v3463 = vunpack.c.l.s4 1983009808
        %v3464 = vunpack.c.0.s8 %v3463
        %v3465 = vlaneseq
        %v3466 = vshrl.u32 %v3465, 7
        %v3467 = vsub.s32 %v3464, %v3466
        %v3468 = vrot.slane %v3454, %v3467
        %v3469 = vcombine.low %v3461, %v3468
        %v3470 = vcombine.low %v3039, %v3041
        %v3471 = vcombine.low %v3080, %v3082
        %v3473 = vunpack.c.l.s4 1983009808
        %v3474 = vunpack.c.0.s8 %v3473
        %v3475 = vlaneseq
        %v3476 = vshrl.u32 %v3475, 7
        %v3477 = vsub.s32 %v3474, %v3476
        %v3478 = vrot.slane %v3470, %v3477
        %v3480 = vunpack.c.l.s4 1983009808
        %v3481 = vunpack.c.0.s8 %v3480
        %v3482 = vlaneseq
        %v3483 = vshrl.u32 %v3482, 7
        %v3484 = vsub.s32 %v3481, %v3483
        %v3485 = vrot.slane %v3471, %v3484
        %v3486 = vcombine.low %v3478, %v3485
        %v3487 = vcombine.low %v3121, %v3123
        %v3488 = vcombine.low %v3162, %v3164
        %v3490 = vunpack.c.l.s4 1983009808
        %v3491 = vunpack.c.0.s8 %v3490
        %v3492 = vlaneseq
        %v3493 = vshrl.u32 %v3492, 7
        %v3494 = vsub.s32 %v3491, %v3493
        %v3495 = vrot.slane %v3487, %v3494
        %v3497 = vunpack.c.l.s4 1983009808
        %v3498 = vunpack.c.0.s8 %v3497
        %v3499 = vlaneseq
        %v3500 = vshrl.u32 %v3499, 7
        %v3501 = vsub.s32 %v3498, %v3500
        %v3502 = vrot.slane %v3488, %v3501
        %v3503 = vcombine.low %v3495, %v3502
        %3520 = vst [vmem:[%s464] sm:$0xff] %v3248
        %3521 = vst [vmem:[%s464 + $0x8] sm:$0xff] %v3265
        %3522 = vst [vmem:[%s464 + $0x10] sm:$0xff] %v3282
        %3523 = vst [vmem:[%s464 + $0x18] sm:$0xff] %v3299
        %3524 = vst [vmem:[%s464 + $0x20] sm:$0xff] %v3316
        %3525 = vst [vmem:[%s464 + $0x28] sm:$0xff] %v3333
        %3526 = vst [vmem:[%s464 + $0x30] sm:$0xff] %v3350
        %3527 = vst [vmem:[%s464 + $0x38] sm:$0xff] %v3367
        %3528 = vst [vmem:[%s464 + $0x40] sm:$0xff] %v3384
        %3529 = vst [vmem:[%s464 + $0x48] sm:$0xff] %v3401
        %3530 = vst [vmem:[%s464 + $0x50] sm:$0xff] %v3418
        %3531 = vst [vmem:[%s464 + $0x58] sm:$0xff] %v3435
        %3532 = vst [vmem:[%s464 + $0x60] sm:$0xff] %v3452
        %3533 = vst [vmem:[%s464 + $0x68] sm:$0xff] %v3469
        %3534 = vst [vmem:[%s464 + $0x70] sm:$0xff] %v3486
        %3535 = vst [vmem:[%s464 + $0x78] sm:$0xff] %v3503
        %s3536 = smul.u32 64, %s14
        %p3537 = scmp.lt.s32.totalorder %s3536, 127
        %s3538 = scalar_select %p3537, %s3536, 127
        %s3539 = smul.addr %s3538, 2
        %s3540 = scalar_lea.vmem %s3, %s3539
        // Predicated region
        $region56: #{forward.1} parent=50 // pred_check
          %p3541 = pneg %p105
        $region57: #{forward.1} parent=50 // pred_check_branch
          %3543 = sbr.rel (%p3541) target = $region59
        $region58: #{forward.1} parent=50 // pred_region
          %s3544 = smul.u32 64, %s14
        $region59: #{forward.1} parent=50 // pred_fallthru
          _
      $region51: #{forward.1} parent=5 // pred_fallthru
        _
      %p3545 = scmp.le.s32.totalorder 2, %s9
      // Predicated region
      $region60: #{forward.1} parent=5 // pred_check
        %p3546 = pneg %p3545
      $region61: #{forward.1} parent=5 // pred_check_branch
        %3548 = sbr.rel (%p3546) target = $region63
      $region62: #{forward.1} parent=5 // pred_region
        %s3549 = ssub.s32 %s9, 2
        // Predicated region
        $region64: #{forward.1} parent=62 // pred_check
          %p3550 = pneg %p111
        $region65: #{forward.1} parent=62 // pred_check_branch
          %3552 = sbr.rel (%p3550) target = $region67
        $region66: #{forward.1} parent=62 // pred_region
          %s3553 = smul.u32 64, %s15
          %p3554 = scmp.lt.s32.totalorder %s3553, 127
          %s3555 = scalar_select %p3554, %s3553, 127
          %s3556 = smul.addr %s3555, 2
          %s3557 = scalar_lea.vmem %s3, %s3556
        $region67: #{forward.1} parent=62 // pred_fallthru
          _
      $region63: #{forward.1} parent=5 // pred_fallthru
        _
    $region6: #{forward.1} parent=1 // loop_footer
      %s13 = sadd.s32 1, %s9
    $region7: #{forward.1} parent=1 // loop_footer_branch
      %8 = sbr.rel target = $region3
    $region8: #{forward.1} parent=1 // loop_exit
      _

</llo_original>
